<compile_context>
chip_gen: v6e
topology: v6e:2x2x1
jax: 0.10.0
libtpu: 0.0.40
codegen_flags: <defaults>
</compile_context>

<pallas_src>
import functools

import jax
import jax.numpy as jnp
from jax.experimental import pallas as pl
from jax.experimental.pallas import tpu as pltpu

BN_EPS = 1e-5
FEAT = 1024            # conv3 output channels (max-pooled feature width)
OUT_PAD = 128          # lane-dense padded width of the fc3 output (real width = 9)
ROWS_PER_STEP = 2048   # cap on TB*TN: (rows, 1024) f32 conv3 tile stays <= 8 MiB


# ----------------------------------------------------------------------------
# Pallas kernel: one grid step handles TB batch elements x TN points.
# ----------------------------------------------------------------------------
def stn3d_kernel(x_ref,
                 w1_ref, s1_ref, t1_ref,
                 w2_ref, s2_ref, t2_ref,
                 w3_ref, s3_ref, t3_ref,
                 w4_ref, s4_ref, t4_ref,
                 w5_ref, s5_ref, t5_ref,
                 w6_ref, b6_ref,
                 out_ref, acc_ref,
                 *, tb, tn, cin):
    n = pl.program_id(1)

    x = x_ref[...].reshape(tb * tn, cin)                    # (rows, C) f32

    # conv1 (1x1, K = C = 3): VPU broadcast-FMA instead of a K=3 MXU pass.
    h = x[:, 0:1] * w1_ref[0:1, :]
    for c in range(1, cin):
        h = h + x[:, c:c + 1] * w1_ref[c:c + 1, :]
    h = jnp.maximum(h * s1_ref[...] + t1_ref[...], 0.0)     # (rows, 64)

    # conv2 + bn2 + relu   (bf16 MXU, f32 accumulation)
    h = jnp.dot(h.astype(jnp.bfloat16), w2_ref[...],
                preferred_element_type=jnp.float32)
    h = jnp.maximum(h * s2_ref[...] + t2_ref[...], 0.0)     # (rows, 128)

    # conv3 + bn3 (no activation before the pool)
    h = jnp.dot(h.astype(jnp.bfloat16), w3_ref[...],
                preferred_element_type=jnp.float32)
    h = h * s3_ref[...] + t3_ref[...]                        # (rows, 1024)

    # running max-pool over the point dimension (tiled over the N grid axis)
    hm = jnp.max(h.reshape(tb, tn, FEAT), axis=1)            # (tb, 1024)

    @pl.when(n == 0)
    def _():
        acc_ref[...] = hm

    @pl.when(n > 0)
    def _():
        acc_ref[...] = jnp.maximum(acc_ref[...], hm)

    # FC head: only on the last N tile of this batch block.
    @pl.when(n == pl.num_programs(1) - 1)
    def _():
        g = acc_ref[...].astype(jnp.bfloat16)                # (tb, 1024)
        f = jnp.dot(g, w4_ref[...], preferred_element_type=jnp.float32)
        f = jnp.maximum(f * s4_ref[...] + t4_ref[...], 0.0)  # (tb, 512)
        f = jnp.dot(f.astype(jnp.bfloat16), w5_ref[...],
                    preferred_element_type=jnp.float32)
        f = jnp.maximum(f * s5_ref[...] + t5_ref[...], 0.0)  # (tb, 256)
        # fc3: bias already carries the identity offset and the zero lane padding.
        f = jnp.dot(f.astype(jnp.bfloat16), w6_ref[...],
                    preferred_element_type=jnp.float32) + b6_ref[...]
        out_ref[...] = f                                     # (tb, OUT_PAD), unmasked store


# ----------------------------------------------------------------------------
# Parameter construction (deterministic, synthetic) and BN folding.
# ----------------------------------------------------------------------------
def make_params(channel, key):
    dims = [(channel, 64), (64, 128), (128, FEAT), (FEAT, 512), (512, 256), (256, 9)]
    keys = jax.random.split(key, 64)
    ki = iter(range(64))
    params = {}
    for li, (cin, cout) in enumerate(dims, start=1):
        params[f"w{li}"] = (jax.random.normal(keys[next(ki)], (cin, cout), jnp.float32)
                            * (1.0 / jnp.sqrt(cin)))
        params[f"b{li}"] = jax.random.normal(keys[next(ki)], (cout,), jnp.float32) * 0.05
    # BatchNorm params for the 5 BN layers (inference-mode running stats).
    for li, cout in enumerate([64, 128, FEAT, 512, 256], start=1):
        params[f"gamma{li}"] = 1.0 + 0.1 * jax.random.normal(keys[next(ki)], (cout,), jnp.float32)
        params[f"beta{li}"] = 0.1 * jax.random.normal(keys[next(ki)], (cout,), jnp.float32)
        params[f"mean{li}"] = 0.1 * jax.random.normal(keys[next(ki)], (cout,), jnp.float32)
        params[f"var{li}"] = jnp.abs(jax.random.normal(keys[next(ki)], (cout,), jnp.float32)) + 0.5
    return params


def fold_params(p):
    """Fold BN (inference) + bias into scale/shift; bf16 weights; fold iden into b6."""
    folded = {}
    for li in range(1, 6):
        scale = p[f"gamma{li}"] / jnp.sqrt(p[f"var{li}"] + BN_EPS)
        shift = p[f"beta{li}"] - p[f"mean{li}"] * scale + p[f"b{li}"] * scale
        w = p[f"w{li}"]
        # conv1 stays f32 (used as a VPU FMA); the MXU weights go bf16.
        folded[f"w{li}"] = w.astype(jnp.float32) if li == 1 else w.astype(jnp.bfloat16)
        folded[f"s{li}"] = scale.reshape(1, -1).astype(jnp.float32)
        folded[f"t{li}"] = shift.reshape(1, -1).astype(jnp.float32)
    # fc3: pad to OUT_PAD lanes (lane-dense output store) and fold in the identity offset.
    w6 = jnp.zeros((p["w6"].shape[0], OUT_PAD), jnp.float32).at[:, :9].set(p["w6"])
    iden = jnp.array([1., 0., 0., 0., 1., 0., 0., 0., 1.], jnp.float32)
    b6 = jnp.zeros((OUT_PAD,), jnp.float32).at[:9].set(p["b6"] + iden)
    folded["w6"] = w6.astype(jnp.bfloat16)
    folded["b6"] = b6.reshape(1, -1)
    return folded


# ----------------------------------------------------------------------------
# Tiling heuristics.
# ----------------------------------------------------------------------------
def _pick_tb(batch):
    # block second-to-last dim of the output must be a multiple of 8 or the full extent
    if batch % 8 == 0:
        return min(batch, 8)
    return batch


def _pick_tn(n_points, tb):
    max_tn = max(8, ROWS_PER_STEP // max(tb, 1))
    for cand in (2048, 1024, 512, 256, 128, 64, 32, 16, 8):
        if cand <= max_tn and n_points % cand == 0:
            return cand
    return n_points


# ----------------------------------------------------------------------------
# Wrapper: PyTorch-convention input (B, channel, N) -> output (B, 3, 3).
# ----------------------------------------------------------------------------
def stn3d_forward(x, folded, *, channels_last=False, tb=None, tn=None):
    if channels_last:
        x_nwc = x.astype(jnp.float32)                       # caller already gives (B, N, C)
    else:
        # PyTorch layout (B, C, N); tiny 3-channel relayout done once in XLA.
        x_nwc = jnp.transpose(x, (0, 2, 1)).astype(jnp.float32)
    B, N, C = x_nwc.shape

    tb = tb or _pick_tb(B)
    tn = tn or _pick_tn(N, tb)
    assert B % tb == 0 and N % tn == 0, "batch/points must be divisible by the chosen tiles"

    ops = [x_nwc,
           folded["w1"], folded["s1"], folded["t1"],
           folded["w2"], folded["s2"], folded["t2"],
           folded["w3"], folded["s3"], folded["t3"],
           folded["w4"], folded["s4"], folded["t4"],
           folded["w5"], folded["s5"], folded["t5"],
           folded["w6"], folded["b6"]]

    def const2d(a):
        return pl.BlockSpec(a.shape, lambda b, n: (0, 0))

    in_specs = [pl.BlockSpec((tb, tn, C), lambda b, n: (b, n, 0))]
    in_specs += [const2d(a) for a in ops[1:]]

    flops = (2 * B * N * (C * 64 + 64 * 128 + 128 * FEAT)
             + 2 * B * (FEAT * 512 + 512 * 256 + 256 * OUT_PAD))
    bytes_accessed = (int(x_nwc.size) * 4
                      + sum(int(a.size) * a.dtype.itemsize for a in ops[1:])
                      + B * OUT_PAD * 4)

    out = pl.pallas_call(
        functools.partial(stn3d_kernel, tb=tb, tn=tn, cin=C),
        out_shape=jax.ShapeDtypeStruct((B, OUT_PAD), jnp.float32),
        grid=(B // tb, N // tn),
        in_specs=in_specs,
        out_specs=pl.BlockSpec((tb, OUT_PAD), lambda b, n: (b, 0)),
        scratch_shapes=[pltpu.VMEM((tb, FEAT), jnp.float32)],
        compiler_params=pltpu.CompilerParams(
            dimension_semantics=("parallel", "arbitrary"),
            vmem_limit_bytes=32 * 1024 * 1024),
        cost_estimate=pl.CostEstimate(flops=flops, transcendentals=0,
                                      bytes_accessed=bytes_accessed),
    )(*ops)
    return out[:, :9].reshape(B, 3, 3)


# ----------------------------------------------------------------------------
# Pure-JAX reference (same bf16 quantization points) for correctness check.
# ----------------------------------------------------------------------------
def stn3d_ref(x_ncw, f):
    x = jnp.transpose(x_ncw, (0, 2, 1)).astype(jnp.float32)  # (B, N, C)
    B, N, C = x.shape
    x2 = x.reshape(B * N, C)
    h = x2[:, 0:1] * f["w1"][0:1, :]
    for c in range(1, C):
        h = h + x2[:, c:c + 1] * f["w1"][c:c + 1, :]
    h = jnp.maximum(h * f["s1"] + f["t1"], 0.0)
    h = jnp.dot(h.astype(jnp.bfloat16), f["w2"], preferred_element_type=jnp.float32)
    h = jnp.maximum(h * f["s2"] + f["t2"], 0.0)
    h = jnp.dot(h.astype(jnp.bfloat16), f["w3"], preferred_element_type=jnp.float32)
    h = h * f["s3"] + f["t3"]
    g = jnp.max(h.reshape(B, N, FEAT), axis=1)                # (B, 1024)
    a = jnp.dot(g.astype(jnp.bfloat16), f["w4"], preferred_element_type=jnp.float32)
    a = jnp.maximum(a * f["s4"] + f["t4"], 0.0)
    a = jnp.dot(a.astype(jnp.bfloat16), f["w5"], preferred_element_type=jnp.float32)
    a = jnp.maximum(a * f["s5"] + f["t5"], 0.0)
    a = jnp.dot(a.astype(jnp.bfloat16), f["w6"], preferred_element_type=jnp.float32) + f["b6"]
    return a[:, :9].reshape(-1, 3, 3)


if __name__ == "__main__":
    key = jax.random.PRNGKey(0)
    kx, kp = jax.random.split(key)

    B, C, N = 2, 3, 256                      # (batch, channel, num_points), NCW like PyTorch
    x = jax.random.normal(kx, (B, C, N), jnp.float32)

    params = make_params(C, kp)
    folded = fold_params(params)

    # tn=64 forces several N tiles per batch block so the running max-pool
    # accumulator path is exercised even at this small demo size.
    out = stn3d_forward(x, folded, tb=2, tn=64)
    out = jax.block_until_ready(out)

    ref = stn3d_ref(x, folded)
    assert out.shape == (B, 3, 3)
    assert jnp.allclose(out, ref, rtol=2e-3, atol=2e-3), "mismatch vs JAX reference"

    print("KERNEL_OK")
</pallas_src>

<mosaic_0001>
module attributes {stable_mosaic.version = 11 : i64} {
  func.func @stn3d_kernel(%arg0: i32, %arg1: i32, %arg2: memref<2x64x3xf32, #tpu.memory_space<vmem>>, %arg3: memref<3x64xf32, #tpu.memory_space<vmem>>, %arg4: memref<1x64xf32, #tpu.memory_space<vmem>>, %arg5: memref<1x64xf32, #tpu.memory_space<vmem>>, %arg6: memref<64x128xbf16, #tpu.memory_space<vmem>>, %arg7: memref<1x128xf32, #tpu.memory_space<vmem>>, %arg8: memref<1x128xf32, #tpu.memory_space<vmem>>, %arg9: memref<128x1024xbf16, #tpu.memory_space<vmem>>, %arg10: memref<1x1024xf32, #tpu.memory_space<vmem>>, %arg11: memref<1x1024xf32, #tpu.memory_space<vmem>>, %arg12: memref<1024x512xbf16, #tpu.memory_space<vmem>>, %arg13: memref<1x512xf32, #tpu.memory_space<vmem>>, %arg14: memref<1x512xf32, #tpu.memory_space<vmem>>, %arg15: memref<512x256xbf16, #tpu.memory_space<vmem>>, %arg16: memref<1x256xf32, #tpu.memory_space<vmem>>, %arg17: memref<1x256xf32, #tpu.memory_space<vmem>>, %arg18: memref<256x128xbf16, #tpu.memory_space<vmem>>, %arg19: memref<1x128xf32, #tpu.memory_space<vmem>>, %arg20: memref<2x128xf32, #tpu.memory_space<vmem>>, %arg21: memref<2x1024xf32, #tpu.memory_space<vmem>>) attributes {dimension_semantics = [#tpu.dimension_semantics<parallel>, #tpu.dimension_semantics<arbitrary>], iteration_bounds = array<i64: 1, 4>, scalar_prefetch = 0 : i64, scratch_operands = 1 : i64, tpu.core_type = #tpu.core_type<tc>, window_params = [{transform_indices = @transform_0, window_bounds = array<i64: 2, 64, 3>}, {pipeline_mode = #tpu.pipeline_mode<synchronous>, transform_indices = @transform_1, window_bounds = array<i64: 3, 64>}, {pipeline_mode = #tpu.pipeline_mode<synchronous>, transform_indices = @transform_2, window_bounds = array<i64: 1, 64>}, {pipeline_mode = #tpu.pipeline_mode<synchronous>, transform_indices = @transform_3, window_bounds = array<i64: 1, 64>}, {pipeline_mode = #tpu.pipeline_mode<synchronous>, transform_indices = @transform_4, window_bounds = array<i64: 64, 128>}, {pipeline_mode = #tpu.pipeline_mode<synchronous>, transform_indices = @transform_5, window_bounds = array<i64: 1, 128>}, {pipeline_mode = #tpu.pipeline_mode<synchronous>, transform_indices = @transform_6, window_bounds = array<i64: 1, 128>}, {pipeline_mode = #tpu.pipeline_mode<synchronous>, transform_indices = @transform_7, window_bounds = array<i64: 128, 1024>}, {pipeline_mode = #tpu.pipeline_mode<synchronous>, transform_indices = @transform_8, window_bounds = array<i64: 1, 1024>}, {pipeline_mode = #tpu.pipeline_mode<synchronous>, transform_indices = @transform_9, window_bounds = array<i64: 1, 1024>}, {pipeline_mode = #tpu.pipeline_mode<synchronous>, transform_indices = @transform_10, window_bounds = array<i64: 1024, 512>}, {pipeline_mode = #tpu.pipeline_mode<synchronous>, transform_indices = @transform_11, window_bounds = array<i64: 1, 512>}, {pipeline_mode = #tpu.pipeline_mode<synchronous>, transform_indices = @transform_12, window_bounds = array<i64: 1, 512>}, {pipeline_mode = #tpu.pipeline_mode<synchronous>, transform_indices = @transform_13, window_bounds = array<i64: 512, 256>}, {pipeline_mode = #tpu.pipeline_mode<synchronous>, transform_indices = @transform_14, window_bounds = array<i64: 1, 256>}, {pipeline_mode = #tpu.pipeline_mode<synchronous>, transform_indices = @transform_15, window_bounds = array<i64: 1, 256>}, {pipeline_mode = #tpu.pipeline_mode<synchronous>, transform_indices = @transform_16, window_bounds = array<i64: 256, 128>}, {pipeline_mode = #tpu.pipeline_mode<synchronous>, transform_indices = @transform_17, window_bounds = array<i64: 1, 128>}, {transform_indices = @transform_18, window_bounds = array<i64: 2, 128>}]} {
    %c0 = arith.constant 0 : index
    %c0_0 = arith.constant 0 : index
    %c0_1 = arith.constant 0 : index
    %0 = vector.load %arg2[%c0, %c0_0, %c0_1] : memref<2x64x3xf32, #tpu.memory_space<vmem>>, vector<2x64x3xf32>
    %1 = vector.shape_cast %0 : vector<2x64x3xf32> to vector<128x3xf32>
    %2 = vector.extract_strided_slice %1 {offsets = [0, 0], sizes = [128, 1], strides = [1, 1]} : vector<128x3xf32> to vector<128x1xf32>
    %c0_2 = arith.constant 0 : index
    %c0_3 = arith.constant 0 : index
    %3 = vector.load %arg3[%c0_2, %c0_3] : memref<3x64xf32, #tpu.memory_space<vmem>>, vector<1x64xf32>
    %4 = vector.broadcast %2 : vector<128x1xf32> to vector<128x64xf32>
    %5 = vector.broadcast %3 : vector<1x64xf32> to vector<128x64xf32>
    %6 = arith.mulf %4, %5 : vector<128x64xf32>
    %7 = vector.extract_strided_slice %1 {offsets = [0, 1], sizes = [128, 1], strides = [1, 1]} : vector<128x3xf32> to vector<128x1xf32>
    %c1 = arith.constant 1 : index
    %c0_4 = arith.constant 0 : index
    %8 = vector.load %arg3[%c1, %c0_4] : memref<3x64xf32, #tpu.memory_space<vmem>>, vector<1x64xf32>
    %9 = vector.broadcast %7 : vector<128x1xf32> to vector<128x64xf32>
    %10 = vector.broadcast %8 : vector<1x64xf32> to vector<128x64xf32>
    %11 = arith.mulf %9, %10 : vector<128x64xf32>
    %12 = arith.addf %6, %11 : vector<128x64xf32>
    %13 = vector.extract_strided_slice %1 {offsets = [0, 2], sizes = [128, 1], strides = [1, 1]} : vector<128x3xf32> to vector<128x1xf32>
    %c2 = arith.constant 2 : index
    %c0_5 = arith.constant 0 : index
    %14 = vector.load %arg3[%c2, %c0_5] : memref<3x64xf32, #tpu.memory_space<vmem>>, vector<1x64xf32>
    %15 = vector.broadcast %13 : vector<128x1xf32> to vector<128x64xf32>
    %16 = vector.broadcast %14 : vector<1x64xf32> to vector<128x64xf32>
    %17 = arith.mulf %15, %16 : vector<128x64xf32>
    %18 = arith.addf %12, %17 : vector<128x64xf32>
    %c0_6 = arith.constant 0 : index
    %c0_7 = arith.constant 0 : index
    %19 = vector.load %arg4[%c0_6, %c0_7] : memref<1x64xf32, #tpu.memory_space<vmem>>, vector<1x64xf32>
    %20 = vector.broadcast %19 : vector<1x64xf32> to vector<128x64xf32>
    %21 = arith.mulf %18, %20 : vector<128x64xf32>
    %c0_8 = arith.constant 0 : index
    %c0_9 = arith.constant 0 : index
    %22 = vector.load %arg5[%c0_8, %c0_9] : memref<1x64xf32, #tpu.memory_space<vmem>>, vector<1x64xf32>
    %23 = vector.broadcast %22 : vector<1x64xf32> to vector<128x64xf32>
    %24 = arith.addf %21, %23 : vector<128x64xf32>
    %cst = arith.constant 0.000000e+00 : f32
    %25 = vector.broadcast %cst : f32 to vector<128x64xf32>
    %26 = arith.maximumf %24, %25 : vector<128x64xf32>
    %27 = arith.truncf %26 : vector<128x64xf32> to vector<128x64xbf16>
    %c0_10 = arith.constant 0 : index
    %c0_11 = arith.constant 0 : index
    %28 = vector.load %arg6[%c0_10, %c0_11] : memref<64x128xbf16, #tpu.memory_space<vmem>>, vector<64x128xbf16>
    %cst_12 = arith.constant dense<0.000000e+00> : vector<128x128xf32>
    %29 = tpu.matmul %27, %28, %cst_12 {dimension_numbers = #tpu.dot_dimension_numbers<[1], [0], [0], [1], [0, 0, 1, 1], [], []>} : vector<128x64xbf16>, vector<64x128xbf16>, vector<128x128xf32> -> vector<128x128xf32>
    %c0_13 = arith.constant 0 : index
    %c0_14 = arith.constant 0 : index
    %30 = vector.load %arg7[%c0_13, %c0_14] : memref<1x128xf32, #tpu.memory_space<vmem>>, vector<1x128xf32>
    %31 = vector.broadcast %30 : vector<1x128xf32> to vector<128x128xf32>
    %32 = arith.mulf %29, %31 : vector<128x128xf32>
    %c0_15 = arith.constant 0 : index
    %c0_16 = arith.constant 0 : index
    %33 = vector.load %arg8[%c0_15, %c0_16] : memref<1x128xf32, #tpu.memory_space<vmem>>, vector<1x128xf32>
    %34 = vector.broadcast %33 : vector<1x128xf32> to vector<128x128xf32>
    %35 = arith.addf %32, %34 : vector<128x128xf32>
    %cst_17 = arith.constant 0.000000e+00 : f32
    %36 = vector.broadcast %cst_17 : f32 to vector<128x128xf32>
    %37 = arith.maximumf %35, %36 : vector<128x128xf32>
    %38 = arith.truncf %37 : vector<128x128xf32> to vector<128x128xbf16>
    %c0_18 = arith.constant 0 : index
    %c0_19 = arith.constant 0 : index
    %39 = vector.load %arg9[%c0_18, %c0_19] : memref<128x1024xbf16, #tpu.memory_space<vmem>>, vector<128x1024xbf16>
    %cst_20 = arith.constant dense<0.000000e+00> : vector<128x1024xf32>
    %40 = tpu.matmul %38, %39, %cst_20 {dimension_numbers = #tpu.dot_dimension_numbers<[1], [0], [0], [1], [0, 0, 1, 1], [], []>} : vector<128x128xbf16>, vector<128x1024xbf16>, vector<128x1024xf32> -> vector<128x1024xf32>
    %c0_21 = arith.constant 0 : index
    %c0_22 = arith.constant 0 : index
    %41 = vector.load %arg10[%c0_21, %c0_22] : memref<1x1024xf32, #tpu.memory_space<vmem>>, vector<1x1024xf32>
    %42 = vector.broadcast %41 : vector<1x1024xf32> to vector<128x1024xf32>
    %43 = arith.mulf %40, %42 : vector<128x1024xf32>
    %c0_23 = arith.constant 0 : index
    %c0_24 = arith.constant 0 : index
    %44 = vector.load %arg11[%c0_23, %c0_24] : memref<1x1024xf32, #tpu.memory_space<vmem>>, vector<1x1024xf32>
    %45 = vector.broadcast %44 : vector<1x1024xf32> to vector<128x1024xf32>
    %46 = arith.addf %43, %45 : vector<128x1024xf32>
    %47 = vector.shape_cast %46 : vector<128x1024xf32> to vector<2x64x1024xf32>
    %cst_25 = arith.constant dense<0xFF800000> : vector<2x1024xf32>
    %48 = vector.multi_reduction <maximumf>, %47, %cst_25 [1] : vector<2x64x1024xf32> to vector<2x1024xf32>
    %c0_i32 = arith.constant 0 : i32
    %49 = arith.cmpi eq, %arg1, %c0_i32 : i32
    %50 = arith.extui %49 : i1 to i32
    %c0_i32_26 = arith.constant 0 : i32
    %51 = arith.cmpi ne, %50, %c0_i32_26 : i32
    scf.if %51 {
      %c0_30 = arith.constant 0 : index
      %c0_31 = arith.constant 0 : index
      %58 = vector.load %arg21[%c0_30, %c0_31] : memref<2x1024xf32, #tpu.memory_space<vmem>>, vector<2x1024xf32>
      tpu.vector_store %arg21[%c0_30, %c0_31], %48 {strides = array<i32>} : memref<2x1024xf32, #tpu.memory_space<vmem>>, vector<2x1024xf32>,
    } else {
    }
    %c0_i32_27 = arith.constant 0 : i32
    %52 = arith.cmpi sgt, %arg1, %c0_i32_27 : i32
    %53 = arith.extui %52 : i1 to i32
    %c0_i32_28 = arith.constant 0 : i32
    %54 = arith.cmpi ne, %53, %c0_i32_28 : i32
    scf.if %54 {
      %c0_30 = arith.constant 0 : index
      %c0_31 = arith.constant 0 : index
      %58 = vector.load %arg21[%c0_30, %c0_31] : memref<2x1024xf32, #tpu.memory_space<vmem>>, vector<2x1024xf32>
      %59 = arith.maximumf %58, %48 : vector<2x1024xf32>
      %c0_32 = arith.constant 0 : index
      %c0_33 = arith.constant 0 : index
      %60 = vector.load %arg21[%c0_32, %c0_33] : memref<2x1024xf32, #tpu.memory_space<vmem>>, vector<2x1024xf32>
      tpu.vector_store %arg21[%c0_32, %c0_33], %59 {strides = array<i32>} : memref<2x1024xf32, #tpu.memory_space<vmem>>, vector<2x1024xf32>,
    } else {
    }
    %c3_i32 = arith.constant 3 : i32
    %55 = arith.cmpi eq, %arg1, %c3_i32 : i32
    %56 = arith.extui %55 : i1 to i32
    %c0_i32_29 = arith.constant 0 : i32
    %57 = arith.cmpi ne, %56, %c0_i32_29 : i32
    scf.if %57 {
      %c0_30 = arith.constant 0 : index
      %c0_31 = arith.constant 0 : index
      %58 = vector.load %arg21[%c0_30, %c0_31] : memref<2x1024xf32, #tpu.memory_space<vmem>>, vector<2x1024xf32>
      %59 = arith.truncf %58 : vector<2x1024xf32> to vector<2x1024xbf16>
      %c0_32 = arith.constant 0 : index
      %c0_33 = arith.constant 0 : index
      %60 = vector.load %arg12[%c0_32, %c0_33] : memref<1024x512xbf16, #tpu.memory_space<vmem>>, vector<1024x512xbf16>
      %cst_34 = arith.constant dense<0.000000e+00> : vector<2x512xf32>
      %61 = tpu.matmul %59, %60, %cst_34 {dimension_numbers = #tpu.dot_dimension_numbers<[1], [0], [0], [1], [0, 0, 1, 1], [], []>} : vector<2x1024xbf16>, vector<1024x512xbf16>, vector<2x512xf32> -> vector<2x512xf32>
      %c0_35 = arith.constant 0 : index
      %c0_36 = arith.constant 0 : index
      %62 = vector.load %arg13[%c0_35, %c0_36] : memref<1x512xf32, #tpu.memory_space<vmem>>, vector<1x512xf32>
      %63 = vector.broadcast %62 : vector<1x512xf32> to vector<2x512xf32>
      %64 = arith.mulf %61, %63 : vector<2x512xf32>
      %c0_37 = arith.constant 0 : index
      %c0_38 = arith.constant 0 : index
      %65 = vector.load %arg14[%c0_37, %c0_38] : memref<1x512xf32, #tpu.memory_space<vmem>>, vector<1x512xf32>
      %66 = vector.broadcast %65 : vector<1x512xf32> to vector<2x512xf32>
      %67 = arith.addf %64, %66 : vector<2x512xf32>
      %cst_39 = arith.constant 0.000000e+00 : f32
      %68 = vector.broadcast %cst_39 : f32 to vector<2x512xf32>
      %69 = arith.maximumf %67, %68 : vector<2x512xf32>
      %70 = arith.truncf %69 : vector<2x512xf32> to vector<2x512xbf16>
      %c0_40 = arith.constant 0 : index
      %c0_41 = arith.constant 0 : index
      %71 = vector.load %arg15[%c0_40, %c0_41] : memref<512x256xbf16, #tpu.memory_space<vmem>>, vector<512x256xbf16>
      %cst_42 = arith.constant dense<0.000000e+00> : vector<2x256xf32>
      %72 = tpu.matmul %70, %71, %cst_42 {dimension_numbers = #tpu.dot_dimension_numbers<[1], [0], [0], [1], [0, 0, 1, 1], [], []>} : vector<2x512xbf16>, vector<512x256xbf16>, vector<2x256xf32> -> vector<2x256xf32>
      %c0_43 = arith.constant 0 : index
      %c0_44 = arith.constant 0 : index
      %73 = vector.load %arg16[%c0_43, %c0_44] : memref<1x256xf32, #tpu.memory_space<vmem>>, vector<1x256xf32>
      %74 = vector.broadcast %73 : vector<1x256xf32> to vector<2x256xf32>
      %75 = arith.mulf %72, %74 : vector<2x256xf32>
      %c0_45 = arith.constant 0 : index
      %c0_46 = arith.constant 0 : index
      %76 = vector.load %arg17[%c0_45, %c0_46] : memref<1x256xf32, #tpu.memory_space<vmem>>, vector<1x256xf32>
      %77 = vector.broadcast %76 : vector<1x256xf32> to vector<2x256xf32>
      %78 = arith.addf %75, %77 : vector<2x256xf32>
      %cst_47 = arith.constant 0.000000e+00 : f32
      %79 = vector.broadcast %cst_47 : f32 to vector<2x256xf32>
      %80 = arith.maximumf %78, %79 : vector<2x256xf32>
      %81 = arith.truncf %80 : vector<2x256xf32> to vector<2x256xbf16>
      %c0_48 = arith.constant 0 : index
      %c0_49 = arith.constant 0 : index
      %82 = vector.load %arg18[%c0_48, %c0_49] : memref<256x128xbf16, #tpu.memory_space<vmem>>, vector<256x128xbf16>
      %cst_50 = arith.constant dense<0.000000e+00> : vector<2x128xf32>
      %83 = tpu.matmul %81, %82, %cst_50 {dimension_numbers = #tpu.dot_dimension_numbers<[1], [0], [0], [1], [0, 0, 1, 1], [], []>} : vector<2x256xbf16>, vector<256x128xbf16>, vector<2x128xf32> -> vector<2x128xf32>
      %c0_51 = arith.constant 0 : index
      %c0_52 = arith.constant 0 : index
      %84 = vector.load %arg19[%c0_51, %c0_52] : memref<1x128xf32, #tpu.memory_space<vmem>>, vector<1x128xf32>
      %85 = vector.broadcast %84 : vector<1x128xf32> to vector<2x128xf32>
      %86 = arith.addf %83, %85 : vector<2x128xf32>
      %c0_53 = arith.constant 0 : index
      %c0_54 = arith.constant 0 : index
      %87 = vector.load %arg20[%c0_53, %c0_54] : memref<2x128xf32, #tpu.memory_space<vmem>>, vector<2x128xf32>
      tpu.vector_store %arg20[%c0_53, %c0_54], %86 {strides = array<i32>} : memref<2x128xf32, #tpu.memory_space<vmem>>, vector<2x128xf32>,
    } else {
    }
    return
  }
  func.func @transform_0(%arg0: i32, %arg1: i32) -> (i32, i32, i32) {
    %c0_i32 = arith.constant 0 : i32
    %c0_i32_0 = arith.constant 0 : i32
    return %arg0, %arg1, %c0_i32 : i32, i32, i32
  }
  func.func @transform_1(%arg0: i32, %arg1: i32) -> (i32, i32) {
    %c0_i32 = arith.constant 0 : i32
    %c0_i32_0 = arith.constant 0 : i32
    %c0_i32_1 = arith.constant 0 : i32
    return %c0_i32, %c0_i32_0 : i32, i32
  }
  func.func @transform_2(%arg0: i32, %arg1: i32) -> (i32, i32) {
    %c0_i32 = arith.constant 0 : i32
    %c0_i32_0 = arith.constant 0 : i32
    %c0_i32_1 = arith.constant 0 : i32
    return %c0_i32, %c0_i32_0 : i32, i32
  }
  func.func @transform_3(%arg0: i32, %arg1: i32) -> (i32, i32) {
    %c0_i32 = arith.constant 0 : i32
    %c0_i32_0 = arith.constant 0 : i32
    %c0_i32_1 = arith.constant 0 : i32
    return %c0_i32, %c0_i32_0 : i32, i32
  }
  func.func @transform_4(%arg0: i32, %arg1: i32) -> (i32, i32) {
    %c0_i32 = arith.constant 0 : i32
    %c0_i32_0 = arith.constant 0 : i32
    %c0_i32_1 = arith.constant 0 : i32
    return %c0_i32, %c0_i32_0 : i32, i32
  }
  func.func @transform_5(%arg0: i32, %arg1: i32) -> (i32, i32) {
    %c0_i32 = arith.constant 0 : i32
    %c0_i32_0 = arith.constant 0 : i32
    %c0_i32_1 = arith.constant 0 : i32
    return %c0_i32, %c0_i32_0 : i32, i32
  }
  func.func @transform_6(%arg0: i32, %arg1: i32) -> (i32, i32) {
    %c0_i32 = arith.constant 0 : i32
    %c0_i32_0 = arith.constant 0 : i32
    %c0_i32_1 = arith.constant 0 : i32
    return %c0_i32, %c0_i32_0 : i32, i32
  }
  func.func @transform_7(%arg0: i32, %arg1: i32) -> (i32, i32) {
    %c0_i32 = arith.constant 0 : i32
    %c0_i32_0 = arith.constant 0 : i32
    %c0_i32_1 = arith.constant 0 : i32
    return %c0_i32, %c0_i32_0 : i32, i32
  }
  func.func @transform_8(%arg0: i32, %arg1: i32) -> (i32, i32) {
    %c0_i32 = arith.constant 0 : i32
    %c0_i32_0 = arith.constant 0 : i32
    %c0_i32_1 = arith.constant 0 : i32
    return %c0_i32, %c0_i32_0 : i32, i32
  }
  func.func @transform_9(%arg0: i32, %arg1: i32) -> (i32, i32) {
    %c0_i32 = arith.constant 0 : i32
    %c0_i32_0 = arith.constant 0 : i32
    %c0_i32_1 = arith.constant 0 : i32
    return %c0_i32, %c0_i32_0 : i32, i32
  }
  func.func @transform_10(%arg0: i32, %arg1: i32) -> (i32, i32) {
    %c0_i32 = arith.constant 0 : i32
    %c0_i32_0 = arith.constant 0 : i32
    %c0_i32_1 = arith.constant 0 : i32
    return %c0_i32, %c0_i32_0 : i32, i32
  }
  func.func @transform_11(%arg0: i32, %arg1: i32) -> (i32, i32) {
    %c0_i32 = arith.constant 0 : i32
    %c0_i32_0 = arith.constant 0 : i32
    %c0_i32_1 = arith.constant 0 : i32
    return %c0_i32, %c0_i32_0 : i32, i32
  }
  func.func @transform_12(%arg0: i32, %arg1: i32) -> (i32, i32) {
    %c0_i32 = arith.constant 0 : i32
    %c0_i32_0 = arith.constant 0 : i32
    %c0_i32_1 = arith.constant 0 : i32
    return %c0_i32, %c0_i32_0 : i32, i32
  }
  func.func @transform_13(%arg0: i32, %arg1: i32) -> (i32, i32) {
    %c0_i32 = arith.constant 0 : i32
    %c0_i32_0 = arith.constant 0 : i32
    %c0_i32_1 = arith.constant 0 : i32
    return %c0_i32, %c0_i32_0 : i32, i32
  }
  func.func @transform_14(%arg0: i32, %arg1: i32) -> (i32, i32) {
    %c0_i32 = arith.constant 0 : i32
    %c0_i32_0 = arith.constant 0 : i32
    %c0_i32_1 = arith.constant 0 : i32
    return %c0_i32, %c0_i32_0 : i32, i32
  }
  func.func @transform_15(%arg0: i32, %arg1: i32) -> (i32, i32) {
    %c0_i32 = arith.constant 0 : i32
    %c0_i32_0 = arith.constant 0 : i32
    %c0_i32_1 = arith.constant 0 : i32
    return %c0_i32, %c0_i32_0 : i32, i32
  }
  func.func @transform_16(%arg0: i32, %arg1: i32) -> (i32, i32) {
    %c0_i32 = arith.constant 0 : i32
    %c0_i32_0 = arith.constant 0 : i32
    %c0_i32_1 = arith.constant 0 : i32
    return %c0_i32, %c0_i32_0 : i32, i32
  }
  func.func @transform_17(%arg0: i32, %arg1: i32) -> (i32, i32) {
    %c0_i32 = arith.constant 0 : i32
    %c0_i32_0 = arith.constant 0 : i32
    %c0_i32_1 = arith.constant 0 : i32
    return %c0_i32, %c0_i32_0 : i32, i32
  }
  func.func @transform_18(%arg0: i32, %arg1: i32) -> (i32, i32) {
    %c0_i32 = arith.constant 0 : i32
    %c0_i32_0 = arith.constant 0 : i32
    return %arg0, %c0_i32 : i32, i32
  }
}

</mosaic_0001>

<llo_original>
// kernel: tpu_custom_call.1
$region0: #{tpu_custom_call.1}
  #allocation0 [shape = 'u32[]', space=smem, size = 0x4, offset = 0x4, fixed_abs, tag = 'smem constant byte address 0x4 - core index']
  #allocation1 [shape = 'u32[144,128]{1,0:T(1,128)}', space=vmem, size = 0x12000, scoped, tag = 'internal scratch']
  #allocation2 [shape = 'f32[2,1024]{1,0:T(2,128)}', space=vmem, size = 0x2000, scoped, tag = 'scratch operand']
  %s0 = inlined_call_operand.vmem [shape: f32[2,256,3], index: 0, kind: input, shape index: {}]
  %s1 = inlined_call_operand.vmem [shape: f32[3,64], index: 1, kind: input, shape index: {}]
  %s2 = inlined_call_operand.hbm [shape: f32[1,64], index: 2, kind: input, shape index: {}]
  %s3 = inlined_call_operand.hbm [shape: f32[1,64], index: 3, kind: input, shape index: {}]
  %s4 = inlined_call_operand.hbm [shape: bf16[64,128], index: 4, kind: input, shape index: {}]
  %s5 = inlined_call_operand.hbm [shape: f32[1,128], index: 5, kind: input, shape index: {}]
  %s6 = inlined_call_operand.hbm [shape: f32[1,128], index: 6, kind: input, shape index: {}]
  %s7 = inlined_call_operand.vmem [shape: bf16[128,1024], index: 7, kind: input, shape index: {}]
  %s8 = inlined_call_operand.vmem [shape: f32[1,1024], index: 8, kind: input, shape index: {}]
  %s9 = inlined_call_operand.vmem [shape: f32[1,1024], index: 9, kind: input, shape index: {}]
  %s10 = inlined_call_operand.hbm [shape: bf16[1024,512], index: 10, kind: input, shape index: {}]
  %s11 = inlined_call_operand.vmem [shape: f32[1,512], index: 11, kind: input, shape index: {}]
  %s12 = inlined_call_operand.vmem [shape: f32[1,512], index: 12, kind: input, shape index: {}]
  %s13 = inlined_call_operand.hbm [shape: bf16[512,256], index: 13, kind: input, shape index: {}]
  %s14 = inlined_call_operand.vmem [shape: f32[1,256], index: 14, kind: input, shape index: {}]
  %s15 = inlined_call_operand.vmem [shape: f32[1,256], index: 15, kind: input, shape index: {}]
  %s16 = inlined_call_operand.hbm [shape: bf16[256,128], index: 16, kind: input, shape index: {}]
  %s17 = inlined_call_operand.vmem [shape: f32[1,128], index: 17, kind: input, shape index: {}]
  %s18 = inlined_call_operand.hbm [shape: f32[2,128], index: 18, kind: output, shape index: {}]
  %s19 = sld [smem:[#allocation0]]
  $region187: #{tpu_custom_call.1} parent=0
    _
  %s21 = ssub.s32 1, %s19
  %s22 = scalar_select 0, %s21, %s19
  $region1: #{tpu_custom_call.1} parent=0
    #allocation3 [shape = 'u8[131072]{0}', space=vmem, size = 0x20000, scoped, tag = 'input window, operand 0']
    #allocation4 [shape = 'u8[512]{0}', space=vmem, size = 0x400, scoped, tag = 'input window, operand 2, single buffered']
    #allocation5 [shape = 's32[2]{0}', space=sflag, size = 0x8, scoped, tag = 'scoped memory for tpu_custom_call.1']
    #allocation6 [shape = 's32[2]{0}', space=sflag, size = 0x8, scoped, tag = 'scoped memory for tpu_custom_call.1']
    #allocation7 [shape = 'u8[512]{0}', space=vmem, size = 0x400, scoped, tag = 'input window, operand 3, single buffered']
    #allocation8 [shape = 's32[1]{0}', space=sflag, size = 0x4, scoped, tag = 'scoped memory for tpu_custom_call.1']
    #allocation9 [shape = 'u8[16384]{0}', space=vmem, size = 0x4000, scoped, tag = 'input window, operand 4, single buffered']
    #allocation10 [shape = 'u8[512]{0}', space=vmem, size = 0x400, scoped, tag = 'input window, operand 5, single buffered']
    #allocation11 [shape = 's32[1]{0}', space=sflag, size = 0x4, scoped, tag = 'scoped memory for tpu_custom_call.1']
    #allocation12 [shape = 'u8[512]{0}', space=vmem, size = 0x400, scoped, tag = 'input window, operand 6, single buffered']
    #allocation13 [shape = 'u8[1048576]{0}', space=vmem, size = 0x100000, scoped, tag = 'input window, operand 10, single buffered']
    #allocation14 [shape = 's32[1]{0}', space=sflag, size = 0x4, scoped, tag = 'scoped memory for tpu_custom_call.1']
    #allocation15 [shape = 'u8[262144]{0}', space=vmem, size = 0x40000, scoped, tag = 'input window, operand 13, single buffered']
    #allocation16 [shape = 'u8[65536]{0}', space=vmem, size = 0x10000, scoped, tag = 'input window, operand 16, single buffered']
    #allocation17 [shape = 's32[1]{0}', space=sflag, size = 0x4, scoped, tag = 'scoped memory for tpu_custom_call.1']
    #allocation18 [shape = 'u8[1024]{0}', space=vmem, size = 0x400, scoped, tag = 'output window, operand 0, single buffered']
    %23 = vsyncpa [#allocation5], 0
    %24 = vsyncpa [#allocation8], 0
    %25 = vsyncpa [#allocation11], 0
    %26 = vsyncpa [#allocation14], 0
    %27 = vsyncpa [#allocation17], 0
    %28 = vsyncpa [#allocation6], 0
    loop: start=0, step=1, limit=6
    $region2: #{tpu_custom_call.1} parent=1 // loop_pre_header
      _
    $region3: #{tpu_custom_call.1} parent=1 // loop_header
      %s30 = sphi 0, %s34
      %p31 = scmp.ge.s32.totalorder %s30, 6
      %s37 = sphi 0, %s49
      %s38 = sphi 0, %s45
      %s39 = sphi 0, %s37
      %s40 = sphi 0, %s38
      %s41 = sphi 0, %s39
      %s42 = sphi 0, %s40
      %s54 = sphi 0, %s56
      %s57 = sphi 0, %s54
      %s58 = sphi 0, %s57
      %s74 = sphi 0, %s58
      %s78 = sphi 0, %s78
      %s80 = sphi 0, %s78
      %s81 = sphi 0, %s80
      %s95 = sphi 0, %s81
      %s99 = sphi 0, %s99
      %s101 = sphi 0, %s99
      %s102 = sphi 0, %s101
      %s116 = sphi 0, %s102
      %s120 = sphi 0, %s120
      %s122 = sphi 0, %s120
      %s123 = sphi 0, %s122
      %s137 = sphi 0, %s123
      %s141 = sphi 0, %s141
      %s143 = sphi 0, %s141
      %s144 = sphi 0, %s143
      %s158 = sphi 0, %s144
      %s162 = sphi 0, %s162
      %s164 = sphi 0, %s162
      %s165 = sphi 0, %s164
      %s179 = sphi 0, %s165
      %s183 = sphi 0, %s183
      %s185 = sphi 0, %s183
      %s186 = sphi 0, %s185
      %s200 = sphi 0, %s186
      %s204 = sphi 0, %s204
      %s206 = sphi 0, %s204
      %s207 = sphi 0, %s206
      %s221 = sphi 0, %s207
      %s225 = sphi 0, %s225
      %s227 = sphi 0, %s225
      %s228 = sphi 0, %s227
      %s242 = sphi 0, %s228
      %s246 = sphi 0, %s246
      %s248 = sphi 0, %s246
      %s249 = sphi 0, %s248
      %s263 = sphi 0, %s249
      %s267 = sphi 0, %s267
      %s269 = sphi 0, %s267
      %s270 = sphi 0, %s269
      %s284 = sphi 0, %s270
      %s288 = sphi 0, %s288
      %s290 = sphi 0, %s288
      %s291 = sphi 0, %s290
      %s305 = sphi 0, %s291
      %s309 = sphi 0, %s309
      %s311 = sphi 0, %s309
      %s312 = sphi 0, %s311
      %s326 = sphi 0, %s312
      %s330 = sphi 0, %s330
      %s332 = sphi 0, %s330
      %s333 = sphi 0, %s332
      %s347 = sphi 0, %s333
      %s351 = sphi 0, %s351
      %s353 = sphi 0, %s351
      %s354 = sphi 0, %s353
      %s368 = sphi 0, %s354
      %s372 = sphi 0, %s372
      %s374 = sphi 0, %s372
      %s375 = sphi 0, %s374
      %s389 = sphi 0, %s375
      %s393 = sphi 0, %s393
      %s395 = sphi 0, %s393
      %s396 = sphi 0, %s395
      %s410 = sphi 0, %s396
      %s414 = sphi 0, %s414
      %s416 = sphi 0, %s414
      %s417 = sphi 0, %s416
      %s431 = sphi 0, %s417
      %s437 = sphi 0, %s439
      %s440 = sphi 0, %s437
      %s441 = sphi 0, %s440
      %s457 = sphi 0, %s441
    $region4: #{tpu_custom_call.1} parent=1 // loop_header_branch
      %33 = sbr.rel (%p31) target = $region8
    $region5: #{tpu_custom_call.1} parent=1 // loop_body
      %s35 = ssub.s32 %s30, 1
      %s36 = ssub.s32 %s30, 2
      %s43 = sadd.s32 1, %s38
      %p44 = scmp.ge.s32.totalorder %s43, 4
      %s45 = scalar_select %p44, 0, %s43
      %s46 = sadd.s32 1, %s37
      %s47 = scalar_select %p44, %s46, %s37
      %p48 = scmp.ge.s32.totalorder %s47, 1
      %s49 = scalar_select %p48, 0, %s47
      %s50 = ssub.s32 %s37, %s49
      %s51 = ssub.s32 %s38, %s45
      %s52 = sor.u32 %s50, %s51
      %p53 = scmp.eq.s32.totalorder %s52, 0
      %s55 = sadd.s32 %s54, 1
      %s56 = scalar_select %p53, %s54, %s55
      %p59 = pneg %p53
      %p60 = scmp.eq.s32.totalorder %s30, 3
      %p61 = por %p59, %p60
      %p62 = scmp.ne.s32.totalorder %s54, %s57
      %p63 = scmp.eq.s32.totalorder %s30, 0
      %p64 = por %p62, %p63
      %p65 = scmp.ne.s32.totalorder %s54, %s57
      %p66 = scmp.eq.s32.totalorder %s35, 3
      %p67 = por %p65, %p66
      %p68 = scmp.ne.s32.totalorder %s57, %s58
      %p69 = scmp.eq.s32.totalorder %s35, 0
      %p70 = por %p68, %p69
      %p71 = scmp.ne.s32.totalorder %s57, %s58
      %p72 = scmp.eq.s32.totalorder %s36, 3
      %p73 = por %p71, %p72
      %p75 = scmp.ne.s32.totalorder %s58, %s74
      %p76 = scmp.eq.s32.totalorder %s36, 0
      %p77 = por %p75, %p76
      %s79 = sadd.s32 %s78, 1
      %p82 = scmp.eq.s32.totalorder %s30, 3
      %p83 = scmp.ne.s32.totalorder %s78, %s80
      %p84 = scmp.eq.s32.totalorder %s30, 0
      %p85 = por %p83, %p84
      %p86 = scmp.ne.s32.totalorder %s78, %s80
      %p87 = scmp.eq.s32.totalorder %s35, 3
      %p88 = por %p86, %p87
      %p89 = scmp.ne.s32.totalorder %s80, %s81
      %p90 = scmp.eq.s32.totalorder %s35, 0
      %p91 = por %p89, %p90
      %p92 = scmp.ne.s32.totalorder %s80, %s81
      %p93 = scmp.eq.s32.totalorder %s36, 3
      %p94 = por %p92, %p93
      %p96 = scmp.ne.s32.totalorder %s81, %s95
      %p97 = scmp.eq.s32.totalorder %s36, 0
      %p98 = por %p96, %p97
      %s100 = sadd.s32 %s99, 1
      %p103 = scmp.eq.s32.totalorder %s30, 3
      %p104 = scmp.ne.s32.totalorder %s99, %s101
      %p105 = scmp.eq.s32.totalorder %s30, 0
      %p106 = por %p104, %p105
      %p107 = scmp.ne.s32.totalorder %s99, %s101
      %p108 = scmp.eq.s32.totalorder %s35, 3
      %p109 = por %p107, %p108
      %p110 = scmp.ne.s32.totalorder %s101, %s102
      %p111 = scmp.eq.s32.totalorder %s35, 0
      %p112 = por %p110, %p111
      %p113 = scmp.ne.s32.totalorder %s101, %s102
      %p114 = scmp.eq.s32.totalorder %s36, 3
      %p115 = por %p113, %p114
      %p117 = scmp.ne.s32.totalorder %s102, %s116
      %p118 = scmp.eq.s32.totalorder %s36, 0
      %p119 = por %p117, %p118
      %s121 = sadd.s32 %s120, 1
      %p124 = scmp.eq.s32.totalorder %s30, 3
      %p125 = scmp.ne.s32.totalorder %s120, %s122
      %p126 = scmp.eq.s32.totalorder %s30, 0
      %p127 = por %p125, %p126
      %p128 = scmp.ne.s32.totalorder %s120, %s122
      %p129 = scmp.eq.s32.totalorder %s35, 3
      %p130 = por %p128, %p129
      %p131 = scmp.ne.s32.totalorder %s122, %s123
      %p132 = scmp.eq.s32.totalorder %s35, 0
      %p133 = por %p131, %p132
      %p134 = scmp.ne.s32.totalorder %s122, %s123
      %p135 = scmp.eq.s32.totalorder %s36, 3
      %p136 = por %p134, %p135
      %p138 = scmp.ne.s32.totalorder %s123, %s137
      %p139 = scmp.eq.s32.totalorder %s36, 0
      %p140 = por %p138, %p139
      %s142 = sadd.s32 %s141, 1
      %p145 = scmp.eq.s32.totalorder %s30, 3
      %p146 = scmp.ne.s32.totalorder %s141, %s143
      %p147 = scmp.eq.s32.totalorder %s30, 0
      %p148 = por %p146, %p147
      %p149 = scmp.ne.s32.totalorder %s141, %s143
      %p150 = scmp.eq.s32.totalorder %s35, 3
      %p151 = por %p149, %p150
      %p152 = scmp.ne.s32.totalorder %s143, %s144
      %p153 = scmp.eq.s32.totalorder %s35, 0
      %p154 = por %p152, %p153
      %p155 = scmp.ne.s32.totalorder %s143, %s144
      %p156 = scmp.eq.s32.totalorder %s36, 3
      %p157 = por %p155, %p156
      %p159 = scmp.ne.s32.totalorder %s144, %s158
      %p160 = scmp.eq.s32.totalorder %s36, 0
      %p161 = por %p159, %p160
      %s163 = sadd.s32 %s162, 1
      %p166 = scmp.eq.s32.totalorder %s30, 3
      %p167 = scmp.ne.s32.totalorder %s162, %s164
      %p168 = scmp.eq.s32.totalorder %s30, 0
      %p169 = por %p167, %p168
      %p170 = scmp.ne.s32.totalorder %s162, %s164
      %p171 = scmp.eq.s32.totalorder %s35, 3
      %p172 = por %p170, %p171
      %p173 = scmp.ne.s32.totalorder %s164, %s165
      %p174 = scmp.eq.s32.totalorder %s35, 0
      %p175 = por %p173, %p174
      %p176 = scmp.ne.s32.totalorder %s164, %s165
      %p177 = scmp.eq.s32.totalorder %s36, 3
      %p178 = por %p176, %p177
      %p180 = scmp.ne.s32.totalorder %s165, %s179
      %p181 = scmp.eq.s32.totalorder %s36, 0
      %p182 = por %p180, %p181
      %s184 = sadd.s32 %s183, 1
      %p187 = scmp.eq.s32.totalorder %s30, 3
      %p188 = scmp.ne.s32.totalorder %s183, %s185
      %p189 = scmp.eq.s32.totalorder %s30, 0
      %p190 = por %p188, %p189
      %p191 = scmp.ne.s32.totalorder %s183, %s185
      %p192 = scmp.eq.s32.totalorder %s35, 3
      %p193 = por %p191, %p192
      %p194 = scmp.ne.s32.totalorder %s185, %s186
      %p195 = scmp.eq.s32.totalorder %s35, 0
      %p196 = por %p194, %p195
      %p197 = scmp.ne.s32.totalorder %s185, %s186
      %p198 = scmp.eq.s32.totalorder %s36, 3
      %p199 = por %p197, %p198
      %p201 = scmp.ne.s32.totalorder %s186, %s200
      %p202 = scmp.eq.s32.totalorder %s36, 0
      %p203 = por %p201, %p202
      %s205 = sadd.s32 %s204, 1
      %p208 = scmp.eq.s32.totalorder %s30, 3
      %p209 = scmp.ne.s32.totalorder %s204, %s206
      %p210 = scmp.eq.s32.totalorder %s30, 0
      %p211 = por %p209, %p210
      %p212 = scmp.ne.s32.totalorder %s204, %s206
      %p213 = scmp.eq.s32.totalorder %s35, 3
      %p214 = por %p212, %p213
      %p215 = scmp.ne.s32.totalorder %s206, %s207
      %p216 = scmp.eq.s32.totalorder %s35, 0
      %p217 = por %p215, %p216
      %p218 = scmp.ne.s32.totalorder %s206, %s207
      %p219 = scmp.eq.s32.totalorder %s36, 3
      %p220 = por %p218, %p219
      %p222 = scmp.ne.s32.totalorder %s207, %s221
      %p223 = scmp.eq.s32.totalorder %s36, 0
      %p224 = por %p222, %p223
      %s226 = sadd.s32 %s225, 1
      %p229 = scmp.eq.s32.totalorder %s30, 3
      %p230 = scmp.ne.s32.totalorder %s225, %s227
      %p231 = scmp.eq.s32.totalorder %s30, 0
      %p232 = por %p230, %p231
      %p233 = scmp.ne.s32.totalorder %s225, %s227
      %p234 = scmp.eq.s32.totalorder %s35, 3
      %p235 = por %p233, %p234
      %p236 = scmp.ne.s32.totalorder %s227, %s228
      %p237 = scmp.eq.s32.totalorder %s35, 0
      %p238 = por %p236, %p237
      %p239 = scmp.ne.s32.totalorder %s227, %s228
      %p240 = scmp.eq.s32.totalorder %s36, 3
      %p241 = por %p239, %p240
      %p243 = scmp.ne.s32.totalorder %s228, %s242
      %p244 = scmp.eq.s32.totalorder %s36, 0
      %p245 = por %p243, %p244
      %s247 = sadd.s32 %s246, 1
      %p250 = scmp.eq.s32.totalorder %s30, 3
      %p251 = scmp.ne.s32.totalorder %s246, %s248
      %p252 = scmp.eq.s32.totalorder %s30, 0
      %p253 = por %p251, %p252
      %p254 = scmp.ne.s32.totalorder %s246, %s248
      %p255 = scmp.eq.s32.totalorder %s35, 3
      %p256 = por %p254, %p255
      %p257 = scmp.ne.s32.totalorder %s248, %s249
      %p258 = scmp.eq.s32.totalorder %s35, 0
      %p259 = por %p257, %p258
      %p260 = scmp.ne.s32.totalorder %s248, %s249
      %p261 = scmp.eq.s32.totalorder %s36, 3
      %p262 = por %p260, %p261
      %p264 = scmp.ne.s32.totalorder %s249, %s263
      %p265 = scmp.eq.s32.totalorder %s36, 0
      %p266 = por %p264, %p265
      %s268 = sadd.s32 %s267, 1
      %p271 = scmp.eq.s32.totalorder %s30, 3
      %p272 = scmp.ne.s32.totalorder %s267, %s269
      %p273 = scmp.eq.s32.totalorder %s30, 0
      %p274 = por %p272, %p273
      %p275 = scmp.ne.s32.totalorder %s267, %s269
      %p276 = scmp.eq.s32.totalorder %s35, 3
      %p277 = por %p275, %p276
      %p278 = scmp.ne.s32.totalorder %s269, %s270
      %p279 = scmp.eq.s32.totalorder %s35, 0
      %p280 = por %p278, %p279
      %p281 = scmp.ne.s32.totalorder %s269, %s270
      %p282 = scmp.eq.s32.totalorder %s36, 3
      %p283 = por %p281, %p282
      %p285 = scmp.ne.s32.totalorder %s270, %s284
      %p286 = scmp.eq.s32.totalorder %s36, 0
      %p287 = por %p285, %p286
      %s289 = sadd.s32 %s288, 1
      %p292 = scmp.eq.s32.totalorder %s30, 3
      %p293 = scmp.ne.s32.totalorder %s288, %s290
      %p294 = scmp.eq.s32.totalorder %s30, 0
      %p295 = por %p293, %p294
      %p296 = scmp.ne.s32.totalorder %s288, %s290
      %p297 = scmp.eq.s32.totalorder %s35, 3
      %p298 = por %p296, %p297
      %p299 = scmp.ne.s32.totalorder %s290, %s291
      %p300 = scmp.eq.s32.totalorder %s35, 0
      %p301 = por %p299, %p300
      %p302 = scmp.ne.s32.totalorder %s290, %s291
      %p303 = scmp.eq.s32.totalorder %s36, 3
      %p304 = por %p302, %p303
      %p306 = scmp.ne.s32.totalorder %s291, %s305
      %p307 = scmp.eq.s32.totalorder %s36, 0
      %p308 = por %p306, %p307
      %s310 = sadd.s32 %s309, 1
      %p313 = scmp.eq.s32.totalorder %s30, 3
      %p314 = scmp.ne.s32.totalorder %s309, %s311
      %p315 = scmp.eq.s32.totalorder %s30, 0
      %p316 = por %p314, %p315
      %p317 = scmp.ne.s32.totalorder %s309, %s311
      %p318 = scmp.eq.s32.totalorder %s35, 3
      %p319 = por %p317, %p318
      %p320 = scmp.ne.s32.totalorder %s311, %s312
      %p321 = scmp.eq.s32.totalorder %s35, 0
      %p322 = por %p320, %p321
      %p323 = scmp.ne.s32.totalorder %s311, %s312
      %p324 = scmp.eq.s32.totalorder %s36, 3
      %p325 = por %p323, %p324
      %p327 = scmp.ne.s32.totalorder %s312, %s326
      %p328 = scmp.eq.s32.totalorder %s36, 0
      %p329 = por %p327, %p328
      %s331 = sadd.s32 %s330, 1
      %p334 = scmp.eq.s32.totalorder %s30, 3
      %p335 = scmp.ne.s32.totalorder %s330, %s332
      %p336 = scmp.eq.s32.totalorder %s30, 0
      %p337 = por %p335, %p336
      %p338 = scmp.ne.s32.totalorder %s330, %s332
      %p339 = scmp.eq.s32.totalorder %s35, 3
      %p340 = por %p338, %p339
      %p341 = scmp.ne.s32.totalorder %s332, %s333
      %p342 = scmp.eq.s32.totalorder %s35, 0
      %p343 = por %p341, %p342
      %p344 = scmp.ne.s32.totalorder %s332, %s333
      %p345 = scmp.eq.s32.totalorder %s36, 3
      %p346 = por %p344, %p345
      %p348 = scmp.ne.s32.totalorder %s333, %s347
      %p349 = scmp.eq.s32.totalorder %s36, 0
      %p350 = por %p348, %p349
      %s352 = sadd.s32 %s351, 1
      %p355 = scmp.eq.s32.totalorder %s30, 3
      %p356 = scmp.ne.s32.totalorder %s351, %s353
      %p357 = scmp.eq.s32.totalorder %s30, 0
      %p358 = por %p356, %p357
      %p359 = scmp.ne.s32.totalorder %s351, %s353
      %p360 = scmp.eq.s32.totalorder %s35, 3
      %p361 = por %p359, %p360
      %p362 = scmp.ne.s32.totalorder %s353, %s354
      %p363 = scmp.eq.s32.totalorder %s35, 0
      %p364 = por %p362, %p363
      %p365 = scmp.ne.s32.totalorder %s353, %s354
      %p366 = scmp.eq.s32.totalorder %s36, 3
      %p367 = por %p365, %p366
      %p369 = scmp.ne.s32.totalorder %s354, %s368
      %p370 = scmp.eq.s32.totalorder %s36, 0
      %p371 = por %p369, %p370
      %s373 = sadd.s32 %s372, 1
      %p376 = scmp.eq.s32.totalorder %s30, 3
      %p377 = scmp.ne.s32.totalorder %s372, %s374
      %p378 = scmp.eq.s32.totalorder %s30, 0
      %p379 = por %p377, %p378
      %p380 = scmp.ne.s32.totalorder %s372, %s374
      %p381 = scmp.eq.s32.totalorder %s35, 3
      %p382 = por %p380, %p381
      %p383 = scmp.ne.s32.totalorder %s374, %s375
      %p384 = scmp.eq.s32.totalorder %s35, 0
      %p385 = por %p383, %p384
      %p386 = scmp.ne.s32.totalorder %s374, %s375
      %p387 = scmp.eq.s32.totalorder %s36, 3
      %p388 = por %p386, %p387
      %p390 = scmp.ne.s32.totalorder %s375, %s389
      %p391 = scmp.eq.s32.totalorder %s36, 0
      %p392 = por %p390, %p391
      %s394 = sadd.s32 %s393, 1
      %p397 = scmp.eq.s32.totalorder %s30, 3
      %p398 = scmp.ne.s32.totalorder %s393, %s395
      %p399 = scmp.eq.s32.totalorder %s30, 0
      %p400 = por %p398, %p399
      %p401 = scmp.ne.s32.totalorder %s393, %s395
      %p402 = scmp.eq.s32.totalorder %s35, 3
      %p403 = por %p401, %p402
      %p404 = scmp.ne.s32.totalorder %s395, %s396
      %p405 = scmp.eq.s32.totalorder %s35, 0
      %p406 = por %p404, %p405
      %p407 = scmp.ne.s32.totalorder %s395, %s396
      %p408 = scmp.eq.s32.totalorder %s36, 3
      %p409 = por %p407, %p408
      %p411 = scmp.ne.s32.totalorder %s396, %s410
      %p412 = scmp.eq.s32.totalorder %s36, 0
      %p413 = por %p411, %p412
      %s415 = sadd.s32 %s414, 1
      %p418 = scmp.eq.s32.totalorder %s30, 3
      %p419 = scmp.ne.s32.totalorder %s414, %s416
      %p420 = scmp.eq.s32.totalorder %s30, 0
      %p421 = por %p419, %p420
      %p422 = scmp.ne.s32.totalorder %s414, %s416
      %p423 = scmp.eq.s32.totalorder %s35, 3
      %p424 = por %p422, %p423
      %p425 = scmp.ne.s32.totalorder %s416, %s417
      %p426 = scmp.eq.s32.totalorder %s35, 0
      %p427 = por %p425, %p426
      %p428 = scmp.ne.s32.totalorder %s416, %s417
      %p429 = scmp.eq.s32.totalorder %s36, 3
      %p430 = por %p428, %p429
      %p432 = scmp.ne.s32.totalorder %s417, %s431
      %p433 = scmp.eq.s32.totalorder %s36, 0
      %p434 = por %p432, %p433
      %s435 = ssub.s32 %s37, %s49
      %p436 = scmp.eq.s32.totalorder %s435, 0
      %s438 = sadd.s32 %s437, 1
      %s439 = scalar_select %p436, %s437, %s438
      %p442 = pneg %p436
      %p443 = scmp.eq.s32.totalorder %s30, 3
      %p444 = por %p442, %p443
      %p445 = scmp.ne.s32.totalorder %s437, %s440
      %p446 = scmp.eq.s32.totalorder %s30, 0
      %p447 = por %p445, %p446
      %p448 = scmp.ne.s32.totalorder %s437, %s440
      %p449 = scmp.eq.s32.totalorder %s35, 3
      %p450 = por %p448, %p449
      %p451 = scmp.ne.s32.totalorder %s440, %s441
      %p452 = scmp.eq.s32.totalorder %s35, 0
      %p453 = por %p451, %p452
      %p454 = scmp.ne.s32.totalorder %s440, %s441
      %p455 = scmp.eq.s32.totalorder %s36, 3
      %p456 = por %p454, %p455
      %p458 = scmp.ne.s32.totalorder %s441, %s457
      %p459 = scmp.eq.s32.totalorder %s36, 0
      %p460 = por %p458, %p459
      %p461 = scmp.le.s32.totalorder 1, %s30
      %p462 = scmp.lt.s32.totalorder %s30, 5
      %p463 = pnand %p461, %p462
      %p464 = pneg %p463
      // Predicated region
      $region9: #{tpu_custom_call.1} parent=5 // pred_check
        _
      $region10: #{tpu_custom_call.1} parent=5 // pred_check_branch
        %466 = sbr.rel (%p463) target = $region12
      $region11: #{tpu_custom_call.1} parent=5 // pred_region
        %s467 = ssub.s32 %s30, 1
        // Predicated region
        $region13: #{tpu_custom_call.1} parent=11 // pred_check
          %p468 = pneg %p91
        $region14: #{tpu_custom_call.1} parent=11 // pred_check_branch
          %470 = sbr.rel (%p468) target = $region16
        $region15: #{tpu_custom_call.1} parent=11 // pred_region
          _
        $region16: #{tpu_custom_call.1} parent=11 // pred_fallthru
          _
        // Predicated region
        $region17: #{tpu_custom_call.1} parent=11 // pred_check
          %p471 = pneg %p112
        $region18: #{tpu_custom_call.1} parent=11 // pred_check_branch
          %473 = sbr.rel (%p471) target = $region20
        $region19: #{tpu_custom_call.1} parent=11 // pred_region
          %s475 = ssub.s32 16, 16
          %476 = vsyncadd [#allocation5], %s475
          %s478 = sshll.u32 [#allocation4], 4
          %s479 = int_to_ptr.vmem [resolvable:$true] %s478
          %481 = dma.hbm_to_vmem [thread:$0]  %s2, 16, %s479, [#allocation5]
        $region20: #{tpu_custom_call.1} parent=11 // pred_fallthru
          _
        // Predicated region
        $region21: #{tpu_custom_call.1} parent=11 // pred_check
          %p482 = pneg %p133
        $region22: #{tpu_custom_call.1} parent=11 // pred_check_branch
          %484 = sbr.rel (%p482) target = $region24
        $region23: #{tpu_custom_call.1} parent=11 // pred_region
          %s486 = ssub.s32 16, 16
          %487 = vsyncadd [#allocation8], %s486
          %s489 = sshll.u32 [#allocation7], 4
          %s490 = int_to_ptr.vmem [resolvable:$true] %s489
          %492 = dma.hbm_to_vmem [thread:$0]  %s3, 16, %s490, [#allocation8]
        $region24: #{tpu_custom_call.1} parent=11 // pred_fallthru
          _
        // Predicated region
        $region25: #{tpu_custom_call.1} parent=11 // pred_check
          %p493 = pneg %p154
        $region26: #{tpu_custom_call.1} parent=11 // pred_check_branch
          %495 = sbr.rel (%p493) target = $region28
        $region27: #{tpu_custom_call.1} parent=11 // pred_region
          %s497 = ssub.s32 512, 512
          %498 = vsyncadd [#allocation8], %s497
          %s499 = sshll.u32 [#allocation9], 4
          %s500 = int_to_ptr.vmem [resolvable:$true] %s499
          %505 = dma.hbm_to_vmem [thread:$0]  %s4, 512, %s500, [#allocation8], 64, 64, 4
        $region28: #{tpu_custom_call.1} parent=11 // pred_fallthru
          _
        // Predicated region
        $region29: #{tpu_custom_call.1} parent=11 // pred_check
          %p506 = pneg %p175
        $region30: #{tpu_custom_call.1} parent=11 // pred_check_branch
          %508 = sbr.rel (%p506) target = $region32
        $region31: #{tpu_custom_call.1} parent=11 // pred_region
          %s510 = ssub.s32 16, 16
          %511 = vsyncadd [#allocation11], %s510
          %s513 = sshll.u32 [#allocation10], 4
          %s514 = int_to_ptr.vmem [resolvable:$true] %s513
          %516 = dma.hbm_to_vmem [thread:$0]  %s5, 16, %s514, [#allocation11]
        $region32: #{tpu_custom_call.1} parent=11 // pred_fallthru
          _
        // Predicated region
        $region33: #{tpu_custom_call.1} parent=11 // pred_check
          %p517 = pneg %p196
        $region34: #{tpu_custom_call.1} parent=11 // pred_check_branch
          %519 = sbr.rel (%p517) target = $region36
        $region35: #{tpu_custom_call.1} parent=11 // pred_region
          %s521 = ssub.s32 16, 16
          %522 = vsyncadd [#allocation11], %s521
          %s524 = sshll.u32 [#allocation12], 4
          %s525 = int_to_ptr.vmem [resolvable:$true] %s524
          %527 = dma.hbm_to_vmem [thread:$0]  %s6, 16, %s525, [#allocation11]
        $region36: #{tpu_custom_call.1} parent=11 // pred_fallthru
          _
        // Predicated region
        $region37: #{tpu_custom_call.1} parent=11 // pred_check
          %p528 = pneg %p217
        $region38: #{tpu_custom_call.1} parent=11 // pred_check_branch
          %530 = sbr.rel (%p528) target = $region40
        $region39: #{tpu_custom_call.1} parent=11 // pred_region
          _
        $region40: #{tpu_custom_call.1} parent=11 // pred_fallthru
          _
        // Predicated region
        $region41: #{tpu_custom_call.1} parent=11 // pred_check
          %p531 = pneg %p238
        $region42: #{tpu_custom_call.1} parent=11 // pred_check_branch
          %533 = sbr.rel (%p531) target = $region44
        $region43: #{tpu_custom_call.1} parent=11 // pred_region
          _
        $region44: #{tpu_custom_call.1} parent=11 // pred_fallthru
          _
        // Predicated region
        $region45: #{tpu_custom_call.1} parent=11 // pred_check
          %p534 = pneg %p259
        $region46: #{tpu_custom_call.1} parent=11 // pred_check_branch
          %536 = sbr.rel (%p534) target = $region48
        $region47: #{tpu_custom_call.1} parent=11 // pred_region
          _
        $region48: #{tpu_custom_call.1} parent=11 // pred_fallthru
          _
        // Predicated region
        $region49: #{tpu_custom_call.1} parent=11 // pred_check
          %p537 = pneg %p280
        $region50: #{tpu_custom_call.1} parent=11 // pred_check_branch
          %539 = sbr.rel (%p537) target = $region52
        $region51: #{tpu_custom_call.1} parent=11 // pred_region
          %s541 = ssub.s32 32768, 32768
          %542 = vsyncadd [#allocation14], %s541
          %s543 = sshll.u32 [#allocation13], 4
          %s544 = int_to_ptr.vmem [resolvable:$true] %s543
          %549 = dma.hbm_to_vmem [thread:$0]  %s10, 32768, %s544, [#allocation14], 256, 256, 16
        $region52: #{tpu_custom_call.1} parent=11 // pred_fallthru
          _
        // Predicated region
        $region53: #{tpu_custom_call.1} parent=11 // pred_check
          %p550 = pneg %p301
        $region54: #{tpu_custom_call.1} parent=11 // pred_check_branch
          %552 = sbr.rel (%p550) target = $region56
        $region55: #{tpu_custom_call.1} parent=11 // pred_region
          _
        $region56: #{tpu_custom_call.1} parent=11 // pred_fallthru
          _
        // Predicated region
        $region57: #{tpu_custom_call.1} parent=11 // pred_check
          %p553 = pneg %p322
        $region58: #{tpu_custom_call.1} parent=11 // pred_check_branch
          %555 = sbr.rel (%p553) target = $region60
        $region59: #{tpu_custom_call.1} parent=11 // pred_region
          _
        $region60: #{tpu_custom_call.1} parent=11 // pred_fallthru
          _
        // Predicated region
        $region61: #{tpu_custom_call.1} parent=11 // pred_check
          %p556 = pneg %p343
        $region62: #{tpu_custom_call.1} parent=11 // pred_check_branch
          %558 = sbr.rel (%p556) target = $region64
        $region63: #{tpu_custom_call.1} parent=11 // pred_region
          %s560 = ssub.s32 8192, 8192
          %561 = vsyncadd [#allocation14], %s560
          %s562 = sshll.u32 [#allocation15], 4
          %s563 = int_to_ptr.vmem [resolvable:$true] %s562
          %568 = dma.hbm_to_vmem [thread:$0]  %s13, 8192, %s563, [#allocation14], 128, 128, 8
        $region64: #{tpu_custom_call.1} parent=11 // pred_fallthru
          _
        // Predicated region
        $region65: #{tpu_custom_call.1} parent=11 // pred_check
          %p569 = pneg %p364
        $region66: #{tpu_custom_call.1} parent=11 // pred_check_branch
          %571 = sbr.rel (%p569) target = $region68
        $region67: #{tpu_custom_call.1} parent=11 // pred_region
          _
        $region68: #{tpu_custom_call.1} parent=11 // pred_fallthru
          _
        // Predicated region
        $region69: #{tpu_custom_call.1} parent=11 // pred_check
          %p572 = pneg %p385
        $region70: #{tpu_custom_call.1} parent=11 // pred_check_branch
          %574 = sbr.rel (%p572) target = $region72
        $region71: #{tpu_custom_call.1} parent=11 // pred_region
          _
        $region72: #{tpu_custom_call.1} parent=11 // pred_fallthru
          _
        // Predicated region
        $region73: #{tpu_custom_call.1} parent=11 // pred_check
          %p575 = pneg %p406
        $region74: #{tpu_custom_call.1} parent=11 // pred_check_branch
          %577 = sbr.rel (%p575) target = $region76
        $region75: #{tpu_custom_call.1} parent=11 // pred_region
          %s579 = ssub.s32 2048, 2048
          %580 = vsyncadd [#allocation17], %s579
          %s581 = sshll.u32 [#allocation16], 4
          %s582 = int_to_ptr.vmem [resolvable:$true] %s581
          %587 = dma.hbm_to_vmem [thread:$0]  %s16, 2048, %s582, [#allocation17], 64, 64, 4
        $region76: #{tpu_custom_call.1} parent=11 // pred_fallthru
          _
        // Predicated region
        $region77: #{tpu_custom_call.1} parent=11 // pred_check
          %p588 = pneg %p427
        $region78: #{tpu_custom_call.1} parent=11 // pred_check_branch
          %590 = sbr.rel (%p588) target = $region80
        $region79: #{tpu_custom_call.1} parent=11 // pred_region
          _
        $region80: #{tpu_custom_call.1} parent=11 // pred_fallthru
          _
      $region12: #{tpu_custom_call.1} parent=5 // pred_fallthru
        _
      %p591 = scmp.lt.s32.totalorder %s30, 4
      // Predicated region
      $region81: #{tpu_custom_call.1} parent=5 // pred_check
        %p592 = pneg %p591
      $region82: #{tpu_custom_call.1} parent=5 // pred_check_branch
        %594 = sbr.rel (%p592) target = $region84
      $region83: #{tpu_custom_call.1} parent=5 // pred_region
        // Predicated region
        $region85: #{tpu_custom_call.1} parent=83 // pred_check
          %p595 = pneg %p64
        $region86: #{tpu_custom_call.1} parent=83 // pred_check_branch
          %597 = sbr.rel (%p595) target = $region88
        $region87: #{tpu_custom_call.1} parent=83 // pred_region
          %s598 = sand.u32 %s54, 1
          %s599 = sand.u32 %s54, 1
          %s600 = smul.addr %s599, 128
          %s601 = scalar_lea.vmem [#allocation3], %s600
          %s602 = smul.u32 2, %s37
          %s603 = smul.u32 8, %s38
          %s604 = smul.addr %s602, 32
          %s605 = sadd.s32 %s603, %s604
          %s606 = smul.addr %s605, 8
          %s607 = scalar_lea.vmem %s0, %s606
          // Predicated region
          $region89: #{tpu_custom_call.1} parent=87 // pred_check
            _
          $region90: #{tpu_custom_call.1} parent=87 // pred_check_branch
            %609 = sbr.rel (0) target = $region92
          $region91: #{tpu_custom_call.1} parent=87 // pred_region
            // Predicated region
            $region93: #{tpu_custom_call.1} parent=91 // pred_check
              _
            $region94: #{tpu_custom_call.1} parent=91 // pred_check_branch
              %611 = sbr.rel (0) target = $region96
            $region95: #{tpu_custom_call.1} parent=91 // pred_region
              // Predicated region
              $region108: #{tpu_custom_call.1} parent=95 // pred_check
                _
              $region109: #{tpu_custom_call.1} parent=95 // pred_check_branch
                %657 = sbr.rel (0) target = $region111
              $region110: #{tpu_custom_call.1} parent=95 // pred_region
                loop: start=0, step=1, limit=1
                $region112: #{tpu_custom_call.1} parent=110 // loop_pre_header
                  _
                $region113: #{tpu_custom_call.1} parent=110 // loop_header
                  %s659 = sphi 0, %s663
                  %p660 = scmp.ge.s32.totalorder %s659, 1
                  %s664 = sphi %s607, %s607
                  %s665 = sphi %s601, %s601
                $region114: #{tpu_custom_call.1} parent=110 // loop_header_branch
                  %662 = sbr.rel (%p660) target = $region118
                $region115: #{tpu_custom_call.1} parent=110 // loop_body
                  %v666 = vld [vmem:[%s664] sm:$0xff]
                  %667 = vst [vmem:[%s665] sm:$0xff] %v666
                  %v668 = vld [vmem:[%s664 + $0x8] sm:$0xff]
                  %669 = vst [vmem:[%s665 + $0x8] sm:$0xff] %v668
                  %v670 = vld [vmem:[%s664 + $0x10] sm:$0xff]
                  %671 = vst [vmem:[%s665 + $0x10] sm:$0xff] %v670
                  %v672 = vld [vmem:[%s664 + $0x18] sm:$0xff]
                  %673 = vst [vmem:[%s665 + $0x18] sm:$0xff] %v672
                  %v674 = vld [vmem:[%s664 + $0x20] sm:$0xff]
                  %675 = vst [vmem:[%s665 + $0x20] sm:$0xff] %v674
                  %v676 = vld [vmem:[%s664 + $0x28] sm:$0xff]
                  %677 = vst [vmem:[%s665 + $0x28] sm:$0xff] %v676
                  %v678 = vld [vmem:[%s664 + $0x30] sm:$0xff]
                  %679 = vst [vmem:[%s665 + $0x30] sm:$0xff] %v678
                  %v680 = vld [vmem:[%s664 + $0x38] sm:$0xff]
                  %681 = vst [vmem:[%s665 + $0x38] sm:$0xff] %v680
                  %v682 = vld [vmem:[%s664 + $0x100] sm:$0xff]
                  %683 = vst [vmem:[%s665 + $0x40] sm:$0xff] %v682
                  %v684 = vld [vmem:[%s664 + $0x108] sm:$0xff]
                  %685 = vst [vmem:[%s665 + $0x48] sm:$0xff] %v684
                  %v686 = vld [vmem:[%s664 + $0x110] sm:$0xff]
                  %687 = vst [vmem:[%s665 + $0x50] sm:$0xff] %v686
                  %v688 = vld [vmem:[%s664 + $0x118] sm:$0xff]
                  %689 = vst [vmem:[%s665 + $0x58] sm:$0xff] %v688
                  %v690 = vld [vmem:[%s664 + $0x120] sm:$0xff]
                  %691 = vst [vmem:[%s665 + $0x60] sm:$0xff] %v690
                  %v692 = vld [vmem:[%s664 + $0x128] sm:$0xff]
                  %693 = vst [vmem:[%s665 + $0x68] sm:$0xff] %v692
                  %v694 = vld [vmem:[%s664 + $0x130] sm:$0xff]
                  %695 = vst [vmem:[%s665 + $0x70] sm:$0xff] %v694
                  %v696 = vld [vmem:[%s664 + $0x138] sm:$0xff]
                  %697 = vst [vmem:[%s665 + $0x78] sm:$0xff] %v696
                $region116: #{tpu_custom_call.1} parent=110 // loop_footer
                  %s663 = sadd.s32 1, %s659
                $region117: #{tpu_custom_call.1} parent=110 // loop_footer_branch
                  %658 = sbr.rel target = $region113
                $region118: #{tpu_custom_call.1} parent=110 // loop_exit
                  _
              $region111: #{tpu_custom_call.1} parent=95 // pred_fallthru
                _
              // Predicated region
              $region119: #{tpu_custom_call.1} parent=95 // pred_check
                _
              $region120: #{tpu_custom_call.1} parent=95 // pred_check_branch
                %699 = sbr.rel target = $region122
              $region121: #{tpu_custom_call.1} parent=95 // pred_region
                _
              $region122: #{tpu_custom_call.1} parent=95 // pred_fallthru
                _
            $region96: #{tpu_custom_call.1} parent=91 // pred_fallthru
              _
            // Predicated region
            $region97: #{tpu_custom_call.1} parent=91 // pred_check
              _
            $region98: #{tpu_custom_call.1} parent=91 // pred_check_branch
              %613 = sbr.rel target = $region100
            $region99: #{tpu_custom_call.1} parent=91 // pred_region
              %s615 = ssub.s32 256, 1
              loop: start=0, step=1, limit=1
              $region101: #{tpu_custom_call.1} parent=99 // loop_pre_header
                _
              $region102: #{tpu_custom_call.1} parent=99 // loop_header
                %s617 = sphi 0, %s621
                %p618 = scmp.ge.s32.totalorder %s617, 1
                %s622 = sphi %s607, %s607
                %s623 = sphi %s601, %s601
              $region103: #{tpu_custom_call.1} parent=99 // loop_header_branch
                %620 = sbr.rel (%p618) target = $region107
              $region104: #{tpu_custom_call.1} parent=99 // loop_body
                %v624 = vld [vmem:[%s622] sm:%s615]
                %625 = vst [vmem:[%s623] sm:%s615] %v624
                %v626 = vld [vmem:[%s622 + $0x8] sm:%s615]
                %627 = vst [vmem:[%s623 + $0x8] sm:%s615] %v626
                %v628 = vld [vmem:[%s622 + $0x10] sm:%s615]
                %629 = vst [vmem:[%s623 + $0x10] sm:%s615] %v628
                %v630 = vld [vmem:[%s622 + $0x18] sm:%s615]
                %631 = vst [vmem:[%s623 + $0x18] sm:%s615] %v630
                %v632 = vld [vmem:[%s622 + $0x20] sm:%s615]
                %633 = vst [vmem:[%s623 + $0x20] sm:%s615] %v632
                %v634 = vld [vmem:[%s622 + $0x28] sm:%s615]
                %635 = vst [vmem:[%s623 + $0x28] sm:%s615] %v634
                %v636 = vld [vmem:[%s622 + $0x30] sm:%s615]
                %637 = vst [vmem:[%s623 + $0x30] sm:%s615] %v636
                %v638 = vld [vmem:[%s622 + $0x38] sm:%s615]
                %639 = vst [vmem:[%s623 + $0x38] sm:%s615] %v638
                %v640 = vld [vmem:[%s622 + $0x100] sm:%s615]
                %641 = vst [vmem:[%s623 + $0x40] sm:%s615] %v640
                %v642 = vld [vmem:[%s622 + $0x108] sm:%s615]
                %643 = vst [vmem:[%s623 + $0x48] sm:%s615] %v642
                %v644 = vld [vmem:[%s622 + $0x110] sm:%s615]
                %645 = vst [vmem:[%s623 + $0x50] sm:%s615] %v644
                %v646 = vld [vmem:[%s622 + $0x118] sm:%s615]
                %647 = vst [vmem:[%s623 + $0x58] sm:%s615] %v646
                %v648 = vld [vmem:[%s622 + $0x120] sm:%s615]
                %649 = vst [vmem:[%s623 + $0x60] sm:%s615] %v648
                %v650 = vld [vmem:[%s622 + $0x128] sm:%s615]
                %651 = vst [vmem:[%s623 + $0x68] sm:%s615] %v650
                %v652 = vld [vmem:[%s622 + $0x130] sm:%s615]
                %653 = vst [vmem:[%s623 + $0x70] sm:%s615] %v652
                %v654 = vld [vmem:[%s622 + $0x138] sm:%s615]
                %655 = vst [vmem:[%s623 + $0x78] sm:%s615] %v654
              $region105: #{tpu_custom_call.1} parent=99 // loop_footer
                %s621 = sadd.s32 1, %s617
              $region106: #{tpu_custom_call.1} parent=99 // loop_footer_branch
                %616 = sbr.rel target = $region102
              $region107: #{tpu_custom_call.1} parent=99 // loop_exit
                _
            $region100: #{tpu_custom_call.1} parent=91 // pred_fallthru
              _
          $region92: #{tpu_custom_call.1} parent=87 // pred_fallthru
            _
          %700 = vnop
        $region88: #{tpu_custom_call.1} parent=83 // pred_fallthru
          _
      $region84: #{tpu_custom_call.1} parent=5 // pred_fallthru
        _
      %p701 = scmp.le.s32.totalorder 1, %s30
      %p702 = scmp.lt.s32.totalorder %s30, 5
      %p703 = pnand %p701, %p702
      %p704 = pneg %p703
      // Predicated region
      $region123: #{tpu_custom_call.1} parent=5 // pred_check
        _
      $region124: #{tpu_custom_call.1} parent=5 // pred_check_branch
        %706 = sbr.rel (%p703) target = $region126
      $region125: #{tpu_custom_call.1} parent=5 // pred_region
        %s707 = ssub.s32 %s30, 1
        %s708 = sand.u32 %s57, 1
        %s709 = sand.u32 %s57, 1
        %s710 = smul.addr %s709, 128
        %s711 = scalar_lea.vmem [#allocation3], %s710
        // Predicated region
        $region127: #{tpu_custom_call.1} parent=125 // pred_check
          %p712 = pneg %p70
        $region128: #{tpu_custom_call.1} parent=125 // pred_check_branch
          %714 = sbr.rel (%p712) target = $region130
        $region129: #{tpu_custom_call.1} parent=125 // pred_region
          _
        $region130: #{tpu_custom_call.1} parent=125 // pred_fallthru
          _
        // Predicated region
        $region131: #{tpu_custom_call.1} parent=125 // pred_check
          %p715 = pneg %p112
        $region132: #{tpu_custom_call.1} parent=125 // pred_check_branch
          %717 = sbr.rel (%p715) target = $region134
        $region133: #{tpu_custom_call.1} parent=125 // pred_region
          %718 = dma.done [#allocation5], 16
        $region134: #{tpu_custom_call.1} parent=125 // pred_fallthru
          _
        // Predicated region
        $region135: #{tpu_custom_call.1} parent=125 // pred_check
          %p719 = pneg %p133
        $region136: #{tpu_custom_call.1} parent=125 // pred_check_branch
          %721 = sbr.rel (%p719) target = $region138
        $region137: #{tpu_custom_call.1} parent=125 // pred_region
          %722 = dma.done [#allocation8], 16
        $region138: #{tpu_custom_call.1} parent=125 // pred_fallthru
          _
        // Predicated region
        $region139: #{tpu_custom_call.1} parent=125 // pred_check
          %p723 = pneg %p154
        $region140: #{tpu_custom_call.1} parent=125 // pred_check_branch
          %725 = sbr.rel (%p723) target = $region142
        $region141: #{tpu_custom_call.1} parent=125 // pred_region
          %726 = dma.done [#allocation8], 512
        $region142: #{tpu_custom_call.1} parent=125 // pred_fallthru
          _
        // Predicated region
        $region143: #{tpu_custom_call.1} parent=125 // pred_check
          %p727 = pneg %p175
        $region144: #{tpu_custom_call.1} parent=125 // pred_check_branch
          %729 = sbr.rel (%p727) target = $region146
        $region145: #{tpu_custom_call.1} parent=125 // pred_region
          %730 = dma.done [#allocation11], 16
        $region146: #{tpu_custom_call.1} parent=125 // pred_fallthru
          _
        // Predicated region
        $region147: #{tpu_custom_call.1} parent=125 // pred_check
          %p731 = pneg %p196
        $region148: #{tpu_custom_call.1} parent=125 // pred_check_branch
          %733 = sbr.rel (%p731) target = $region150
        $region149: #{tpu_custom_call.1} parent=125 // pred_region
          %734 = dma.done [#allocation11], 16
        $region150: #{tpu_custom_call.1} parent=125 // pred_fallthru
          _
        // Predicated region
        $region151: #{tpu_custom_call.1} parent=125 // pred_check
          %p735 = pneg %p280
        $region152: #{tpu_custom_call.1} parent=125 // pred_check_branch
          %737 = sbr.rel (%p735) target = $region154
        $region153: #{tpu_custom_call.1} parent=125 // pred_region
          %738 = dma.done [#allocation14], 32768
        $region154: #{tpu_custom_call.1} parent=125 // pred_fallthru
          _
        // Predicated region
        $region155: #{tpu_custom_call.1} parent=125 // pred_check
          %p739 = pneg %p343
        $region156: #{tpu_custom_call.1} parent=125 // pred_check_branch
          %741 = sbr.rel (%p739) target = $region158
        $region157: #{tpu_custom_call.1} parent=125 // pred_region
          %742 = dma.done [#allocation14], 8192
        $region158: #{tpu_custom_call.1} parent=125 // pred_fallthru
          _
        // Predicated region
        $region159: #{tpu_custom_call.1} parent=125 // pred_check
          %p743 = pneg %p406
        $region160: #{tpu_custom_call.1} parent=125 // pred_check_branch
          %745 = sbr.rel (%p743) target = $region162
        $region161: #{tpu_custom_call.1} parent=125 // pred_region
          %746 = dma.done [#allocation17], 2048
        $region162: #{tpu_custom_call.1} parent=125 // pred_fallthru
          _
        %s747 = sand.u32 %s57, 1
        %s748 = sand.u32 %s57, 1
        %s749 = smul.addr %s748, 128
        %s750 = scalar_lea.vmem [#allocation3], %s749
        %p751 = pneg %p70
        %p752 = pneg %p67
        %p753 = pneg %p91
        %p754 = pneg %p88
        %p755 = pneg %p112
        %p756 = pneg %p109
        %p757 = pneg %p133
        %p758 = pneg %p130
        %p759 = pneg %p154
        %p760 = pneg %p151
        %p761 = pneg %p175
        %p762 = pneg %p172
        %p763 = pneg %p196
        %p764 = pneg %p193
        %p765 = pneg %p217
        %p766 = pneg %p214
        %p767 = pneg %p238
        %p768 = pneg %p235
        %p769 = pneg %p259
        %p770 = pneg %p256
        %p771 = pneg %p280
        %p772 = pneg %p277
        %p773 = pneg %p301
        %p774 = pneg %p298
        %p775 = pneg %p322
        %p776 = pneg %p319
        %p777 = pneg %p343
        %p778 = pneg %p340
        %p779 = pneg %p364
        %p780 = pneg %p361
        %p781 = pneg %p385
        %p782 = pneg %p382
        %p783 = pneg %p406
        %p784 = pneg %p403
        %p785 = pneg %p427
        %p786 = pneg %p424
        %p787 = pneg %p453
        %p788 = pneg %p450
        %s789 = smul.u32 2, %s39
        %s790 = smul.u32 8, %s40
        %v792 = vld [vmem:[%s711] sm:$0xff]
        %v793 = vld [vmem:[%s711 + $0x8] sm:$0xff]
        %v794 = vld [vmem:[%s711 + $0x10] sm:$0xff]
        %v795 = vld [vmem:[%s711 + $0x18] sm:$0xff]
        %v796 = vld [vmem:[%s711 + $0x20] sm:$0xff]
        %v797 = vld [vmem:[%s711 + $0x28] sm:$0xff]
        %v798 = vld [vmem:[%s711 + $0x30] sm:$0xff]
        %v799 = vld [vmem:[%s711 + $0x38] sm:$0xff]
        %v800 = vld [vmem:[%s711 + $0x40] sm:$0xff]
        %v801 = vld [vmem:[%s711 + $0x48] sm:$0xff]
        %v802 = vld [vmem:[%s711 + $0x50] sm:$0xff]
        %v803 = vld [vmem:[%s711 + $0x58] sm:$0xff]
        %v804 = vld [vmem:[%s711 + $0x60] sm:$0xff]
        %v805 = vld [vmem:[%s711 + $0x68] sm:$0xff]
        %v806 = vld [vmem:[%s711 + $0x70] sm:$0xff]
        %v807 = vld [vmem:[%s711 + $0x78] sm:$0xff]
        %v808 = vld [vmem:[%s1] sm:$0x1]
        %810 = vset.pattern.permute.xlu0 0
        %811 = vperm.xlu0 %810, %v792
        %v812 = vpop.permute.xlu0 %811
        %815 = vset.pattern.permute.xlu0 0
        %816 = vperm.xlu0 %815, %v793
        %v817 = vpop.permute.xlu0 %816
        %820 = vset.pattern.permute.xlu0 0
        %821 = vperm.xlu0 %820, %v794
        %v822 = vpop.permute.xlu0 %821
        %825 = vset.pattern.permute.xlu0 0
        %826 = vperm.xlu0 %825, %v795
        %v827 = vpop.permute.xlu0 %826
        %830 = vset.pattern.permute.xlu0 0
        %831 = vperm.xlu0 %830, %v796
        %v832 = vpop.permute.xlu0 %831
        %835 = vset.pattern.permute.xlu0 0
        %836 = vperm.xlu0 %835, %v797
        %v837 = vpop.permute.xlu0 %836
        %840 = vset.pattern.permute.xlu0 0
        %841 = vperm.xlu0 %840, %v798
        %v842 = vpop.permute.xlu0 %841
        %845 = vset.pattern.permute.xlu0 0
        %846 = vperm.xlu0 %845, %v799
        %v847 = vpop.permute.xlu0 %846
        %850 = vset.pattern.permute.xlu0 0
        %851 = vperm.xlu0 %850, %v800
        %v852 = vpop.permute.xlu0 %851
        %855 = vset.pattern.permute.xlu0 0
        %856 = vperm.xlu0 %855, %v801
        %v857 = vpop.permute.xlu0 %856
        %860 = vset.pattern.permute.xlu0 0
        %861 = vperm.xlu0 %860, %v802
        %v862 = vpop.permute.xlu0 %861
        %865 = vset.pattern.permute.xlu0 0
        %866 = vperm.xlu0 %865, %v803
        %v867 = vpop.permute.xlu0 %866
        %870 = vset.pattern.permute.xlu0 0
        %871 = vperm.xlu0 %870, %v804
        %v872 = vpop.permute.xlu0 %871
        %875 = vset.pattern.permute.xlu0 0
        %876 = vperm.xlu0 %875, %v805
        %v877 = vpop.permute.xlu0 %876
        %880 = vset.pattern.permute.xlu0 0
        %881 = vperm.xlu0 %880, %v806
        %v882 = vpop.permute.xlu0 %881
        %885 = vset.pattern.permute.xlu0 0
        %886 = vperm.xlu0 %885, %v807
        %v887 = vpop.permute.xlu0 %886
        %v889 = vlaneseq
        %v890 = vshrl.u32 %v889, 7
        %v891 = vsub.s32 0, %v890
        %v892 = vrot.slane %v808, %v891
        %v893 = vmul.f32 %v812, %v892
        %v894 = vmul.f32 %v817, %v892
        %v895 = vmul.f32 %v822, %v892
        %v896 = vmul.f32 %v827, %v892
        %v897 = vmul.f32 %v832, %v892
        %v898 = vmul.f32 %v837, %v892
        %v899 = vmul.f32 %v842, %v892
        %v900 = vmul.f32 %v847, %v892
        %v901 = vmul.f32 %v852, %v892
        %v902 = vmul.f32 %v857, %v892
        %v903 = vmul.f32 %v862, %v892
        %v904 = vmul.f32 %v867, %v892
        %v905 = vmul.f32 %v872, %v892
        %v906 = vmul.f32 %v877, %v892
        %v907 = vmul.f32 %v882, %v892
        %v908 = vmul.f32 %v887, %v892
        %v909 = vld [vmem:[%s1 + $0x1] sm:$0x1]
        %910 = vset.pattern.permute.xlu0 1
        %911 = vperm.xlu0 %910, %v792
        %v912 = vpop.permute.xlu0 %911
        %914 = vset.pattern.permute.xlu0 1
        %915 = vperm.xlu0 %914, %v793
        %v916 = vpop.permute.xlu0 %915
        %918 = vset.pattern.permute.xlu0 1
        %919 = vperm.xlu0 %918, %v794
        %v920 = vpop.permute.xlu0 %919
        %922 = vset.pattern.permute.xlu0 1
        %923 = vperm.xlu0 %922, %v795
        %v924 = vpop.permute.xlu0 %923
        %926 = vset.pattern.permute.xlu0 1
        %927 = vperm.xlu0 %926, %v796
        %v928 = vpop.permute.xlu0 %927
        %930 = vset.pattern.permute.xlu0 1
        %931 = vperm.xlu0 %930, %v797
        %v932 = vpop.permute.xlu0 %931
        %934 = vset.pattern.permute.xlu0 1
        %935 = vperm.xlu0 %934, %v798
        %v936 = vpop.permute.xlu0 %935
        %938 = vset.pattern.permute.xlu0 1
        %939 = vperm.xlu0 %938, %v799
        %v940 = vpop.permute.xlu0 %939
        %942 = vset.pattern.permute.xlu0 1
        %943 = vperm.xlu0 %942, %v800
        %v944 = vpop.permute.xlu0 %943
        %946 = vset.pattern.permute.xlu0 1
        %947 = vperm.xlu0 %946, %v801
        %v948 = vpop.permute.xlu0 %947
        %950 = vset.pattern.permute.xlu0 1
        %951 = vperm.xlu0 %950, %v802
        %v952 = vpop.permute.xlu0 %951
        %954 = vset.pattern.permute.xlu0 1
        %955 = vperm.xlu0 %954, %v803
        %v956 = vpop.permute.xlu0 %955
        %958 = vset.pattern.permute.xlu0 1
        %959 = vperm.xlu0 %958, %v804
        %v960 = vpop.permute.xlu0 %959
        %962 = vset.pattern.permute.xlu0 1
        %963 = vperm.xlu0 %962, %v805
        %v964 = vpop.permute.xlu0 %963
        %966 = vset.pattern.permute.xlu0 1
        %967 = vperm.xlu0 %966, %v806
        %v968 = vpop.permute.xlu0 %967
        %970 = vset.pattern.permute.xlu0 1
        %971 = vperm.xlu0 %970, %v807
        %v972 = vpop.permute.xlu0 %971
        %v974 = vlaneseq
        %v975 = vshrl.u32 %v974, 7
        %v976 = vsub.s32 0, %v975
        %v977 = vrot.slane %v909, %v976
        %v978 = vmul.f32 %v912, %v977
        %v979 = vmul.f32 %v916, %v977
        %v980 = vmul.f32 %v920, %v977
        %v981 = vmul.f32 %v924, %v977
        %v982 = vmul.f32 %v928, %v977
        %v983 = vmul.f32 %v932, %v977
        %v984 = vmul.f32 %v936, %v977
        %v985 = vmul.f32 %v940, %v977
        %v986 = vmul.f32 %v944, %v977
        %v987 = vmul.f32 %v948, %v977
        %v988 = vmul.f32 %v952, %v977
        %v989 = vmul.f32 %v956, %v977
        %v990 = vmul.f32 %v960, %v977
        %v991 = vmul.f32 %v964, %v977
        %v992 = vmul.f32 %v968, %v977
        %v993 = vmul.f32 %v972, %v977
        %v994 = vadd.f32 %v893, %v978
        %v995 = vadd.f32 %v894, %v979
        %v996 = vadd.f32 %v895, %v980
        %v997 = vadd.f32 %v896, %v981
        %v998 = vadd.f32 %v897, %v982
        %v999 = vadd.f32 %v898, %v983
        %v1000 = vadd.f32 %v899, %v984
        %v1001 = vadd.f32 %v900, %v985
        %v1002 = vadd.f32 %v901, %v986
        %v1003 = vadd.f32 %v902, %v987
        %v1004 = vadd.f32 %v903, %v988
        %v1005 = vadd.f32 %v904, %v989
        %v1006 = vadd.f32 %v905, %v990
        %v1007 = vadd.f32 %v906, %v991
        %v1008 = vadd.f32 %v907, %v992
        %v1009 = vadd.f32 %v908, %v993
        %v1010 = vld [vmem:[%s1 + $0x2] sm:$0x1]
        %1011 = vset.pattern.permute.xlu0 2
        %1012 = vperm.xlu0 %1011, %v792
        %v1013 = vpop.permute.xlu0 %1012
        %1015 = vset.pattern.permute.xlu0 2
        %1016 = vperm.xlu0 %1015, %v793
        %v1017 = vpop.permute.xlu0 %1016
        %1019 = vset.pattern.permute.xlu0 2
        %1020 = vperm.xlu0 %1019, %v794
        %v1021 = vpop.permute.xlu0 %1020
        %1023 = vset.pattern.permute.xlu0 2
        %1024 = vperm.xlu0 %1023, %v795
        %v1025 = vpop.permute.xlu0 %1024
        %1027 = vset.pattern.permute.xlu0 2
        %1028 = vperm.xlu0 %1027, %v796
        %v1029 = vpop.permute.xlu0 %1028
        %1031 = vset.pattern.permute.xlu0 2
        %1032 = vperm.xlu0 %1031, %v797
        %v1033 = vpop.permute.xlu0 %1032
        %1035 = vset.pattern.permute.xlu0 2
        %1036 = vperm.xlu0 %1035, %v798
        %v1037 = vpop.permute.xlu0 %1036
        %1039 = vset.pattern.permute.xlu0 2
        %1040 = vperm.xlu0 %1039, %v799
        %v1041 = vpop.permute.xlu0 %1040
        %1043 = vset.pattern.permute.xlu0 2
        %1044 = vperm.xlu0 %1043, %v800
        %v1045 = vpop.permute.xlu0 %1044
        %1047 = vset.pattern.permute.xlu0 2
        %1048 = vperm.xlu0 %1047, %v801
        %v1049 = vpop.permute.xlu0 %1048
        %1051 = vset.pattern.permute.xlu0 2
        %1052 = vperm.xlu0 %1051, %v802
        %v1053 = vpop.permute.xlu0 %1052
        %1055 = vset.pattern.permute.xlu0 2
        %1056 = vperm.xlu0 %1055, %v803
        %v1057 = vpop.permute.xlu0 %1056
        %1059 = vset.pattern.permute.xlu0 2
        %1060 = vperm.xlu0 %1059, %v804
        %v1061 = vpop.permute.xlu0 %1060
        %1063 = vset.pattern.permute.xlu0 2
        %1064 = vperm.xlu0 %1063, %v805
        %v1065 = vpop.permute.xlu0 %1064
        %1067 = vset.pattern.permute.xlu0 2
        %1068 = vperm.xlu0 %1067, %v806
        %v1069 = vpop.permute.xlu0 %1068
        %1071 = vset.pattern.permute.xlu0 2
        %1072 = vperm.xlu0 %1071, %v807
        %v1073 = vpop.permute.xlu0 %1072
        %v1075 = vlaneseq
        %v1076 = vshrl.u32 %v1075, 7
        %v1077 = vsub.s32 0, %v1076
        %v1078 = vrot.slane %v1010, %v1077
        %v1079 = vmul.f32 %v1013, %v1078
        %v1080 = vmul.f32 %v1017, %v1078
        %v1081 = vmul.f32 %v1021, %v1078
        %v1082 = vmul.f32 %v1025, %v1078
        %v1083 = vmul.f32 %v1029, %v1078
        %v1084 = vmul.f32 %v1033, %v1078
        %v1085 = vmul.f32 %v1037, %v1078
        %v1086 = vmul.f32 %v1041, %v1078
        %v1087 = vmul.f32 %v1045, %v1078
        %v1088 = vmul.f32 %v1049, %v1078
        %v1089 = vmul.f32 %v1053, %v1078
        %v1090 = vmul.f32 %v1057, %v1078
        %v1091 = vmul.f32 %v1061, %v1078
        %v1092 = vmul.f32 %v1065, %v1078
        %v1093 = vmul.f32 %v1069, %v1078
        %v1094 = vmul.f32 %v1073, %v1078
        %v1095 = vadd.f32 %v994, %v1079
        %v1096 = vadd.f32 %v995, %v1080
        %v1097 = vadd.f32 %v996, %v1081
        %v1098 = vadd.f32 %v997, %v1082
        %v1099 = vadd.f32 %v998, %v1083
        %v1100 = vadd.f32 %v999, %v1084
        %v1101 = vadd.f32 %v1000, %v1085
        %v1102 = vadd.f32 %v1001, %v1086
        %v1103 = vadd.f32 %v1002, %v1087
        %v1104 = vadd.f32 %v1003, %v1088
        %v1105 = vadd.f32 %v1004, %v1089
        %v1106 = vadd.f32 %v1005, %v1090
        %v1107 = vadd.f32 %v1006, %v1091
        %v1108 = vadd.f32 %v1007, %v1092
        %v1109 = vadd.f32 %v1008, %v1093
        %v1110 = vadd.f32 %v1009, %v1094
        %v1111 = vld [vmem:[#allocation4] sm:$0x1]
        %v1113 = vlaneseq
        %v1114 = vshrl.u32 %v1113, 7
        %v1115 = vsub.s32 0, %v1114
        %v1116 = vrot.slane %v1111, %v1115
        %v1118 = vmul.f32 %v1095, %v1116
        %v1119 = vmul.f32 %v1096, %v1116
        %v1120 = vmul.f32 %v1097, %v1116
        %v1121 = vmul.f32 %v1098, %v1116
        %v1122 = vmul.f32 %v1099, %v1116
        %v1123 = vmul.f32 %v1100, %v1116
        %v1124 = vmul.f32 %v1101, %v1116
        %v1125 = vmul.f32 %v1102, %v1116
        %v1126 = vmul.f32 %v1103, %v1116
        %v1127 = vmul.f32 %v1104, %v1116
        %v1128 = vmul.f32 %v1105, %v1116
        %v1129 = vmul.f32 %v1106, %v1116
        %v1130 = vmul.f32 %v1107, %v1116
        %v1131 = vmul.f32 %v1108, %v1116
        %v1132 = vmul.f32 %v1109, %v1116
        %v1133 = vmul.f32 %v1110, %v1116
        %v1134 = vld [vmem:[#allocation7] sm:$0x1]
        %v1136 = vlaneseq
        %v1137 = vshrl.u32 %v1136, 7
        %v1138 = vsub.s32 0, %v1137
        %v1139 = vrot.slane %v1134, %v1138
        %v1141 = vadd.f32 %v1118, %v1139
        %v1142 = vadd.f32 %v1119, %v1139
        %v1143 = vadd.f32 %v1120, %v1139
        %v1144 = vadd.f32 %v1121, %v1139
        %v1145 = vadd.f32 %v1122, %v1139
        %v1146 = vadd.f32 %v1123, %v1139
        %v1147 = vadd.f32 %v1124, %v1139
        %v1148 = vadd.f32 %v1125, %v1139
        %v1149 = vadd.f32 %v1126, %v1139
        %v1150 = vadd.f32 %v1127, %v1139
        %v1151 = vadd.f32 %v1128, %v1139
        %v1152 = vadd.f32 %v1129, %v1139
        %v1153 = vadd.f32 %v1130, %v1139
        %v1154 = vadd.f32 %v1131, %v1139
        %v1155 = vadd.f32 %v1132, %v1139
        %v1156 = vadd.f32 %v1133, %v1139
        %v1157 = vmax.f32 %v1141, 0.0
        %v1158 = vmax.f32 %v1142, 0.0
        %v1159 = vmax.f32 %v1143, 0.0
        %v1160 = vmax.f32 %v1144, 0.0
        %v1161 = vmax.f32 %v1145, 0.0
        %v1162 = vmax.f32 %v1146, 0.0
        %v1163 = vmax.f32 %v1147, 0.0
        %v1164 = vmax.f32 %v1148, 0.0
        %v1165 = vmax.f32 %v1149, 0.0
        %v1166 = vmax.f32 %v1150, 0.0
        %v1167 = vmax.f32 %v1151, 0.0
        %v1168 = vmax.f32 %v1152, 0.0
        %v1169 = vmax.f32 %v1153, 0.0
        %v1170 = vmax.f32 %v1154, 0.0
        %v1171 = vmax.f32 %v1155, 0.0
        %v1172 = vmax.f32 %v1156, 0.0
        %v1173 = vpack.c.bf16 %v1158, %v1157
        %v1174 = vpack.c.bf16 %v1160, %v1159
        %v1175 = vpack.c.bf16 %v1162, %v1161
        %v1176 = vpack.c.bf16 %v1164, %v1163
        %v1177 = vpack.c.bf16 %v1166, %v1165
        %v1178 = vpack.c.bf16 %v1168, %v1167
        %v1179 = vpack.c.bf16 %v1170, %v1169
        %v1180 = vpack.c.bf16 %v1172, %v1171
        %v1181 = vld [vmem:[#allocation9] sm:$0xf]
        %v1182 = vld [vmem:[#allocation9 + $0x4] sm:$0xf]
        %v1183 = vld [vmem:[#allocation9 + $0x8] sm:$0xf]
        %v1184 = vld [vmem:[#allocation9 + $0xc] sm:$0xf]
        %v1185 = vld [vmem:[#allocation9 + $0x10] sm:$0xf]
        %v1186 = vld [vmem:[#allocation9 + $0x14] sm:$0xf]
        %v1187 = vld [vmem:[#allocation9 + $0x18] sm:$0xf]
        %v1188 = vld [vmem:[#allocation9 + $0x1c] sm:$0xf]
        %v1197 = vunpack.c.l.b16 %v1181
        %v1198 = vunpack.c.l.b16 %v1182
        %v1199 = vunpack.c.l.b16 %v1183
        %v1200 = vunpack.c.l.b16 %v1184
        %v1201 = vunpack.c.l.b16 %v1185
        %v1202 = vunpack.c.l.b16 %v1186
        %v1203 = vunpack.c.l.b16 %v1187
        %v1204 = vunpack.c.l.b16 %v1188
        %v1205 = vpack.c.b16 %v1198, %v1197
        %v1206 = vpack.c.b16 %v1200, %v1199
        %v1207 = vpack.c.b16 %v1202, %v1201
        %v1208 = vpack.c.b16 %v1204, %v1203
        %vm1213 = vcmask 523264
        %v1215 = vsel %vm1213, %v1173, 0
        %v1218 = vsel %vm1213, %v1174, 0
        %v1221 = vsel %vm1213, %v1175, 0
        %v1224 = vsel %vm1213, %v1176, 0
        %v1227 = vsel %vm1213, %v1177, 0
        %v1230 = vsel %vm1213, %v1178, 0
        %v1233 = vsel %vm1213, %v1179, 0
        %v1236 = vsel %vm1213, %v1180, 0
        %1238 = vmatprep.subr.bf16.mxu0 0
        %1239 = vmatpush1.bf16.msra.mxu0 0
        %1240 = vmatprep.subr.bf16.mxu0 0
        %1241 = vmatpush1.bf16.msra.mxu0 0
        %1242 = vmatprep.subr.bf16.mxu0 0
        %1243 = vmatpush1.bf16.msra.mxu0 0
        %1244 = vmatprep.subr.bf16.mxu0 0
        %1245 = vmatpush1.bf16.msra.mxu0 0
        %1246 = vmatprep.subr.bf16.mxu0 0
        %1247 = vmatpush1.bf16.msra.mxu0 %v1208
        %1248 = vmatprep.subr.bf16.mxu0 0
        %1249 = vmatpush1.bf16.msra.mxu0 %v1207
        %1250 = vmatprep.subr.bf16.mxu0 0
        %1251 = vmatpush1.bf16.msra.mxu0 %v1206
        %1252 = vmatprep.subr.bf16.mxu0 0
        %1253 = vmatpush1.bf16.msra.mxu0 %v1205
        %1254 = vmatprep.subr.bf16.mxu0 0
        %1255 = vmatpush2.bf16.msra.mxu0 0
        %1256 = vmatprep.subr.bf16.mxu0 0
        %1257 = vmatpush2.bf16.msra.mxu0 0
        %1258 = vmatprep.subr.bf16.mxu0 0
        %1259 = vmatpush2.bf16.msra.mxu0 0
        %1260 = vmatprep.subr.bf16.mxu0 0
        %1261 = vmatpush2.bf16.msra.mxu0 0
        %1262 = vmatprep.subr.bf16.mxu0 0
        %1263 = vmatpush2.bf16.msra.mxu0 0
        %1264 = vmatprep.subr.bf16.mxu0 0
        %1265 = vmatpush2.bf16.msra.mxu0 0
        %1266 = vmatprep.subr.bf16.mxu0 0
        %1267 = vmatpush2.bf16.msra.mxu0 0
        %1268 = vmatprep.subr.bf16.mxu0 0
        %1269 = vmatpush2.bf16.msra.mxu0 0
        %1270 = vmatprep.mubr.bf16.mxu0 0
        %1271 = vmatmul.mubr.bf16.gmra.mxu0 %v1215
        %v1272 = vpop.f32.mrf.mxu0
        %v1273 = vadd.f32 0.0, %v1272
        %v1274 = vpop.f32.mrf.mxu0
        %v1275 = vpop.f32.mrf.mxu0
        %v1276 = vadd.f32 0.0, %v1275
        %v1277 = vpop.f32.mrf.mxu0
        %1278 = vmatprep.mubr.bf16.mxu0 0
        %1279 = vmatmul.mubr.bf16.gmra.mxu0 %v1218
        %v1280 = vpop.f32.mrf.mxu0
        %v1281 = vadd.f32 0.0, %v1280
        %v1282 = vpop.f32.mrf.mxu0
        %v1283 = vpop.f32.mrf.mxu0
        %v1284 = vadd.f32 0.0, %v1283
        %v1285 = vpop.f32.mrf.mxu0
        %1286 = vmatprep.mubr.bf16.mxu0 0
        %1287 = vmatmul.mubr.bf16.gmra.mxu0 %v1221
        %v1288 = vpop.f32.mrf.mxu0
        %v1289 = vadd.f32 0.0, %v1288
        %v1290 = vpop.f32.mrf.mxu0
        %v1291 = vpop.f32.mrf.mxu0
        %v1292 = vadd.f32 0.0, %v1291
        %v1293 = vpop.f32.mrf.mxu0
        %1294 = vmatprep.mubr.bf16.mxu0 0
        %1295 = vmatmul.mubr.bf16.gmra.mxu0 %v1224
        %v1296 = vpop.f32.mrf.mxu0
        %v1297 = vadd.f32 0.0, %v1296
        %v1298 = vpop.f32.mrf.mxu0
        %v1299 = vpop.f32.mrf.mxu0
        %v1300 = vadd.f32 0.0, %v1299
        %v1301 = vpop.f32.mrf.mxu0
        %1302 = vmatprep.mubr.bf16.mxu0 0
        %1303 = vmatmul.mubr.bf16.gmra.mxu0 %v1227
        %v1304 = vpop.f32.mrf.mxu0
        %v1305 = vadd.f32 0.0, %v1304
        %v1306 = vpop.f32.mrf.mxu0
        %v1307 = vpop.f32.mrf.mxu0
        %v1308 = vadd.f32 0.0, %v1307
        %v1309 = vpop.f32.mrf.mxu0
        %1310 = vmatprep.mubr.bf16.mxu0 0
        %1311 = vmatmul.mubr.bf16.gmra.mxu0 %v1230
        %v1312 = vpop.f32.mrf.mxu0
        %v1313 = vadd.f32 0.0, %v1312
        %v1314 = vpop.f32.mrf.mxu0
        %v1315 = vpop.f32.mrf.mxu0
        %v1316 = vadd.f32 0.0, %v1315
        %v1317 = vpop.f32.mrf.mxu0
        %1318 = vmatprep.mubr.bf16.mxu0 0
        %1319 = vmatmul.mubr.bf16.gmra.mxu0 %v1233
        %v1320 = vpop.f32.mrf.mxu0
        %v1321 = vadd.f32 0.0, %v1320
        %v1322 = vpop.f32.mrf.mxu0
        %v1323 = vpop.f32.mrf.mxu0
        %v1324 = vadd.f32 0.0, %v1323
        %v1325 = vpop.f32.mrf.mxu0
        %1326 = vmatprep.mubr.bf16.mxu0 0
        %1327 = vmatmul.mubr.bf16.gmra.mxu0 %v1236
        %v1328 = vpop.f32.mrf.mxu0
        %v1329 = vadd.f32 0.0, %v1328
        %v1330 = vpop.f32.mrf.mxu0
        %v1331 = vpop.f32.mrf.mxu0
        %v1332 = vadd.f32 0.0, %v1331
        %v1333 = vpop.f32.mrf.mxu0
        %1334 = vdwg.mxu0
        %v1335 = vld [vmem:[#allocation10] sm:$0x1]
        %v1337 = vlaneseq
        %v1338 = vshrl.u32 %v1337, 7
        %v1339 = vsub.s32 0, %v1338
        %v1340 = vrot.slane %v1335, %v1339
        %v1342 = vmul.f32 %v1273, %v1340
        %v1343 = vmul.f32 %v1276, %v1340
        %v1344 = vmul.f32 %v1281, %v1340
        %v1345 = vmul.f32 %v1284, %v1340
        %v1346 = vmul.f32 %v1289, %v1340
        %v1347 = vmul.f32 %v1292, %v1340
        %v1348 = vmul.f32 %v1297, %v1340
        %v1349 = vmul.f32 %v1300, %v1340
        %v1350 = vmul.f32 %v1305, %v1340
        %v1351 = vmul.f32 %v1308, %v1340
        %v1352 = vmul.f32 %v1313, %v1340
        %v1353 = vmul.f32 %v1316, %v1340
        %v1354 = vmul.f32 %v1321, %v1340
        %v1355 = vmul.f32 %v1324, %v1340
        %v1356 = vmul.f32 %v1329, %v1340
        %v1357 = vmul.f32 %v1332, %v1340
        %v1358 = vld [vmem:[#allocation12] sm:$0x1]
        %v1360 = vlaneseq
        %v1361 = vshrl.u32 %v1360, 7
        %v1362 = vsub.s32 0, %v1361
        %v1363 = vrot.slane %v1358, %v1362
        %v1365 = vadd.f32 %v1342, %v1363
        %v1366 = vadd.f32 %v1343, %v1363
        %v1367 = vadd.f32 %v1344, %v1363
        %v1368 = vadd.f32 %v1345, %v1363
        %v1369 = vadd.f32 %v1346, %v1363
        %v1370 = vadd.f32 %v1347, %v1363
        %v1371 = vadd.f32 %v1348, %v1363
        %v1372 = vadd.f32 %v1349, %v1363
        %v1373 = vadd.f32 %v1350, %v1363
        %v1374 = vadd.f32 %v1351, %v1363
        %v1375 = vadd.f32 %v1352, %v1363
        %v1376 = vadd.f32 %v1353, %v1363
        %v1377 = vadd.f32 %v1354, %v1363
        %v1378 = vadd.f32 %v1355, %v1363
        %v1379 = vadd.f32 %v1356, %v1363
        %v1380 = vadd.f32 %v1357, %v1363
        %v1381 = vmax.f32 %v1365, 0.0
        %v1382 = vmax.f32 %v1366, 0.0
        %v1383 = vmax.f32 %v1367, 0.0
        %v1384 = vmax.f32 %v1368, 0.0
        %v1385 = vmax.f32 %v1369, 0.0
        %v1386 = vmax.f32 %v1370, 0.0
        %v1387 = vmax.f32 %v1371, 0.0
        %v1388 = vmax.f32 %v1372, 0.0
        %v1389 = vmax.f32 %v1373, 0.0
        %v1390 = vmax.f32 %v1374, 0.0
        %v1391 = vmax.f32 %v1375, 0.0
        %v1392 = vmax.f32 %v1376, 0.0
        %v1393 = vmax.f32 %v1377, 0.0
        %v1394 = vmax.f32 %v1378, 0.0
        %v1395 = vmax.f32 %v1379, 0.0
        %v1396 = vmax.f32 %v1380, 0.0
        %v1397 = vpack.c.bf16 %v1382, %v1381
        %v1398 = vpack.c.bf16 %v1384, %v1383
        %v1399 = vpack.c.bf16 %v1386, %v1385
        %v1400 = vpack.c.bf16 %v1388, %v1387
        %v1401 = vpack.c.bf16 %v1390, %v1389
        %v1402 = vpack.c.bf16 %v1392, %v1391
        %v1403 = vpack.c.bf16 %v1394, %v1393
        %v1404 = vpack.c.bf16 %v1396, %v1395
        %v1405 = vld [vmem:[%s7] sm:$0xff]
        %v1406 = vld [vmem:[%s7 + $0x8] sm:$0xff]
        %v1407 = vld [vmem:[%s7 + $0x10] sm:$0xff]
        %v1408 = vld [vmem:[%s7 + $0x18] sm:$0xff]
        %v1409 = vld [vmem:[%s7 + $0x20] sm:$0xff]
        %v1410 = vld [vmem:[%s7 + $0x28] sm:$0xff]
        %v1411 = vld [vmem:[%s7 + $0x30] sm:$0xff]
        %v1412 = vld [vmem:[%s7 + $0x38] sm:$0xff]
        %v1413 = vld [vmem:[%s7 + $0x40] sm:$0xff]
        %v1414 = vld [vmem:[%s7 + $0x48] sm:$0xff]
        %v1415 = vld [vmem:[%s7 + $0x50] sm:$0xff]
        %v1416 = vld [vmem:[%s7 + $0x58] sm:$0xff]
        %v1417 = vld [vmem:[%s7 + $0x60] sm:$0xff]
        %v1418 = vld [vmem:[%s7 + $0x68] sm:$0xff]
        %v1419 = vld [vmem:[%s7 + $0x70] sm:$0xff]
        %v1420 = vld [vmem:[%s7 + $0x78] sm:$0xff]
        %v1421 = vld [vmem:[%s7 + $0x80] sm:$0xff]
        %v1422 = vld [vmem:[%s7 + $0x88] sm:$0xff]
        %v1423 = vld [vmem:[%s7 + $0x90] sm:$0xff]
        %v1424 = vld [vmem:[%s7 + $0x98] sm:$0xff]
        %v1425 = vld [vmem:[%s7 + $0xa0] sm:$0xff]
        %v1426 = vld [vmem:[%s7 + $0xa8] sm:$0xff]
        %v1427 = vld [vmem:[%s7 + $0xb0] sm:$0xff]
        %v1428 = vld [vmem:[%s7 + $0xb8] sm:$0xff]
        %v1429 = vld [vmem:[%s7 + $0xc0] sm:$0xff]
        %v1430 = vld [vmem:[%s7 + $0xc8] sm:$0xff]
        %v1431 = vld [vmem:[%s7 + $0xd0] sm:$0xff]
        %v1432 = vld [vmem:[%s7 + $0xd8] sm:$0xff]
        %v1433 = vld [vmem:[%s7 + $0xe0] sm:$0xff]
        %v1434 = vld [vmem:[%s7 + $0xe8] sm:$0xff]
        %v1435 = vld [vmem:[%s7 + $0xf0] sm:$0xff]
        %v1436 = vld [vmem:[%s7 + $0xf8] sm:$0xff]
        %v1437 = vld [vmem:[%s7 + $0x100] sm:$0xff]
        %v1438 = vld [vmem:[%s7 + $0x108] sm:$0xff]
        %v1439 = vld [vmem:[%s7 + $0x110] sm:$0xff]
        %v1440 = vld [vmem:[%s7 + $0x118] sm:$0xff]
        %v1441 = vld [vmem:[%s7 + $0x120] sm:$0xff]
        %v1442 = vld [vmem:[%s7 + $0x128] sm:$0xff]
        %v1443 = vld [vmem:[%s7 + $0x130] sm:$0xff]
        %v1444 = vld [vmem:[%s7 + $0x138] sm:$0xff]
        %v1445 = vld [vmem:[%s7 + $0x140] sm:$0xff]
        %v1446 = vld [vmem:[%s7 + $0x148] sm:$0xff]
        %v1447 = vld [vmem:[%s7 + $0x150] sm:$0xff]
        %v1448 = vld [vmem:[%s7 + $0x158] sm:$0xff]
        %v1449 = vld [vmem:[%s7 + $0x160] sm:$0xff]
        %v1450 = vld [vmem:[%s7 + $0x168] sm:$0xff]
        %v1451 = vld [vmem:[%s7 + $0x170] sm:$0xff]
        %v1452 = vld [vmem:[%s7 + $0x178] sm:$0xff]
        %v1453 = vld [vmem:[%s7 + $0x180] sm:$0xff]
        %v1454 = vld [vmem:[%s7 + $0x188] sm:$0xff]
        %v1455 = vld [vmem:[%s7 + $0x190] sm:$0xff]
        %v1456 = vld [vmem:[%s7 + $0x198] sm:$0xff]
        %v1457 = vld [vmem:[%s7 + $0x1a0] sm:$0xff]
        %v1458 = vld [vmem:[%s7 + $0x1a8] sm:$0xff]
        %v1459 = vld [vmem:[%s7 + $0x1b0] sm:$0xff]
        %v1460 = vld [vmem:[%s7 + $0x1b8] sm:$0xff]
        %v1461 = vld [vmem:[%s7 + $0x1c0] sm:$0xff]
        %v1462 = vld [vmem:[%s7 + $0x1c8] sm:$0xff]
        %v1463 = vld [vmem:[%s7 + $0x1d0] sm:$0xff]
        %v1464 = vld [vmem:[%s7 + $0x1d8] sm:$0xff]
        %v1465 = vld [vmem:[%s7 + $0x1e0] sm:$0xff]
        %v1466 = vld [vmem:[%s7 + $0x1e8] sm:$0xff]
        %v1467 = vld [vmem:[%s7 + $0x1f0] sm:$0xff]
        %v1468 = vld [vmem:[%s7 + $0x1f8] sm:$0xff]
        %v1533 = vunpack.c.l.b16 %v1405
        %v1534 = vunpack.c.h.b16 %v1405
        %v1535 = vunpack.c.l.b16 %v1406
        %v1536 = vunpack.c.h.b16 %v1406
        %v1537 = vunpack.c.l.b16 %v1407
        %v1538 = vunpack.c.h.b16 %v1407
        %v1539 = vunpack.c.l.b16 %v1408
        %v1540 = vunpack.c.h.b16 %v1408
        %v1541 = vunpack.c.l.b16 %v1409
        %v1542 = vunpack.c.h.b16 %v1409
        %v1543 = vunpack.c.l.b16 %v1410
        %v1544 = vunpack.c.h.b16 %v1410
        %v1545 = vunpack.c.l.b16 %v1411
        %v1546 = vunpack.c.h.b16 %v1411
        %v1547 = vunpack.c.l.b16 %v1412
        %v1548 = vunpack.c.h.b16 %v1412
        %v1549 = vunpack.c.l.b16 %v1413
        %v1550 = vunpack.c.h.b16 %v1413
        %v1551 = vunpack.c.l.b16 %v1414
        %v1552 = vunpack.c.h.b16 %v1414
        %v1553 = vunpack.c.l.b16 %v1415
        %v1554 = vunpack.c.h.b16 %v1415
        %v1555 = vunpack.c.l.b16 %v1416
        %v1556 = vunpack.c.h.b16 %v1416
        %v1557 = vunpack.c.l.b16 %v1417
        %v1558 = vunpack.c.h.b16 %v1417
        %v1559 = vunpack.c.l.b16 %v1418
        %v1560 = vunpack.c.h.b16 %v1418
        %v1561 = vunpack.c.l.b16 %v1419
        %v1562 = vunpack.c.h.b16 %v1419
        %v1563 = vunpack.c.l.b16 %v1420
        %v1564 = vunpack.c.h.b16 %v1420
        %v1565 = vunpack.c.l.b16 %v1421
        %v1566 = vunpack.c.h.b16 %v1421
        %v1567 = vunpack.c.l.b16 %v1422
        %v1568 = vunpack.c.h.b16 %v1422
        %v1569 = vunpack.c.l.b16 %v1423
        %v1570 = vunpack.c.h.b16 %v1423
        %v1571 = vunpack.c.l.b16 %v1424
        %v1572 = vunpack.c.h.b16 %v1424
        %v1573 = vunpack.c.l.b16 %v1425
        %v1574 = vunpack.c.h.b16 %v1425
        %v1575 = vunpack.c.l.b16 %v1426
        %v1576 = vunpack.c.h.b16 %v1426
        %v1577 = vunpack.c.l.b16 %v1427
        %v1578 = vunpack.c.h.b16 %v1427
        %v1579 = vunpack.c.l.b16 %v1428
        %v1580 = vunpack.c.h.b16 %v1428
        %v1581 = vunpack.c.l.b16 %v1429
        %v1582 = vunpack.c.h.b16 %v1429
        %v1583 = vunpack.c.l.b16 %v1430
        %v1584 = vunpack.c.h.b16 %v1430
        %v1585 = vunpack.c.l.b16 %v1431
        %v1586 = vunpack.c.h.b16 %v1431
        %v1587 = vunpack.c.l.b16 %v1432
        %v1588 = vunpack.c.h.b16 %v1432
        %v1589 = vunpack.c.l.b16 %v1433
        %v1590 = vunpack.c.h.b16 %v1433
        %v1591 = vunpack.c.l.b16 %v1434
        %v1592 = vunpack.c.h.b16 %v1434
        %v1593 = vunpack.c.l.b16 %v1435
        %v1594 = vunpack.c.h.b16 %v1435
        %v1595 = vunpack.c.l.b16 %v1436
        %v1596 = vunpack.c.h.b16 %v1436
        %v1597 = vunpack.c.l.b16 %v1437
        %v1598 = vunpack.c.h.b16 %v1437
        %v1599 = vunpack.c.l.b16 %v1438
        %v1600 = vunpack.c.h.b16 %v1438
        %v1601 = vunpack.c.l.b16 %v1439
        %v1602 = vunpack.c.h.b16 %v1439
        %v1603 = vunpack.c.l.b16 %v1440
        %v1604 = vunpack.c.h.b16 %v1440
        %v1605 = vunpack.c.l.b16 %v1441
        %v1606 = vunpack.c.h.b16 %v1441
        %v1607 = vunpack.c.l.b16 %v1442
        %v1608 = vunpack.c.h.b16 %v1442
        %v1609 = vunpack.c.l.b16 %v1443
        %v1610 = vunpack.c.h.b16 %v1443
        %v1611 = vunpack.c.l.b16 %v1444
        %v1612 = vunpack.c.h.b16 %v1444
        %v1613 = vunpack.c.l.b16 %v1445
        %v1614 = vunpack.c.h.b16 %v1445
        %v1615 = vunpack.c.l.b16 %v1446
        %v1616 = vunpack.c.h.b16 %v1446
        %v1617 = vunpack.c.l.b16 %v1447
        %v1618 = vunpack.c.h.b16 %v1447
        %v1619 = vunpack.c.l.b16 %v1448
        %v1620 = vunpack.c.h.b16 %v1448
        %v1621 = vunpack.c.l.b16 %v1449
        %v1622 = vunpack.c.h.b16 %v1449
        %v1623 = vunpack.c.l.b16 %v1450
        %v1624 = vunpack.c.h.b16 %v1450
        %v1625 = vunpack.c.l.b16 %v1451
        %v1626 = vunpack.c.h.b16 %v1451
        %v1627 = vunpack.c.l.b16 %v1452
        %v1628 = vunpack.c.h.b16 %v1452
        %v1629 = vunpack.c.l.b16 %v1453
        %v1630 = vunpack.c.h.b16 %v1453
        %v1631 = vunpack.c.l.b16 %v1454
        %v1632 = vunpack.c.h.b16 %v1454
        %v1633 = vunpack.c.l.b16 %v1455
        %v1634 = vunpack.c.h.b16 %v1455
        %v1635 = vunpack.c.l.b16 %v1456
        %v1636 = vunpack.c.h.b16 %v1456
        %v1637 = vunpack.c.l.b16 %v1457
        %v1638 = vunpack.c.h.b16 %v1457
        %v1639 = vunpack.c.l.b16 %v1458
        %v1640 = vunpack.c.h.b16 %v1458
        %v1641 = vunpack.c.l.b16 %v1459
        %v1642 = vunpack.c.h.b16 %v1459
        %v1643 = vunpack.c.l.b16 %v1460
        %v1644 = vunpack.c.h.b16 %v1460
        %v1645 = vunpack.c.l.b16 %v1461
        %v1646 = vunpack.c.h.b16 %v1461
        %v1647 = vunpack.c.l.b16 %v1462
        %v1648 = vunpack.c.h.b16 %v1462
        %v1649 = vunpack.c.l.b16 %v1463
        %v1650 = vunpack.c.h.b16 %v1463
        %v1651 = vunpack.c.l.b16 %v1464
        %v1652 = vunpack.c.h.b16 %v1464
        %v1653 = vunpack.c.l.b16 %v1465
        %v1654 = vunpack.c.h.b16 %v1465
        %v1655 = vunpack.c.l.b16 %v1466
        %v1656 = vunpack.c.h.b16 %v1466
        %v1657 = vunpack.c.l.b16 %v1467
        %v1658 = vunpack.c.h.b16 %v1467
        %v1659 = vunpack.c.l.b16 %v1468
        %v1660 = vunpack.c.h.b16 %v1468
        %v1661 = vpack.c.b16 %v1541, %v1533
        %v1662 = vpack.c.b16 %v1542, %v1534
        %v1663 = vpack.c.b16 %v1543, %v1535
        %v1664 = vpack.c.b16 %v1544, %v1536
        %v1665 = vpack.c.b16 %v1545, %v1537
        %v1666 = vpack.c.b16 %v1546, %v1538
        %v1667 = vpack.c.b16 %v1547, %v1539
        %v1668 = vpack.c.b16 %v1548, %v1540
        %v1669 = vpack.c.b16 %v1557, %v1549
        %v1670 = vpack.c.b16 %v1558, %v1550
        %v1671 = vpack.c.b16 %v1559, %v1551
        %v1672 = vpack.c.b16 %v1560, %v1552
        %v1673 = vpack.c.b16 %v1561, %v1553
        %v1674 = vpack.c.b16 %v1562, %v1554
        %v1675 = vpack.c.b16 %v1563, %v1555
        %v1676 = vpack.c.b16 %v1564, %v1556
        %v1677 = vpack.c.b16 %v1573, %v1565
        %v1678 = vpack.c.b16 %v1574, %v1566
        %v1679 = vpack.c.b16 %v1575, %v1567
        %v1680 = vpack.c.b16 %v1576, %v1568
        %v1681 = vpack.c.b16 %v1577, %v1569
        %v1682 = vpack.c.b16 %v1578, %v1570
        %v1683 = vpack.c.b16 %v1579, %v1571
        %v1684 = vpack.c.b16 %v1580, %v1572
        %v1685 = vpack.c.b16 %v1589, %v1581
        %v1686 = vpack.c.b16 %v1590, %v1582
        %v1687 = vpack.c.b16 %v1591, %v1583
        %v1688 = vpack.c.b16 %v1592, %v1584
        %v1689 = vpack.c.b16 %v1593, %v1585
        %v1690 = vpack.c.b16 %v1594, %v1586
        %v1691 = vpack.c.b16 %v1595, %v1587
        %v1692 = vpack.c.b16 %v1596, %v1588
        %v1693 = vpack.c.b16 %v1605, %v1597
        %v1694 = vpack.c.b16 %v1606, %v1598
        %v1695 = vpack.c.b16 %v1607, %v1599
        %v1696 = vpack.c.b16 %v1608, %v1600
        %v1697 = vpack.c.b16 %v1609, %v1601
        %v1698 = vpack.c.b16 %v1610, %v1602
        %v1699 = vpack.c.b16 %v1611, %v1603
        %v1700 = vpack.c.b16 %v1612, %v1604
        %v1701 = vpack.c.b16 %v1621, %v1613
        %v1702 = vpack.c.b16 %v1622, %v1614
        %v1703 = vpack.c.b16 %v1623, %v1615
        %v1704 = vpack.c.b16 %v1624, %v1616
        %v1705 = vpack.c.b16 %v1625, %v1617
        %v1706 = vpack.c.b16 %v1626, %v1618
        %v1707 = vpack.c.b16 %v1627, %v1619
        %v1708 = vpack.c.b16 %v1628, %v1620
        %v1709 = vpack.c.b16 %v1637, %v1629
        %v1710 = vpack.c.b16 %v1638, %v1630
        %v1711 = vpack.c.b16 %v1639, %v1631
        %v1712 = vpack.c.b16 %v1640, %v1632
        %v1713 = vpack.c.b16 %v1641, %v1633
        %v1714 = vpack.c.b16 %v1642, %v1634
        %v1715 = vpack.c.b16 %v1643, %v1635
        %v1716 = vpack.c.b16 %v1644, %v1636
        %v1717 = vpack.c.b16 %v1653, %v1645
        %v1718 = vpack.c.b16 %v1654, %v1646
        %v1719 = vpack.c.b16 %v1655, %v1647
        %v1720 = vpack.c.b16 %v1656, %v1648
        %v1721 = vpack.c.b16 %v1657, %v1649
        %v1722 = vpack.c.b16 %v1658, %v1650
        %v1723 = vpack.c.b16 %v1659, %v1651
        %v1724 = vpack.c.b16 %v1660, %v1652
        %1789 = vmatprep.subr.bf16.mxu0 %v1718
        %1790 = vmatpush1.bf16.msra.mxu0 %v1717
        %1791 = vmatprep.subr.bf16.mxu0 %v1710
        %1792 = vmatpush1.bf16.msra.mxu0 %v1709
        %1793 = vmatprep.subr.bf16.mxu0 %v1702
        %1794 = vmatpush1.bf16.msra.mxu0 %v1701
        %1795 = vmatprep.subr.bf16.mxu0 %v1694
        %1796 = vmatpush1.bf16.msra.mxu0 %v1693
        %1797 = vmatprep.subr.bf16.mxu0 %v1686
        %1798 = vmatpush1.bf16.msra.mxu0 %v1685
        %1799 = vmatprep.subr.bf16.mxu0 %v1678
        %1800 = vmatpush1.bf16.msra.mxu0 %v1677
        %1801 = vmatprep.subr.bf16.mxu0 %v1670
        %1802 = vmatpush1.bf16.msra.mxu0 %v1669
        %1803 = vmatprep.subr.bf16.mxu0 %v1662
        %1804 = vmatpush1.bf16.msra.mxu0 %v1661
        %1805 = vmatprep.subr.bf16.mxu0 0
        %1806 = vmatpush2.bf16.msra.mxu0 0
        %1807 = vmatprep.subr.bf16.mxu0 0
        %1808 = vmatpush2.bf16.msra.mxu0 0
        %1809 = vmatprep.subr.bf16.mxu0 0
        %1810 = vmatpush2.bf16.msra.mxu0 0
        %1811 = vmatprep.subr.bf16.mxu0 0
        %1812 = vmatpush2.bf16.msra.mxu0 0
        %1813 = vmatprep.subr.bf16.mxu0 0
        %1814 = vmatpush2.bf16.msra.mxu0 0
        %1815 = vmatprep.subr.bf16.mxu0 0
        %1816 = vmatpush2.bf16.msra.mxu0 0
        %1817 = vmatprep.subr.bf16.mxu0 0
        %1818 = vmatpush2.bf16.msra.mxu0 0
        %1819 = vmatprep.subr.bf16.mxu0 0
        %1820 = vmatpush2.bf16.msra.mxu0 0
        %1821 = vmatprep.mubr.bf16.mxu0 0
        %1822 = vmatmul.mubr.bf16.gmra.mxu0 %v1397
        %v1823 = vpop.f32.mrf.mxu0
        %v1824 = vadd.f32 0.0, %v1823
        %v1825 = vpop.f32.mrf.mxu0
        %v1826 = vadd.f32 0.0, %v1825
        %v1827 = vpop.f32.mrf.mxu0
        %v1828 = vadd.f32 0.0, %v1827
        %v1829 = vpop.f32.mrf.mxu0
        %v1830 = vadd.f32 0.0, %v1829
        %1831 = vmatprep.mubr.bf16.mxu0 0
        %1832 = vmatmul.mubr.bf16.gmra.mxu0 %v1398
        %v1833 = vpop.f32.mrf.mxu0
        %v1834 = vadd.f32 0.0, %v1833
        %v1835 = vpop.f32.mrf.mxu0
        %v1836 = vadd.f32 0.0, %v1835
        %v1837 = vpop.f32.mrf.mxu0
        %v1838 = vadd.f32 0.0, %v1837
        %v1839 = vpop.f32.mrf.mxu0
        %v1840 = vadd.f32 0.0, %v1839
        %1841 = vmatprep.mubr.bf16.mxu0 0
        %1842 = vmatmul.mubr.bf16.gmra.mxu0 %v1399
        %v1843 = vpop.f32.mrf.mxu0
        %v1844 = vadd.f32 0.0, %v1843
        %v1845 = vpop.f32.mrf.mxu0
        %v1846 = vadd.f32 0.0, %v1845
        %v1847 = vpop.f32.mrf.mxu0
        %v1848 = vadd.f32 0.0, %v1847
        %v1849 = vpop.f32.mrf.mxu0
        %v1850 = vadd.f32 0.0, %v1849
        %1851 = vmatprep.mubr.bf16.mxu0 0
        %1852 = vmatmul.mubr.bf16.gmra.mxu0 %v1400
        %v1853 = vpop.f32.mrf.mxu0
        %v1854 = vadd.f32 0.0, %v1853
        %v1855 = vpop.f32.mrf.mxu0
        %v1856 = vadd.f32 0.0, %v1855
        %v1857 = vpop.f32.mrf.mxu0
        %v1858 = vadd.f32 0.0, %v1857
        %v1859 = vpop.f32.mrf.mxu0
        %v1860 = vadd.f32 0.0, %v1859
        %1861 = vmatprep.mubr.bf16.mxu0 0
        %1862 = vmatmul.mubr.bf16.gmra.mxu0 %v1401
        %v1863 = vpop.f32.mrf.mxu0
        %v1864 = vadd.f32 0.0, %v1863
        %v1865 = vpop.f32.mrf.mxu0
        %v1866 = vadd.f32 0.0, %v1865
        %v1867 = vpop.f32.mrf.mxu0
        %v1868 = vadd.f32 0.0, %v1867
        %v1869 = vpop.f32.mrf.mxu0
        %v1870 = vadd.f32 0.0, %v1869
        %1871 = vmatprep.mubr.bf16.mxu0 0
        %1872 = vmatmul.mubr.bf16.gmra.mxu0 %v1402
        %v1873 = vpop.f32.mrf.mxu0
        %v1874 = vadd.f32 0.0, %v1873
        %v1875 = vpop.f32.mrf.mxu0
        %v1876 = vadd.f32 0.0, %v1875
        %v1877 = vpop.f32.mrf.mxu0
        %v1878 = vadd.f32 0.0, %v1877
        %v1879 = vpop.f32.mrf.mxu0
        %v1880 = vadd.f32 0.0, %v1879
        %1881 = vmatprep.mubr.bf16.mxu0 0
        %1882 = vmatmul.mubr.bf16.gmra.mxu0 %v1403
        %v1883 = vpop.f32.mrf.mxu0
        %v1884 = vadd.f32 0.0, %v1883
        %v1885 = vpop.f32.mrf.mxu0
        %v1886 = vadd.f32 0.0, %v1885
        %v1887 = vpop.f32.mrf.mxu0
        %v1888 = vadd.f32 0.0, %v1887
        %v1889 = vpop.f32.mrf.mxu0
        %v1890 = vadd.f32 0.0, %v1889
        %1891 = vmatprep.mubr.bf16.mxu0 0
        %1892 = vmatmul.mubr.bf16.gmra.mxu0 %v1404
        %v1893 = vpop.f32.mrf.mxu0
        %v1894 = vadd.f32 0.0, %v1893
        %v1895 = vpop.f32.mrf.mxu0
        %v1896 = vadd.f32 0.0, %v1895
        %v1897 = vpop.f32.mrf.mxu0
        %v1898 = vadd.f32 0.0, %v1897
        %v1899 = vpop.f32.mrf.mxu0
        %v1900 = vadd.f32 0.0, %v1899
        %1901 = vdwg.mxu0
        %1902 = vmatprep.subr.bf16.mxu0 %v1720
        %1903 = vmatpush1.bf16.msra.mxu0 %v1719
        %1904 = vmatprep.subr.bf16.mxu0 %v1712
        %1905 = vmatpush1.bf16.msra.mxu0 %v1711
        %1906 = vmatprep.subr.bf16.mxu0 %v1704
        %1907 = vmatpush1.bf16.msra.mxu0 %v1703
        %1908 = vmatprep.subr.bf16.mxu0 %v1696
        %1909 = vmatpush1.bf16.msra.mxu0 %v1695
        %1910 = vmatprep.subr.bf16.mxu0 %v1688
        %1911 = vmatpush1.bf16.msra.mxu0 %v1687
        %1912 = vmatprep.subr.bf16.mxu0 %v1680
        %1913 = vmatpush1.bf16.msra.mxu0 %v1679
        %1914 = vmatprep.subr.bf16.mxu0 %v1672
        %1915 = vmatpush1.bf16.msra.mxu0 %v1671
        %1916 = vmatprep.subr.bf16.mxu0 %v1664
        %1917 = vmatpush1.bf16.msra.mxu0 %v1663
        %1918 = vmatprep.subr.bf16.mxu0 0
        %1919 = vmatpush2.bf16.msra.mxu0 0
        %1920 = vmatprep.subr.bf16.mxu0 0
        %1921 = vmatpush2.bf16.msra.mxu0 0
        %1922 = vmatprep.subr.bf16.mxu0 0
        %1923 = vmatpush2.bf16.msra.mxu0 0
        %1924 = vmatprep.subr.bf16.mxu0 0
        %1925 = vmatpush2.bf16.msra.mxu0 0
        %1926 = vmatprep.subr.bf16.mxu0 0
        %1927 = vmatpush2.bf16.msra.mxu0 0
        %1928 = vmatprep.subr.bf16.mxu0 0
        %1929 = vmatpush2.bf16.msra.mxu0 0
        %1930 = vmatprep.subr.bf16.mxu0 0
        %1931 = vmatpush2.bf16.msra.mxu0 0
        %1932 = vmatprep.subr.bf16.mxu0 0
        %1933 = vmatpush2.bf16.msra.mxu0 0
        %1934 = vmatprep.mubr.bf16.mxu0 0
        %1935 = vmatmul.mubr.bf16.gmra.mxu0 %v1397
        %v1936 = vpop.f32.mrf.mxu0
        %v1937 = vadd.f32 0.0, %v1936
        %v1938 = vpop.f32.mrf.mxu0
        %v1939 = vadd.f32 0.0, %v1938
        %v1940 = vpop.f32.mrf.mxu0
        %v1941 = vadd.f32 0.0, %v1940
        %v1942 = vpop.f32.mrf.mxu0
        %v1943 = vadd.f32 0.0, %v1942
        %1944 = vmatprep.mubr.bf16.mxu0 0
        %1945 = vmatmul.mubr.bf16.gmra.mxu0 %v1398
        %v1946 = vpop.f32.mrf.mxu0
        %v1947 = vadd.f32 0.0, %v1946
        %v1948 = vpop.f32.mrf.mxu0
        %v1949 = vadd.f32 0.0, %v1948
        %v1950 = vpop.f32.mrf.mxu0
        %v1951 = vadd.f32 0.0, %v1950
        %v1952 = vpop.f32.mrf.mxu0
        %v1953 = vadd.f32 0.0, %v1952
        %1954 = vmatprep.mubr.bf16.mxu0 0
        %1955 = vmatmul.mubr.bf16.gmra.mxu0 %v1399
        %v1956 = vpop.f32.mrf.mxu0
        %v1957 = vadd.f32 0.0, %v1956
        %v1958 = vpop.f32.mrf.mxu0
        %v1959 = vadd.f32 0.0, %v1958
        %v1960 = vpop.f32.mrf.mxu0
        %v1961 = vadd.f32 0.0, %v1960
        %v1962 = vpop.f32.mrf.mxu0
        %v1963 = vadd.f32 0.0, %v1962
        %1964 = vmatprep.mubr.bf16.mxu0 0
        %1965 = vmatmul.mubr.bf16.gmra.mxu0 %v1400
        %v1966 = vpop.f32.mrf.mxu0
        %v1967 = vadd.f32 0.0, %v1966
        %v1968 = vpop.f32.mrf.mxu0
        %v1969 = vadd.f32 0.0, %v1968
        %v1970 = vpop.f32.mrf.mxu0
        %v1971 = vadd.f32 0.0, %v1970
        %v1972 = vpop.f32.mrf.mxu0
        %v1973 = vadd.f32 0.0, %v1972
        %1974 = vmatprep.mubr.bf16.mxu0 0
        %1975 = vmatmul.mubr.bf16.gmra.mxu0 %v1401
        %v1976 = vpop.f32.mrf.mxu0
        %v1977 = vadd.f32 0.0, %v1976
        %v1978 = vpop.f32.mrf.mxu0
        %v1979 = vadd.f32 0.0, %v1978
        %v1980 = vpop.f32.mrf.mxu0
        %v1981 = vadd.f32 0.0, %v1980
        %v1982 = vpop.f32.mrf.mxu0
        %v1983 = vadd.f32 0.0, %v1982
        %1984 = vmatprep.mubr.bf16.mxu0 0
        %1985 = vmatmul.mubr.bf16.gmra.mxu0 %v1402
        %v1986 = vpop.f32.mrf.mxu0
        %v1987 = vadd.f32 0.0, %v1986
        %v1988 = vpop.f32.mrf.mxu0
        %v1989 = vadd.f32 0.0, %v1988
        %v1990 = vpop.f32.mrf.mxu0
        %v1991 = vadd.f32 0.0, %v1990
        %v1992 = vpop.f32.mrf.mxu0
        %v1993 = vadd.f32 0.0, %v1992
        %1994 = vmatprep.mubr.bf16.mxu0 0
        %1995 = vmatmul.mubr.bf16.gmra.mxu0 %v1403
        %v1996 = vpop.f32.mrf.mxu0
        %v1997 = vadd.f32 0.0, %v1996
        %v1998 = vpop.f32.mrf.mxu0
        %v1999 = vadd.f32 0.0, %v1998
        %v2000 = vpop.f32.mrf.mxu0
        %v2001 = vadd.f32 0.0, %v2000
        %v2002 = vpop.f32.mrf.mxu0
        %v2003 = vadd.f32 0.0, %v2002
        %2004 = vmatprep.mubr.bf16.mxu0 0
        %2005 = vmatmul.mubr.bf16.gmra.mxu0 %v1404
        %v2006 = vpop.f32.mrf.mxu0
        %v2007 = vadd.f32 0.0, %v2006
        %v2008 = vpop.f32.mrf.mxu0
        %v2009 = vadd.f32 0.0, %v2008
        %v2010 = vpop.f32.mrf.mxu0
        %v2011 = vadd.f32 0.0, %v2010
        %v2012 = vpop.f32.mrf.mxu0
        %v2013 = vadd.f32 0.0, %v2012
        %2014 = vdwg.mxu0
        %2015 = vmatprep.subr.bf16.mxu0 %v1722
        %2016 = vmatpush1.bf16.msra.mxu0 %v1721
        %2017 = vmatprep.subr.bf16.mxu0 %v1714
        %2018 = vmatpush1.bf16.msra.mxu0 %v1713
        %2019 = vmatprep.subr.bf16.mxu0 %v1706
        %2020 = vmatpush1.bf16.msra.mxu0 %v1705
        %2021 = vmatprep.subr.bf16.mxu0 %v1698
        %2022 = vmatpush1.bf16.msra.mxu0 %v1697
        %2023 = vmatprep.subr.bf16.mxu0 %v1690
        %2024 = vmatpush1.bf16.msra.mxu0 %v1689
        %2025 = vmatprep.subr.bf16.mxu0 %v1682
        %2026 = vmatpush1.bf16.msra.mxu0 %v1681
        %2027 = vmatprep.subr.bf16.mxu0 %v1674
        %2028 = vmatpush1.bf16.msra.mxu0 %v1673
        %2029 = vmatprep.subr.bf16.mxu0 %v1666
        %2030 = vmatpush1.bf16.msra.mxu0 %v1665
        %2031 = vmatprep.subr.bf16.mxu0 0
        %2032 = vmatpush2.bf16.msra.mxu0 0
        %2033 = vmatprep.subr.bf16.mxu0 0
        %2034 = vmatpush2.bf16.msra.mxu0 0
        %2035 = vmatprep.subr.bf16.mxu0 0
        %2036 = vmatpush2.bf16.msra.mxu0 0
        %2037 = vmatprep.subr.bf16.mxu0 0
        %2038 = vmatpush2.bf16.msra.mxu0 0
        %2039 = vmatprep.subr.bf16.mxu0 0
        %2040 = vmatpush2.bf16.msra.mxu0 0
        %2041 = vmatprep.subr.bf16.mxu0 0
        %2042 = vmatpush2.bf16.msra.mxu0 0
        %2043 = vmatprep.subr.bf16.mxu0 0
        %2044 = vmatpush2.bf16.msra.mxu0 0
        %2045 = vmatprep.subr.bf16.mxu0 0
        %2046 = vmatpush2.bf16.msra.mxu0 0
        %2047 = vmatprep.mubr.bf16.mxu0 0
        %2048 = vmatmul.mubr.bf16.gmra.mxu0 %v1397
        %v2049 = vpop.f32.mrf.mxu0
        %v2050 = vadd.f32 0.0, %v2049
        %v2051 = vpop.f32.mrf.mxu0
        %v2052 = vadd.f32 0.0, %v2051
        %v2053 = vpop.f32.mrf.mxu0
        %v2054 = vadd.f32 0.0, %v2053
        %v2055 = vpop.f32.mrf.mxu0
        %v2056 = vadd.f32 0.0, %v2055
        %2057 = vmatprep.mubr.bf16.mxu0 0
        %2058 = vmatmul.mubr.bf16.gmra.mxu0 %v1398
        %v2059 = vpop.f32.mrf.mxu0
        %v2060 = vadd.f32 0.0, %v2059
        %v2061 = vpop.f32.mrf.mxu0
        %v2062 = vadd.f32 0.0, %v2061
        %v2063 = vpop.f32.mrf.mxu0
        %v2064 = vadd.f32 0.0, %v2063
        %v2065 = vpop.f32.mrf.mxu0
        %v2066 = vadd.f32 0.0, %v2065
        %2067 = vmatprep.mubr.bf16.mxu0 0
        %2068 = vmatmul.mubr.bf16.gmra.mxu0 %v1399
        %v2069 = vpop.f32.mrf.mxu0
        %v2070 = vadd.f32 0.0, %v2069
        %v2071 = vpop.f32.mrf.mxu0
        %v2072 = vadd.f32 0.0, %v2071
        %v2073 = vpop.f32.mrf.mxu0
        %v2074 = vadd.f32 0.0, %v2073
        %v2075 = vpop.f32.mrf.mxu0
        %v2076 = vadd.f32 0.0, %v2075
        %2077 = vmatprep.mubr.bf16.mxu0 0
        %2078 = vmatmul.mubr.bf16.gmra.mxu0 %v1400
        %v2079 = vpop.f32.mrf.mxu0
        %v2080 = vadd.f32 0.0, %v2079
        %v2081 = vpop.f32.mrf.mxu0
        %v2082 = vadd.f32 0.0, %v2081
        %v2083 = vpop.f32.mrf.mxu0
        %v2084 = vadd.f32 0.0, %v2083
        %v2085 = vpop.f32.mrf.mxu0
        %v2086 = vadd.f32 0.0, %v2085
        %2087 = vmatprep.mubr.bf16.mxu0 0
        %2088 = vmatmul.mubr.bf16.gmra.mxu0 %v1401
        %v2089 = vpop.f32.mrf.mxu0
        %v2090 = vadd.f32 0.0, %v2089
        %v2091 = vpop.f32.mrf.mxu0
        %v2092 = vadd.f32 0.0, %v2091
        %v2093 = vpop.f32.mrf.mxu0
        %v2094 = vadd.f32 0.0, %v2093
        %v2095 = vpop.f32.mrf.mxu0
        %v2096 = vadd.f32 0.0, %v2095
        %2097 = vmatprep.mubr.bf16.mxu0 0
        %2098 = vmatmul.mubr.bf16.gmra.mxu0 %v1402
        %v2099 = vpop.f32.mrf.mxu0
        %v2100 = vadd.f32 0.0, %v2099
        %v2101 = vpop.f32.mrf.mxu0
        %v2102 = vadd.f32 0.0, %v2101
        %v2103 = vpop.f32.mrf.mxu0
        %v2104 = vadd.f32 0.0, %v2103
        %v2105 = vpop.f32.mrf.mxu0
        %v2106 = vadd.f32 0.0, %v2105
        %2107 = vmatprep.mubr.bf16.mxu0 0
        %2108 = vmatmul.mubr.bf16.gmra.mxu0 %v1403
        %v2109 = vpop.f32.mrf.mxu0
        %v2110 = vadd.f32 0.0, %v2109
        %v2111 = vpop.f32.mrf.mxu0
        %v2112 = vadd.f32 0.0, %v2111
        %v2113 = vpop.f32.mrf.mxu0
        %v2114 = vadd.f32 0.0, %v2113
        %v2115 = vpop.f32.mrf.mxu0
        %v2116 = vadd.f32 0.0, %v2115
        %2117 = vmatprep.mubr.bf16.mxu0 0
        %2118 = vmatmul.mubr.bf16.gmra.mxu0 %v1404
        %v2119 = vpop.f32.mrf.mxu0
        %v2120 = vadd.f32 0.0, %v2119
        %v2121 = vpop.f32.mrf.mxu0
        %v2122 = vadd.f32 0.0, %v2121
        %v2123 = vpop.f32.mrf.mxu0
        %v2124 = vadd.f32 0.0, %v2123
        %v2125 = vpop.f32.mrf.mxu0
        %v2126 = vadd.f32 0.0, %v2125
        %2127 = vdwg.mxu0
        %2128 = vmatprep.subr.bf16.mxu0 %v1724
        %2129 = vmatpush1.bf16.msra.mxu0 %v1723
        %2130 = vmatprep.subr.bf16.mxu0 %v1716
        %2131 = vmatpush1.bf16.msra.mxu0 %v1715
        %2132 = vmatprep.subr.bf16.mxu0 %v1708
        %2133 = vmatpush1.bf16.msra.mxu0 %v1707
        %2134 = vmatprep.subr.bf16.mxu0 %v1700
        %2135 = vmatpush1.bf16.msra.mxu0 %v1699
        %2136 = vmatprep.subr.bf16.mxu0 %v1692
        %2137 = vmatpush1.bf16.msra.mxu0 %v1691
        %2138 = vmatprep.subr.bf16.mxu0 %v1684
        %2139 = vmatpush1.bf16.msra.mxu0 %v1683
        %2140 = vmatprep.subr.bf16.mxu0 %v1676
        %2141 = vmatpush1.bf16.msra.mxu0 %v1675
        %2142 = vmatprep.subr.bf16.mxu0 %v1668
        %2143 = vmatpush1.bf16.msra.mxu0 %v1667
        %2144 = vmatprep.subr.bf16.mxu0 0
        %2145 = vmatpush2.bf16.msra.mxu0 0
        %2146 = vmatprep.subr.bf16.mxu0 0
        %2147 = vmatpush2.bf16.msra.mxu0 0
        %2148 = vmatprep.subr.bf16.mxu0 0
        %2149 = vmatpush2.bf16.msra.mxu0 0
        %2150 = vmatprep.subr.bf16.mxu0 0
        %2151 = vmatpush2.bf16.msra.mxu0 0
        %2152 = vmatprep.subr.bf16.mxu0 0
        %2153 = vmatpush2.bf16.msra.mxu0 0
        %2154 = vmatprep.subr.bf16.mxu0 0
        %2155 = vmatpush2.bf16.msra.mxu0 0
        %2156 = vmatprep.subr.bf16.mxu0 0
        %2157 = vmatpush2.bf16.msra.mxu0 0
        %2158 = vmatprep.subr.bf16.mxu0 0
        %2159 = vmatpush2.bf16.msra.mxu0 0
        %2160 = vmatprep.mubr.bf16.mxu0 0
        %2161 = vmatmul.mubr.bf16.gmra.mxu0 %v1397
        %v2162 = vpop.f32.mrf.mxu0
        %v2163 = vadd.f32 0.0, %v2162
        %v2164 = vpop.f32.mrf.mxu0
        %v2165 = vadd.f32 0.0, %v2164
        %v2166 = vpop.f32.mrf.mxu0
        %v2167 = vadd.f32 0.0, %v2166
        %v2168 = vpop.f32.mrf.mxu0
        %v2169 = vadd.f32 0.0, %v2168
        %2170 = vmatprep.mubr.bf16.mxu0 0
        %2171 = vmatmul.mubr.bf16.gmra.mxu0 %v1398
        %v2172 = vpop.f32.mrf.mxu0
        %v2173 = vadd.f32 0.0, %v2172
        %v2174 = vpop.f32.mrf.mxu0
        %v2175 = vadd.f32 0.0, %v2174
        %v2176 = vpop.f32.mrf.mxu0
        %v2177 = vadd.f32 0.0, %v2176
        %v2178 = vpop.f32.mrf.mxu0
        %v2179 = vadd.f32 0.0, %v2178
        %2180 = vmatprep.mubr.bf16.mxu0 0
        %2181 = vmatmul.mubr.bf16.gmra.mxu0 %v1399
        %v2182 = vpop.f32.mrf.mxu0
        %v2183 = vadd.f32 0.0, %v2182
        %v2184 = vpop.f32.mrf.mxu0
        %v2185 = vadd.f32 0.0, %v2184
        %v2186 = vpop.f32.mrf.mxu0
        %v2187 = vadd.f32 0.0, %v2186
        %v2188 = vpop.f32.mrf.mxu0
        %v2189 = vadd.f32 0.0, %v2188
        %2190 = vmatprep.mubr.bf16.mxu0 0
        %2191 = vmatmul.mubr.bf16.gmra.mxu0 %v1400
        %v2192 = vpop.f32.mrf.mxu0
        %v2193 = vadd.f32 0.0, %v2192
        %v2194 = vpop.f32.mrf.mxu0
        %v2195 = vadd.f32 0.0, %v2194
        %v2196 = vpop.f32.mrf.mxu0
        %v2197 = vadd.f32 0.0, %v2196
        %v2198 = vpop.f32.mrf.mxu0
        %v2199 = vadd.f32 0.0, %v2198
        %2200 = vmatprep.mubr.bf16.mxu0 0
        %2201 = vmatmul.mubr.bf16.gmra.mxu0 %v1401
        %v2202 = vpop.f32.mrf.mxu0
        %v2203 = vadd.f32 0.0, %v2202
        %v2204 = vpop.f32.mrf.mxu0
        %v2205 = vadd.f32 0.0, %v2204
        %v2206 = vpop.f32.mrf.mxu0
        %v2207 = vadd.f32 0.0, %v2206
        %v2208 = vpop.f32.mrf.mxu0
        %v2209 = vadd.f32 0.0, %v2208
        %2210 = vmatprep.mubr.bf16.mxu0 0
        %2211 = vmatmul.mubr.bf16.gmra.mxu0 %v1402
        %v2212 = vpop.f32.mrf.mxu0
        %v2213 = vadd.f32 0.0, %v2212
        %v2214 = vpop.f32.mrf.mxu0
        %v2215 = vadd.f32 0.0, %v2214
        %v2216 = vpop.f32.mrf.mxu0
        %v2217 = vadd.f32 0.0, %v2216
        %v2218 = vpop.f32.mrf.mxu0
        %v2219 = vadd.f32 0.0, %v2218
        %2220 = vmatprep.mubr.bf16.mxu0 0
        %2221 = vmatmul.mubr.bf16.gmra.mxu0 %v1403
        %v2222 = vpop.f32.mrf.mxu0
        %v2223 = vadd.f32 0.0, %v2222
        %v2224 = vpop.f32.mrf.mxu0
        %v2225 = vadd.f32 0.0, %v2224
        %v2226 = vpop.f32.mrf.mxu0
        %v2227 = vadd.f32 0.0, %v2226
        %v2228 = vpop.f32.mrf.mxu0
        %v2229 = vadd.f32 0.0, %v2228
        %2230 = vmatprep.mubr.bf16.mxu0 0
        %2231 = vmatmul.mubr.bf16.gmra.mxu0 %v1404
        %v2232 = vpop.f32.mrf.mxu0
        %v2233 = vadd.f32 0.0, %v2232
        %v2234 = vpop.f32.mrf.mxu0
        %v2235 = vadd.f32 0.0, %v2234
        %v2236 = vpop.f32.mrf.mxu0
        %v2237 = vadd.f32 0.0, %v2236
        %v2238 = vpop.f32.mrf.mxu0
        %v2239 = vadd.f32 0.0, %v2238
        %2240 = vdwg.mxu0
        %v2241 = vld [vmem:[%s8] sm:$0xff]
        %v2243 = vlaneseq
        %v2244 = vshrl.u32 %v2243, 7
        %v2245 = vsub.s32 0, %v2244
        %v2246 = vrot.slane %v2241, %v2245
        %v2247 = vlaneseq
        %v2248 = vshrl.u32 %v2247, 7
        %v2249 = vsub.s32 1, %v2248
        %v2250 = vrot.slane %v2241, %v2249
        %v2251 = vlaneseq
        %v2252 = vshrl.u32 %v2251, 7
        %v2253 = vsub.s32 2, %v2252
        %v2254 = vrot.slane %v2241, %v2253
        %v2255 = vlaneseq
        %v2256 = vshrl.u32 %v2255, 7
        %v2257 = vsub.s32 3, %v2256
        %v2258 = vrot.slane %v2241, %v2257
        %v2259 = vlaneseq
        %v2260 = vshrl.u32 %v2259, 7
        %v2261 = vsub.s32 4, %v2260
        %v2262 = vrot.slane %v2241, %v2261
        %v2263 = vlaneseq
        %v2264 = vshrl.u32 %v2263, 7
        %v2265 = vsub.s32 5, %v2264
        %v2266 = vrot.slane %v2241, %v2265
        %v2267 = vlaneseq
        %v2268 = vshrl.u32 %v2267, 7
        %v2269 = vsub.s32 6, %v2268
        %v2270 = vrot.slane %v2241, %v2269
        %v2271 = vlaneseq
        %v2272 = vshrl.u32 %v2271, 7
        %v2273 = vsub.s32 7, %v2272
        %v2274 = vrot.slane %v2241, %v2273
        %v2283 = vmul.f32 %v1824, %v2246
        %v2284 = vmul.f32 %v1826, %v2250
        %v2285 = vmul.f32 %v1937, %v2254
        %v2286 = vmul.f32 %v1939, %v2258
        %v2287 = vmul.f32 %v2050, %v2262
        %v2288 = vmul.f32 %v2052, %v2266
        %v2289 = vmul.f32 %v2163, %v2270
        %v2290 = vmul.f32 %v2165, %v2274
        %v2291 = vmul.f32 %v1828, %v2246
        %v2292 = vmul.f32 %v1830, %v2250
        %v2293 = vmul.f32 %v1941, %v2254
        %v2294 = vmul.f32 %v1943, %v2258
        %v2295 = vmul.f32 %v2054, %v2262
        %v2296 = vmul.f32 %v2056, %v2266
        %v2297 = vmul.f32 %v2167, %v2270
        %v2298 = vmul.f32 %v2169, %v2274
        %v2299 = vmul.f32 %v1834, %v2246
        %v2300 = vmul.f32 %v1836, %v2250
        %v2301 = vmul.f32 %v1947, %v2254
        %v2302 = vmul.f32 %v1949, %v2258
        %v2303 = vmul.f32 %v2060, %v2262
        %v2304 = vmul.f32 %v2062, %v2266
        %v2305 = vmul.f32 %v2173, %v2270
        %v2306 = vmul.f32 %v2175, %v2274
        %v2307 = vmul.f32 %v1838, %v2246
        %v2308 = vmul.f32 %v1840, %v2250
        %v2309 = vmul.f32 %v1951, %v2254
        %v2310 = vmul.f32 %v1953, %v2258
        %v2311 = vmul.f32 %v2064, %v2262
        %v2312 = vmul.f32 %v2066, %v2266
        %v2313 = vmul.f32 %v2177, %v2270
        %v2314 = vmul.f32 %v2179, %v2274
        %v2315 = vmul.f32 %v1844, %v2246
        %v2316 = vmul.f32 %v1846, %v2250
        %v2317 = vmul.f32 %v1957, %v2254
        %v2318 = vmul.f32 %v1959, %v2258
        %v2319 = vmul.f32 %v2070, %v2262
        %v2320 = vmul.f32 %v2072, %v2266
        %v2321 = vmul.f32 %v2183, %v2270
        %v2322 = vmul.f32 %v2185, %v2274
        %v2323 = vmul.f32 %v1848, %v2246
        %v2324 = vmul.f32 %v1850, %v2250
        %v2325 = vmul.f32 %v1961, %v2254
        %v2326 = vmul.f32 %v1963, %v2258
        %v2327 = vmul.f32 %v2074, %v2262
        %v2328 = vmul.f32 %v2076, %v2266
        %v2329 = vmul.f32 %v2187, %v2270
        %v2330 = vmul.f32 %v2189, %v2274
        %v2331 = vmul.f32 %v1854, %v2246
        %v2332 = vmul.f32 %v1856, %v2250
        %v2333 = vmul.f32 %v1967, %v2254
        %v2334 = vmul.f32 %v1969, %v2258
        %v2335 = vmul.f32 %v2080, %v2262
        %v2336 = vmul.f32 %v2082, %v2266
        %v2337 = vmul.f32 %v2193, %v2270
        %v2338 = vmul.f32 %v2195, %v2274
        %v2339 = vmul.f32 %v1858, %v2246
        %v2340 = vmul.f32 %v1860, %v2250
        %v2341 = vmul.f32 %v1971, %v2254
        %v2342 = vmul.f32 %v1973, %v2258
        %v2343 = vmul.f32 %v2084, %v2262
        %v2344 = vmul.f32 %v2086, %v2266
        %v2345 = vmul.f32 %v2197, %v2270
        %v2346 = vmul.f32 %v2199, %v2274
        %v2347 = vmul.f32 %v1864, %v2246
        %v2348 = vmul.f32 %v1866, %v2250
        %v2349 = vmul.f32 %v1977, %v2254
        %v2350 = vmul.f32 %v1979, %v2258
        %v2351 = vmul.f32 %v2090, %v2262
        %v2352 = vmul.f32 %v2092, %v2266
        %v2353 = vmul.f32 %v2203, %v2270
        %v2354 = vmul.f32 %v2205, %v2274
        %v2355 = vmul.f32 %v1868, %v2246
        %v2356 = vmul.f32 %v1870, %v2250
        %v2357 = vmul.f32 %v1981, %v2254
        %v2358 = vmul.f32 %v1983, %v2258
        %v2359 = vmul.f32 %v2094, %v2262
        %v2360 = vmul.f32 %v2096, %v2266
        %v2361 = vmul.f32 %v2207, %v2270
        %v2362 = vmul.f32 %v2209, %v2274
        %v2363 = vmul.f32 %v1874, %v2246
        %v2364 = vmul.f32 %v1876, %v2250
        %v2365 = vmul.f32 %v1987, %v2254
        %v2366 = vmul.f32 %v1989, %v2258
        %v2367 = vmul.f32 %v2100, %v2262
        %v2368 = vmul.f32 %v2102, %v2266
        %v2369 = vmul.f32 %v2213, %v2270
        %v2370 = vmul.f32 %v2215, %v2274
        %v2371 = vmul.f32 %v1878, %v2246
        %v2372 = vmul.f32 %v1880, %v2250
        %v2373 = vmul.f32 %v1991, %v2254
        %v2374 = vmul.f32 %v1993, %v2258
        %v2375 = vmul.f32 %v2104, %v2262
        %v2376 = vmul.f32 %v2106, %v2266
        %v2377 = vmul.f32 %v2217, %v2270
        %v2378 = vmul.f32 %v2219, %v2274
        %v2379 = vmul.f32 %v1884, %v2246
        %v2380 = vmul.f32 %v1886, %v2250
        %v2381 = vmul.f32 %v1997, %v2254
        %v2382 = vmul.f32 %v1999, %v2258
        %v2383 = vmul.f32 %v2110, %v2262
        %v2384 = vmul.f32 %v2112, %v2266
        %v2385 = vmul.f32 %v2223, %v2270
        %v2386 = vmul.f32 %v2225, %v2274
        %v2387 = vmul.f32 %v1888, %v2246
        %v2388 = vmul.f32 %v1890, %v2250
        %v2389 = vmul.f32 %v2001, %v2254
        %v2390 = vmul.f32 %v2003, %v2258
        %v2391 = vmul.f32 %v2114, %v2262
        %v2392 = vmul.f32 %v2116, %v2266
        %v2393 = vmul.f32 %v2227, %v2270
        %v2394 = vmul.f32 %v2229, %v2274
        %v2395 = vmul.f32 %v1894, %v2246
        %v2396 = vmul.f32 %v1896, %v2250
        %v2397 = vmul.f32 %v2007, %v2254
        %v2398 = vmul.f32 %v2009, %v2258
        %v2399 = vmul.f32 %v2120, %v2262
        %v2400 = vmul.f32 %v2122, %v2266
        %v2401 = vmul.f32 %v2233, %v2270
        %v2402 = vmul.f32 %v2235, %v2274
        %v2403 = vmul.f32 %v1898, %v2246
        %v2404 = vmul.f32 %v1900, %v2250
        %v2405 = vmul.f32 %v2011, %v2254
        %v2406 = vmul.f32 %v2013, %v2258
        %v2407 = vmul.f32 %v2124, %v2262
        %v2408 = vmul.f32 %v2126, %v2266
        %v2409 = vmul.f32 %v2237, %v2270
        %v2410 = vmul.f32 %v2239, %v2274
        %v2411 = vld [vmem:[%s9] sm:$0xff]
        %v2413 = vlaneseq
        %v2414 = vshrl.u32 %v2413, 7
        %v2415 = vsub.s32 0, %v2414
        %v2416 = vrot.slane %v2411, %v2415
        %v2417 = vlaneseq
        %v2418 = vshrl.u32 %v2417, 7
        %v2419 = vsub.s32 1, %v2418
        %v2420 = vrot.slane %v2411, %v2419
        %v2421 = vlaneseq
        %v2422 = vshrl.u32 %v2421, 7
        %v2423 = vsub.s32 2, %v2422
        %v2424 = vrot.slane %v2411, %v2423
        %v2425 = vlaneseq
        %v2426 = vshrl.u32 %v2425, 7
        %v2427 = vsub.s32 3, %v2426
        %v2428 = vrot.slane %v2411, %v2427
        %v2429 = vlaneseq
        %v2430 = vshrl.u32 %v2429, 7
        %v2431 = vsub.s32 4, %v2430
        %v2432 = vrot.slane %v2411, %v2431
        %v2433 = vlaneseq
        %v2434 = vshrl.u32 %v2433, 7
        %v2435 = vsub.s32 5, %v2434
        %v2436 = vrot.slane %v2411, %v2435
        %v2437 = vlaneseq
        %v2438 = vshrl.u32 %v2437, 7
        %v2439 = vsub.s32 6, %v2438
        %v2440 = vrot.slane %v2411, %v2439
        %v2441 = vlaneseq
        %v2442 = vshrl.u32 %v2441, 7
        %v2443 = vsub.s32 7, %v2442
        %v2444 = vrot.slane %v2411, %v2443
        %v2453 = vadd.f32 %v2283, %v2416
        %v2454 = vadd.f32 %v2284, %v2420
        %v2455 = vadd.f32 %v2285, %v2424
        %v2456 = vadd.f32 %v2286, %v2428
        %v2457 = vadd.f32 %v2287, %v2432
        %v2458 = vadd.f32 %v2288, %v2436
        %v2459 = vadd.f32 %v2289, %v2440
        %v2460 = vadd.f32 %v2290, %v2444
        %v2461 = vadd.f32 %v2291, %v2416
        %v2462 = vadd.f32 %v2292, %v2420
        %v2463 = vadd.f32 %v2293, %v2424
        %v2464 = vadd.f32 %v2294, %v2428
        %v2465 = vadd.f32 %v2295, %v2432
        %v2466 = vadd.f32 %v2296, %v2436
        %v2467 = vadd.f32 %v2297, %v2440
        %v2468 = vadd.f32 %v2298, %v2444
        %v2469 = vadd.f32 %v2299, %v2416
        %v2470 = vadd.f32 %v2300, %v2420
        %v2471 = vadd.f32 %v2301, %v2424
        %v2472 = vadd.f32 %v2302, %v2428
        %v2473 = vadd.f32 %v2303, %v2432
        %v2474 = vadd.f32 %v2304, %v2436
        %v2475 = vadd.f32 %v2305, %v2440
        %v2476 = vadd.f32 %v2306, %v2444
        %v2477 = vadd.f32 %v2307, %v2416
        %v2478 = vadd.f32 %v2308, %v2420
        %v2479 = vadd.f32 %v2309, %v2424
        %v2480 = vadd.f32 %v2310, %v2428
        %v2481 = vadd.f32 %v2311, %v2432
        %v2482 = vadd.f32 %v2312, %v2436
        %v2483 = vadd.f32 %v2313, %v2440
        %v2484 = vadd.f32 %v2314, %v2444
        %v2485 = vadd.f32 %v2315, %v2416
        %v2486 = vadd.f32 %v2316, %v2420
        %v2487 = vadd.f32 %v2317, %v2424
        %v2488 = vadd.f32 %v2318, %v2428
        %v2489 = vadd.f32 %v2319, %v2432
        %v2490 = vadd.f32 %v2320, %v2436
        %v2491 = vadd.f32 %v2321, %v2440
        %v2492 = vadd.f32 %v2322, %v2444
        %v2493 = vadd.f32 %v2323, %v2416
        %v2494 = vadd.f32 %v2324, %v2420
        %v2495 = vadd.f32 %v2325, %v2424
        %v2496 = vadd.f32 %v2326, %v2428
        %v2497 = vadd.f32 %v2327, %v2432
        %v2498 = vadd.f32 %v2328, %v2436
        %v2499 = vadd.f32 %v2329, %v2440
        %v2500 = vadd.f32 %v2330, %v2444
        %v2501 = vadd.f32 %v2331, %v2416
        %v2502 = vadd.f32 %v2332, %v2420
        %v2503 = vadd.f32 %v2333, %v2424
        %v2504 = vadd.f32 %v2334, %v2428
        %v2505 = vadd.f32 %v2335, %v2432
        %v2506 = vadd.f32 %v2336, %v2436
        %v2507 = vadd.f32 %v2337, %v2440
        %v2508 = vadd.f32 %v2338, %v2444
        %v2509 = vadd.f32 %v2339, %v2416
        %v2510 = vadd.f32 %v2340, %v2420
        %v2511 = vadd.f32 %v2341, %v2424
        %v2512 = vadd.f32 %v2342, %v2428
        %v2513 = vadd.f32 %v2343, %v2432
        %v2514 = vadd.f32 %v2344, %v2436
        %v2515 = vadd.f32 %v2345, %v2440
        %v2516 = vadd.f32 %v2346, %v2444
        %v2517 = vadd.f32 %v2347, %v2416
        %v2518 = vadd.f32 %v2348, %v2420
        %v2519 = vadd.f32 %v2349, %v2424
        %v2520 = vadd.f32 %v2350, %v2428
        %v2521 = vadd.f32 %v2351, %v2432
        %v2522 = vadd.f32 %v2352, %v2436
        %v2523 = vadd.f32 %v2353, %v2440
        %v2524 = vadd.f32 %v2354, %v2444
        %v2525 = vadd.f32 %v2355, %v2416
        %v2526 = vadd.f32 %v2356, %v2420
        %v2527 = vadd.f32 %v2357, %v2424
        %v2528 = vadd.f32 %v2358, %v2428
        %v2529 = vadd.f32 %v2359, %v2432
        %v2530 = vadd.f32 %v2360, %v2436
        %v2531 = vadd.f32 %v2361, %v2440
        %v2532 = vadd.f32 %v2362, %v2444
        %v2533 = vadd.f32 %v2363, %v2416
        %v2534 = vadd.f32 %v2364, %v2420
        %v2535 = vadd.f32 %v2365, %v2424
        %v2536 = vadd.f32 %v2366, %v2428
        %v2537 = vadd.f32 %v2367, %v2432
        %v2538 = vadd.f32 %v2368, %v2436
        %v2539 = vadd.f32 %v2369, %v2440
        %v2540 = vadd.f32 %v2370, %v2444
        %v2541 = vadd.f32 %v2371, %v2416
        %v2542 = vadd.f32 %v2372, %v2420
        %v2543 = vadd.f32 %v2373, %v2424
        %v2544 = vadd.f32 %v2374, %v2428
        %v2545 = vadd.f32 %v2375, %v2432
        %v2546 = vadd.f32 %v2376, %v2436
        %v2547 = vadd.f32 %v2377, %v2440
        %v2548 = vadd.f32 %v2378, %v2444
        %v2549 = vadd.f32 %v2379, %v2416
        %v2550 = vadd.f32 %v2380, %v2420
        %v2551 = vadd.f32 %v2381, %v2424
        %v2552 = vadd.f32 %v2382, %v2428
        %v2553 = vadd.f32 %v2383, %v2432
        %v2554 = vadd.f32 %v2384, %v2436
        %v2555 = vadd.f32 %v2385, %v2440
        %v2556 = vadd.f32 %v2386, %v2444
        %v2557 = vadd.f32 %v2387, %v2416
        %v2558 = vadd.f32 %v2388, %v2420
        %v2559 = vadd.f32 %v2389, %v2424
        %v2560 = vadd.f32 %v2390, %v2428
        %v2561 = vadd.f32 %v2391, %v2432
        %v2562 = vadd.f32 %v2392, %v2436
        %v2563 = vadd.f32 %v2393, %v2440
        %v2564 = vadd.f32 %v2394, %v2444
        %v2565 = vadd.f32 %v2395, %v2416
        %v2566 = vadd.f32 %v2396, %v2420
        %v2567 = vadd.f32 %v2397, %v2424
        %v2568 = vadd.f32 %v2398, %v2428
        %v2569 = vadd.f32 %v2399, %v2432
        %v2570 = vadd.f32 %v2400, %v2436
        %v2571 = vadd.f32 %v2401, %v2440
        %v2572 = vadd.f32 %v2402, %v2444
        %v2573 = vadd.f32 %v2403, %v2416
        %v2574 = vadd.f32 %v2404, %v2420
        %v2575 = vadd.f32 %v2405, %v2424
        %v2576 = vadd.f32 %v2406, %v2428
        %v2577 = vadd.f32 %v2407, %v2432
        %v2578 = vadd.f32 %v2408, %v2436
        %v2579 = vadd.f32 %v2409, %v2440
        %v2580 = vadd.f32 %v2410, %v2444
        %v2581 = vmax.f32 %v2453, %v2461
        %v2582 = vmax.f32 %v2581, %v2469
        %v2583 = vmax.f32 %v2582, %v2477
        %v2584 = vmax.f32 %v2583, %v2485
        %v2585 = vmax.f32 %v2584, %v2493
        %v2586 = vmax.f32 %v2585, %v2501
        %v2587 = vmax.f32 %v2586, %v2509
        %v2588 = vrot.slane %v2587, 4
        %v2589 = vmax.f32 %v2587, %v2588
        %v2590 = vrot.slane %v2589, 2
        %v2591 = vmax.f32 %v2589, %v2590
        %v2592 = vrot.slane %v2591, 1
        %v2593 = vmax.f32 %v2591, %v2592
        %v2594 = vmax.f32 %v2454, %v2462
        %v2595 = vmax.f32 %v2594, %v2470
        %v2596 = vmax.f32 %v2595, %v2478
        %v2597 = vmax.f32 %v2596, %v2486
        %v2598 = vmax.f32 %v2597, %v2494
        %v2599 = vmax.f32 %v2598, %v2502
        %v2600 = vmax.f32 %v2599, %v2510
        %v2601 = vrot.slane %v2600, 4
        %v2602 = vmax.f32 %v2600, %v2601
        %v2603 = vrot.slane %v2602, 2
        %v2604 = vmax.f32 %v2602, %v2603
        %v2605 = vrot.slane %v2604, 1
        %v2606 = vmax.f32 %v2604, %v2605
        %v2607 = vmax.f32 %v2455, %v2463
        %v2608 = vmax.f32 %v2607, %v2471
        %v2609 = vmax.f32 %v2608, %v2479
        %v2610 = vmax.f32 %v2609, %v2487
        %v2611 = vmax.f32 %v2610, %v2495
        %v2612 = vmax.f32 %v2611, %v2503
        %v2613 = vmax.f32 %v2612, %v2511
        %v2614 = vrot.slane %v2613, 4
        %v2615 = vmax.f32 %v2613, %v2614
        %v2616 = vrot.slane %v2615, 2
        %v2617 = vmax.f32 %v2615, %v2616
        %v2618 = vrot.slane %v2617, 1
        %v2619 = vmax.f32 %v2617, %v2618
        %v2620 = vmax.f32 %v2456, %v2464
        %v2621 = vmax.f32 %v2620, %v2472
        %v2622 = vmax.f32 %v2621, %v2480
        %v2623 = vmax.f32 %v2622, %v2488
        %v2624 = vmax.f32 %v2623, %v2496
        %v2625 = vmax.f32 %v2624, %v2504
        %v2626 = vmax.f32 %v2625, %v2512
        %v2627 = vrot.slane %v2626, 4
        %v2628 = vmax.f32 %v2626, %v2627
        %v2629 = vrot.slane %v2628, 2
        %v2630 = vmax.f32 %v2628, %v2629
        %v2631 = vrot.slane %v2630, 1
        %v2632 = vmax.f32 %v2630, %v2631
        %v2633 = vmax.f32 %v2457, %v2465
        %v2634 = vmax.f32 %v2633, %v2473
        %v2635 = vmax.f32 %v2634, %v2481
        %v2636 = vmax.f32 %v2635, %v2489
        %v2637 = vmax.f32 %v2636, %v2497
        %v2638 = vmax.f32 %v2637, %v2505
        %v2639 = vmax.f32 %v2638, %v2513
        %v2640 = vrot.slane %v2639, 4
        %v2641 = vmax.f32 %v2639, %v2640
        %v2642 = vrot.slane %v2641, 2
        %v2643 = vmax.f32 %v2641, %v2642
        %v2644 = vrot.slane %v2643, 1
        %v2645 = vmax.f32 %v2643, %v2644
        %v2646 = vmax.f32 %v2458, %v2466
        %v2647 = vmax.f32 %v2646, %v2474
        %v2648 = vmax.f32 %v2647, %v2482
        %v2649 = vmax.f32 %v2648, %v2490
        %v2650 = vmax.f32 %v2649, %v2498
        %v2651 = vmax.f32 %v2650, %v2506
        %v2652 = vmax.f32 %v2651, %v2514
        %v2653 = vrot.slane %v2652, 4
        %v2654 = vmax.f32 %v2652, %v2653
        %v2655 = vrot.slane %v2654, 2
        %v2656 = vmax.f32 %v2654, %v2655
        %v2657 = vrot.slane %v2656, 1
        %v2658 = vmax.f32 %v2656, %v2657
        %v2659 = vmax.f32 %v2459, %v2467
        %v2660 = vmax.f32 %v2659, %v2475
        %v2661 = vmax.f32 %v2660, %v2483
        %v2662 = vmax.f32 %v2661, %v2491
        %v2663 = vmax.f32 %v2662, %v2499
        %v2664 = vmax.f32 %v2663, %v2507
        %v2665 = vmax.f32 %v2664, %v2515
        %v2666 = vrot.slane %v2665, 4
        %v2667 = vmax.f32 %v2665, %v2666
        %v2668 = vrot.slane %v2667, 2
        %v2669 = vmax.f32 %v2667, %v2668
        %v2670 = vrot.slane %v2669, 1
        %v2671 = vmax.f32 %v2669, %v2670
        %v2672 = vmax.f32 %v2460, %v2468
        %v2673 = vmax.f32 %v2672, %v2476
        %v2674 = vmax.f32 %v2673, %v2484
        %v2675 = vmax.f32 %v2674, %v2492
        %v2676 = vmax.f32 %v2675, %v2500
        %v2677 = vmax.f32 %v2676, %v2508
        %v2678 = vmax.f32 %v2677, %v2516
        %v2679 = vrot.slane %v2678, 4
        %v2680 = vmax.f32 %v2678, %v2679
        %v2681 = vrot.slane %v2680, 2
        %v2682 = vmax.f32 %v2680, %v2681
        %v2683 = vrot.slane %v2682, 1
        %v2684 = vmax.f32 %v2682, %v2683
        %v2685 = vmax.f32 %v2517, %v2525
        %v2686 = vmax.f32 %v2685, %v2533
        %v2687 = vmax.f32 %v2686, %v2541
        %v2688 = vmax.f32 %v2687, %v2549
        %v2689 = vmax.f32 %v2688, %v2557
        %v2690 = vmax.f32 %v2689, %v2565
        %v2691 = vmax.f32 %v2690, %v2573
        %v2692 = vrot.slane %v2691, 4
        %v2693 = vmax.f32 %v2691, %v2692
        %v2694 = vrot.slane %v2693, 2
        %v2695 = vmax.f32 %v2693, %v2694
        %v2696 = vrot.slane %v2695, 1
        %v2697 = vmax.f32 %v2695, %v2696
        %v2698 = vmax.f32 %v2518, %v2526
        %v2699 = vmax.f32 %v2698, %v2534
        %v2700 = vmax.f32 %v2699, %v2542
        %v2701 = vmax.f32 %v2700, %v2550
        %v2702 = vmax.f32 %v2701, %v2558
        %v2703 = vmax.f32 %v2702, %v2566
        %v2704 = vmax.f32 %v2703, %v2574
        %v2705 = vrot.slane %v2704, 4
        %v2706 = vmax.f32 %v2704, %v2705
        %v2707 = vrot.slane %v2706, 2
        %v2708 = vmax.f32 %v2706, %v2707
        %v2709 = vrot.slane %v2708, 1
        %v2710 = vmax.f32 %v2708, %v2709
        %v2711 = vmax.f32 %v2519, %v2527
        %v2712 = vmax.f32 %v2711, %v2535
        %v2713 = vmax.f32 %v2712, %v2543
        %v2714 = vmax.f32 %v2713, %v2551
        %v2715 = vmax.f32 %v2714, %v2559
        %v2716 = vmax.f32 %v2715, %v2567
        %v2717 = vmax.f32 %v2716, %v2575
        %v2718 = vrot.slane %v2717, 4
        %v2719 = vmax.f32 %v2717, %v2718
        %v2720 = vrot.slane %v2719, 2
        %v2721 = vmax.f32 %v2719, %v2720
        %v2722 = vrot.slane %v2721, 1
        %v2723 = vmax.f32 %v2721, %v2722
        %v2724 = vmax.f32 %v2520, %v2528
        %v2725 = vmax.f32 %v2724, %v2536
        %v2726 = vmax.f32 %v2725, %v2544
        %v2727 = vmax.f32 %v2726, %v2552
        %v2728 = vmax.f32 %v2727, %v2560
        %v2729 = vmax.f32 %v2728, %v2568
        %v2730 = vmax.f32 %v2729, %v2576
        %v2731 = vrot.slane %v2730, 4
        %v2732 = vmax.f32 %v2730, %v2731
        %v2733 = vrot.slane %v2732, 2
        %v2734 = vmax.f32 %v2732, %v2733
        %v2735 = vrot.slane %v2734, 1
        %v2736 = vmax.f32 %v2734, %v2735
        %v2737 = vmax.f32 %v2521, %v2529
        %v2738 = vmax.f32 %v2737, %v2537
        %v2739 = vmax.f32 %v2738, %v2545
        %v2740 = vmax.f32 %v2739, %v2553
        %v2741 = vmax.f32 %v2740, %v2561
        %v2742 = vmax.f32 %v2741, %v2569
        %v2743 = vmax.f32 %v2742, %v2577
        %v2744 = vrot.slane %v2743, 4
        %v2745 = vmax.f32 %v2743, %v2744
        %v2746 = vrot.slane %v2745, 2
        %v2747 = vmax.f32 %v2745, %v2746
        %v2748 = vrot.slane %v2747, 1
        %v2749 = vmax.f32 %v2747, %v2748
        %v2750 = vmax.f32 %v2522, %v2530
        %v2751 = vmax.f32 %v2750, %v2538
        %v2752 = vmax.f32 %v2751, %v2546
        %v2753 = vmax.f32 %v2752, %v2554
        %v2754 = vmax.f32 %v2753, %v2562
        %v2755 = vmax.f32 %v2754, %v2570
        %v2756 = vmax.f32 %v2755, %v2578
        %v2757 = vrot.slane %v2756, 4
        %v2758 = vmax.f32 %v2756, %v2757
        %v2759 = vrot.slane %v2758, 2
        %v2760 = vmax.f32 %v2758, %v2759
        %v2761 = vrot.slane %v2760, 1
        %v2762 = vmax.f32 %v2760, %v2761
        %v2763 = vmax.f32 %v2523, %v2531
        %v2764 = vmax.f32 %v2763, %v2539
        %v2765 = vmax.f32 %v2764, %v2547
        %v2766 = vmax.f32 %v2765, %v2555
        %v2767 = vmax.f32 %v2766, %v2563
        %v2768 = vmax.f32 %v2767, %v2571
        %v2769 = vmax.f32 %v2768, %v2579
        %v2770 = vrot.slane %v2769, 4
        %v2771 = vmax.f32 %v2769, %v2770
        %v2772 = vrot.slane %v2771, 2
        %v2773 = vmax.f32 %v2771, %v2772
        %v2774 = vrot.slane %v2773, 1
        %v2775 = vmax.f32 %v2773, %v2774
        %v2776 = vmax.f32 %v2524, %v2532
        %v2777 = vmax.f32 %v2776, %v2540
        %v2778 = vmax.f32 %v2777, %v2548
        %v2779 = vmax.f32 %v2778, %v2556
        %v2780 = vmax.f32 %v2779, %v2564
        %v2781 = vmax.f32 %v2780, %v2572
        %v2782 = vmax.f32 %v2781, %v2580
        %v2783 = vrot.slane %v2782, 4
        %v2784 = vmax.f32 %v2782, %v2783
        %v2785 = vrot.slane %v2784, 2
        %v2786 = vmax.f32 %v2784, %v2785
        %v2787 = vrot.slane %v2786, 1
        %v2788 = vmax.f32 %v2786, %v2787
        %p2789 = scmp.eq.s32.totalorder %s40, 0
        // Predicated region
        $region163: #{tpu_custom_call.1} parent=125 // pred_check
          %p2790 = pneg %p2789
        $region164: #{tpu_custom_call.1} parent=125 // pred_check_branch
          %2792 = sbr.rel (%p2790) target = $region166
        $region165: #{tpu_custom_call.1} parent=125 // pred_region
          %v2809 = vcombine.low %v2593, %v2606
          %v2810 = vcombine.low %v2619, %v2632
          %v2812 = vunpack.c.l.s4 1983009808
          %v2813 = vunpack.c.0.s8 %v2812
          %v2814 = vlaneseq
          %v2815 = vshrl.u32 %v2814, 7
          %v2816 = vsub.s32 %v2813, %v2815
          %v2817 = vrot.slane %v2809, %v2816
          %v2819 = vunpack.c.l.s4 1983009808
          %v2820 = vunpack.c.0.s8 %v2819
          %v2821 = vlaneseq
          %v2822 = vshrl.u32 %v2821, 7
          %v2823 = vsub.s32 %v2820, %v2822
          %v2824 = vrot.slane %v2810, %v2823
          %v2825 = vcombine.low %v2817, %v2824
          %v2826 = vcombine.low %v2645, %v2658
          %v2827 = vcombine.low %v2671, %v2684
          %v2829 = vunpack.c.l.s4 1983009808
          %v2830 = vunpack.c.0.s8 %v2829
          %v2831 = vlaneseq
          %v2832 = vshrl.u32 %v2831, 7
          %v2833 = vsub.s32 %v2830, %v2832
          %v2834 = vrot.slane %v2826, %v2833
          %v2836 = vunpack.c.l.s4 1983009808
          %v2837 = vunpack.c.0.s8 %v2836
          %v2838 = vlaneseq
          %v2839 = vshrl.u32 %v2838, 7
          %v2840 = vsub.s32 %v2837, %v2839
          %v2841 = vrot.slane %v2827, %v2840
          %v2842 = vcombine.low %v2834, %v2841
          %v2843 = vcombine.low %v2697, %v2710
          %v2844 = vcombine.low %v2723, %v2736
          %v2846 = vunpack.c.l.s4 1983009808
          %v2847 = vunpack.c.0.s8 %v2846
          %v2848 = vlaneseq
          %v2849 = vshrl.u32 %v2848, 7
          %v2850 = vsub.s32 %v2847, %v2849
          %v2851 = vrot.slane %v2843, %v2850
          %v2853 = vunpack.c.l.s4 1983009808
          %v2854 = vunpack.c.0.s8 %v2853
          %v2855 = vlaneseq
          %v2856 = vshrl.u32 %v2855, 7
          %v2857 = vsub.s32 %v2854, %v2856
          %v2858 = vrot.slane %v2844, %v2857
          %v2859 = vcombine.low %v2851, %v2858
          %v2860 = vcombine.low %v2749, %v2762
          %v2861 = vcombine.low %v2775, %v2788
          %v2863 = vunpack.c.l.s4 1983009808
          %v2864 = vunpack.c.0.s8 %v2863
          %v2865 = vlaneseq
          %v2866 = vshrl.u32 %v2865, 7
          %v2867 = vsub.s32 %v2864, %v2866
          %v2868 = vrot.slane %v2860, %v2867
          %v2870 = vunpack.c.l.s4 1983009808
          %v2871 = vunpack.c.0.s8 %v2870
          %v2872 = vlaneseq
          %v2873 = vshrl.u32 %v2872, 7
          %v2874 = vsub.s32 %v2871, %v2873
          %v2875 = vrot.slane %v2861, %v2874
          %v2876 = vcombine.low %v2868, %v2875
          %vm2877 = vcmask 1044484
          %v2878 = vsel %vm2877, %v2825, %v2825
          %vm2879 = vcmask 1046534
          %v2880 = vsel %vm2879, %v2825, %v2878
          %v2881 = vrot.slane %v2859, 7
          %vm2882 = vcmask 1041409
          %v2883 = vsel %vm2882, %v2881, %v2880
          %vm2884 = vcmask 1043459
          %v2885 = vsel %vm2884, %v2881, %v2883
          %vm2886 = vcmask 1045509
          %v2887 = vsel %vm2886, %v2881, %v2885
          %vm2888 = vcmask 1047559
          %v2889 = vsel %vm2888, %v2881, %v2887
          %v2890 = vsel %vm2877, %v2842, %v2842
          %v2891 = vsel %vm2879, %v2842, %v2890
          %v2892 = vrot.slane %v2876, 7
          %v2893 = vsel %vm2882, %v2892, %v2891
          %v2894 = vsel %vm2884, %v2892, %v2893
          %v2895 = vsel %vm2886, %v2892, %v2894
          %v2896 = vsel %vm2888, %v2892, %v2895
          %2899 = vst [vmem:[#allocation2] sm:$0xff] %v2889
          %2900 = vst [vmem:[#allocation2 + $0x8] sm:$0xff] %v2896
        $region166: #{tpu_custom_call.1} parent=125 // pred_fallthru
          _
        %p2901 = scmp.gt.s32.totalorder %s40, 0
        // Predicated region
        $region167: #{tpu_custom_call.1} parent=125 // pred_check
          %p2902 = pneg %p2901
        $region168: #{tpu_custom_call.1} parent=125 // pred_check_branch
          %2904 = sbr.rel (%p2902) target = $region170
        $region169: #{tpu_custom_call.1} parent=125 // pred_region
          %v2905 = vld [vmem:[#allocation2] sm:$0xff]
          %v2906 = vld [vmem:[#allocation2 + $0x8] sm:$0xff]
          %v2923 = vcombine.low %v2593, %v2606
          %v2924 = vcombine.low %v2619, %v2632
          %v2926 = vunpack.c.l.s4 1983009808
          %v2927 = vunpack.c.0.s8 %v2926
          %v2928 = vlaneseq
          %v2929 = vshrl.u32 %v2928, 7
          %v2930 = vsub.s32 %v2927, %v2929
          %v2931 = vrot.slane %v2923, %v2930
          %v2933 = vunpack.c.l.s4 1983009808
          %v2934 = vunpack.c.0.s8 %v2933
          %v2935 = vlaneseq
          %v2936 = vshrl.u32 %v2935, 7
          %v2937 = vsub.s32 %v2934, %v2936
          %v2938 = vrot.slane %v2924, %v2937
          %v2939 = vcombine.low %v2931, %v2938
          %v2940 = vcombine.low %v2645, %v2658
          %v2941 = vcombine.low %v2671, %v2684
          %v2943 = vunpack.c.l.s4 1983009808
          %v2944 = vunpack.c.0.s8 %v2943
          %v2945 = vlaneseq
          %v2946 = vshrl.u32 %v2945, 7
          %v2947 = vsub.s32 %v2944, %v2946
          %v2948 = vrot.slane %v2940, %v2947
          %v2950 = vunpack.c.l.s4 1983009808
          %v2951 = vunpack.c.0.s8 %v2950
          %v2952 = vlaneseq
          %v2953 = vshrl.u32 %v2952, 7
          %v2954 = vsub.s32 %v2951, %v2953
          %v2955 = vrot.slane %v2941, %v2954
          %v2956 = vcombine.low %v2948, %v2955
          %v2957 = vcombine.low %v2697, %v2710
          %v2958 = vcombine.low %v2723, %v2736
          %v2960 = vunpack.c.l.s4 1983009808
          %v2961 = vunpack.c.0.s8 %v2960
          %v2962 = vlaneseq
          %v2963 = vshrl.u32 %v2962, 7
          %v2964 = vsub.s32 %v2961, %v2963
          %v2965 = vrot.slane %v2957, %v2964
          %v2967 = vunpack.c.l.s4 1983009808
          %v2968 = vunpack.c.0.s8 %v2967
          %v2969 = vlaneseq
          %v2970 = vshrl.u32 %v2969, 7
          %v2971 = vsub.s32 %v2968, %v2970
          %v2972 = vrot.slane %v2958, %v2971
          %v2973 = vcombine.low %v2965, %v2972
          %v2974 = vcombine.low %v2749, %v2762
          %v2975 = vcombine.low %v2775, %v2788
          %v2977 = vunpack.c.l.s4 1983009808
          %v2978 = vunpack.c.0.s8 %v2977
          %v2979 = vlaneseq
          %v2980 = vshrl.u32 %v2979, 7
          %v2981 = vsub.s32 %v2978, %v2980
          %v2982 = vrot.slane %v2974, %v2981
          %v2984 = vunpack.c.l.s4 1983009808
          %v2985 = vunpack.c.0.s8 %v2984
          %v2986 = vlaneseq
          %v2987 = vshrl.u32 %v2986, 7
          %v2988 = vsub.s32 %v2985, %v2987
          %v2989 = vrot.slane %v2975, %v2988
          %v2990 = vcombine.low %v2982, %v2989
          %vm2991 = vcmask 1044484
          %v2992 = vsel %vm2991, %v2939, %v2939
          %vm2993 = vcmask 1046534
          %v2994 = vsel %vm2993, %v2939, %v2992
          %v2995 = vrot.slane %v2973, 7
          %vm2996 = vcmask 1041409
          %v2997 = vsel %vm2996, %v2995, %v2994
          %vm2998 = vcmask 1043459
          %v2999 = vsel %vm2998, %v2995, %v2997
          %vm3000 = vcmask 1045509
          %v3001 = vsel %vm3000, %v2995, %v2999
          %vm3002 = vcmask 1047559
          %v3003 = vsel %vm3002, %v2995, %v3001
          %v3004 = vsel %vm2991, %v2956, %v2956
          %v3005 = vsel %vm2993, %v2956, %v3004
          %v3006 = vrot.slane %v2990, 7
          %v3007 = vsel %vm2996, %v3006, %v3005
          %v3008 = vsel %vm2998, %v3006, %v3007
          %v3009 = vsel %vm3000, %v3006, %v3008
          %v3010 = vsel %vm3002, %v3006, %v3009
          %v3013 = vmax.f32 %v2905, %v3003
          %v3014 = vmax.f32 %v2906, %v3010
          %3015 = vst [vmem:[#allocation2] sm:$0xff] %v3013
          %3016 = vst [vmem:[#allocation2 + $0x8] sm:$0xff] %v3014
        $region170: #{tpu_custom_call.1} parent=125 // pred_fallthru
          _
        %p3017 = scmp.eq.s32.totalorder %s40, 3
        // Predicated region
        $region171: #{tpu_custom_call.1} parent=125 // pred_check
          %p3018 = pneg %p3017
        $region172: #{tpu_custom_call.1} parent=125 // pred_check_branch
          %3020 = sbr.rel (%p3018) target = $region174
        $region173: #{tpu_custom_call.1} parent=125 // pred_region
          %v3021 = vld [vmem:[#allocation2] sm:$0xff]
          %v3022 = vld [vmem:[#allocation2 + $0x8] sm:$0xff]
          %v3025 = vcombine.high %v3021, %v3021
          %v3027 = vunpack.c.l.s4 1983009808
          %v3028 = vunpack.c.0.s8 %v3027
          %v3029 = vlaneseq
          %v3030 = vshrl.u32 %v3029, 7
          %v3031 = vsub.s32 %v3028, %v3030
          %v3032 = vrot.slane %v3021, %v3031
          %v3034 = vunpack.c.l.s4 1983009808
          %v3035 = vunpack.c.0.s8 %v3034
          %v3036 = vlaneseq
          %v3037 = vshrl.u32 %v3036, 7
          %v3038 = vsub.s32 %v3035, %v3037
          %v3039 = vrot.slane %v3025, %v3038
          %v3040 = vcombine.high %v3032, %v3032
          %v3041 = vcombine.high %v3039, %v3039
          %v3042 = vcombine.high %v3022, %v3022
          %v3044 = vunpack.c.l.s4 1983009808
          %v3045 = vunpack.c.0.s8 %v3044
          %v3046 = vlaneseq
          %v3047 = vshrl.u32 %v3046, 7
          %v3048 = vsub.s32 %v3045, %v3047
          %v3049 = vrot.slane %v3022, %v3048
          %v3051 = vunpack.c.l.s4 1983009808
          %v3052 = vunpack.c.0.s8 %v3051
          %v3053 = vlaneseq
          %v3054 = vshrl.u32 %v3053, 7
          %v3055 = vsub.s32 %v3052, %v3054
          %v3056 = vrot.slane %v3042, %v3055
          %v3057 = vcombine.high %v3049, %v3049
          %v3058 = vcombine.high %v3056, %v3056
          %v3067 = vpack.c.bf16 %v3032, %v3032
          %v3068 = vpack.c.bf16 %v3040, %v3040
          %v3069 = vpack.c.bf16 %v3039, %v3039
          %v3070 = vpack.c.bf16 %v3041, %v3041
          %v3071 = vpack.c.bf16 %v3049, %v3049
          %v3072 = vpack.c.bf16 %v3057, %v3057
          %v3073 = vpack.c.bf16 %v3056, %v3056
          %v3074 = vpack.c.bf16 %v3058, %v3058
          %v3075 = vld [vmem:[#allocation13] sm:$0xff]
          %v3076 = vld [vmem:[#allocation13 + $0x8] sm:$0xff]
          %v3077 = vld [vmem:[#allocation13 + $0x10] sm:$0xff]
          %v3078 = vld [vmem:[#allocation13 + $0x18] sm:$0xff]
          %v3079 = vld [vmem:[#allocation13 + $0x20] sm:$0xff]
          %v3080 = vld [vmem:[#allocation13 + $0x28] sm:$0xff]
          %v3081 = vld [vmem:[#allocation13 + $0x30] sm:$0xff]
          %v3082 = vld [vmem:[#allocation13 + $0x38] sm:$0xff]
          %v3083 = vld [vmem:[#allocation13 + $0x40] sm:$0xff]
          %v3084 = vld [vmem:[#allocation13 + $0x48] sm:$0xff]
          %v3085 = vld [vmem:[#allocation13 + $0x50] sm:$0xff]
          %v3086 = vld [vmem:[#allocation13 + $0x58] sm:$0xff]
          %v3087 = vld [vmem:[#allocation13 + $0x60] sm:$0xff]
          %v3088 = vld [vmem:[#allocation13 + $0x68] sm:$0xff]
          %v3089 = vld [vmem:[#allocation13 + $0x70] sm:$0xff]
          %v3090 = vld [vmem:[#allocation13 + $0x78] sm:$0xff]
          %v3091 = vld [vmem:[#allocation13 + $0x80] sm:$0xff]
          %v3092 = vld [vmem:[#allocation13 + $0x88] sm:$0xff]
          %v3093 = vld [vmem:[#allocation13 + $0x90] sm:$0xff]
          %v3094 = vld [vmem:[#allocation13 + $0x98] sm:$0xff]
          %v3095 = vld [vmem:[#allocation13 + $0xa0] sm:$0xff]
          %v3096 = vld [vmem:[#allocation13 + $0xa8] sm:$0xff]
          %v3097 = vld [vmem:[#allocation13 + $0xb0] sm:$0xff]
          %v3098 = vld [vmem:[#allocation13 + $0xb8] sm:$0xff]
          %v3099 = vld [vmem:[#allocation13 + $0xc0] sm:$0xff]
          %v3100 = vld [vmem:[#allocation13 + $0xc8] sm:$0xff]
          %v3101 = vld [vmem:[#allocation13 + $0xd0] sm:$0xff]
          %v3102 = vld [vmem:[#allocation13 + $0xd8] sm:$0xff]
          %v3103 = vld [vmem:[#allocation13 + $0xe0] sm:$0xff]
          %v3104 = vld [vmem:[#allocation13 + $0xe8] sm:$0xff]
          %v3105 = vld [vmem:[#allocation13 + $0xf0] sm:$0xff]
          %v3106 = vld [vmem:[#allocation13 + $0xf8] sm:$0xff]
          %v3107 = vld [vmem:[#allocation13 + $0x100] sm:$0xff]
          %v3108 = vld [vmem:[#allocation13 + $0x108] sm:$0xff]
          %v3109 = vld [vmem:[#allocation13 + $0x110] sm:$0xff]
          %v3110 = vld [vmem:[#allocation13 + $0x118] sm:$0xff]
          %v3111 = vld [vmem:[#allocation13 + $0x120] sm:$0xff]
          %v3112 = vld [vmem:[#allocation13 + $0x128] sm:$0xff]
          %v3113 = vld [vmem:[#allocation13 + $0x130] sm:$0xff]
          %v3114 = vld [vmem:[#allocation13 + $0x138] sm:$0xff]
          %v3115 = vld [vmem:[#allocation13 + $0x140] sm:$0xff]
          %v3116 = vld [vmem:[#allocation13 + $0x148] sm:$0xff]
          %v3117 = vld [vmem:[#allocation13 + $0x150] sm:$0xff]
          %v3118 = vld [vmem:[#allocation13 + $0x158] sm:$0xff]
          %v3119 = vld [vmem:[#allocation13 + $0x160] sm:$0xff]
          %v3120 = vld [vmem:[#allocation13 + $0x168] sm:$0xff]
          %v3121 = vld [vmem:[#allocation13 + $0x170] sm:$0xff]
          %v3122 = vld [vmem:[#allocation13 + $0x178] sm:$0xff]
          %v3123 = vld [vmem:[#allocation13 + $0x180] sm:$0xff]
          %v3124 = vld [vmem:[#allocation13 + $0x188] sm:$0xff]
          %v3125 = vld [vmem:[#allocation13 + $0x190] sm:$0xff]
          %v3126 = vld [vmem:[#allocation13 + $0x198] sm:$0xff]
          %v3127 = vld [vmem:[#allocation13 + $0x1a0] sm:$0xff]
          %v3128 = vld [vmem:[#allocation13 + $0x1a8] sm:$0xff]
          %v3129 = vld [vmem:[#allocation13 + $0x1b0] sm:$0xff]
          %v3130 = vld [vmem:[#allocation13 + $0x1b8] sm:$0xff]
          %v3131 = vld [vmem:[#allocation13 + $0x1c0] sm:$0xff]
          %v3132 = vld [vmem:[#allocation13 + $0x1c8] sm:$0xff]
          %v3133 = vld [vmem:[#allocation13 + $0x1d0] sm:$0xff]
          %v3134 = vld [vmem:[#allocation13 + $0x1d8] sm:$0xff]
          %v3135 = vld [vmem:[#allocation13 + $0x1e0] sm:$0xff]
          %v3136 = vld [vmem:[#allocation13 + $0x1e8] sm:$0xff]
          %v3137 = vld [vmem:[#allocation13 + $0x1f0] sm:$0xff]
          %v3138 = vld [vmem:[#allocation13 + $0x1f8] sm:$0xff]
          %v3139 = vld [vmem:[#allocation13 + $0x200] sm:$0xff]
          %v3140 = vld [vmem:[#allocation13 + $0x208] sm:$0xff]
          %v3141 = vld [vmem:[#allocation13 + $0x210] sm:$0xff]
          %v3142 = vld [vmem:[#allocation13 + $0x218] sm:$0xff]
          %v3143 = vld [vmem:[#allocation13 + $0x220] sm:$0xff]
          %v3144 = vld [vmem:[#allocation13 + $0x228] sm:$0xff]
          %v3145 = vld [vmem:[#allocation13 + $0x230] sm:$0xff]
          %v3146 = vld [vmem:[#allocation13 + $0x238] sm:$0xff]
          %v3147 = vld [vmem:[#allocation13 + $0x240] sm:$0xff]
          %v3148 = vld [vmem:[#allocation13 + $0x248] sm:$0xff]
          %v3149 = vld [vmem:[#allocation13 + $0x250] sm:$0xff]
          %v3150 = vld [vmem:[#allocation13 + $0x258] sm:$0xff]
          %v3151 = vld [vmem:[#allocation13 + $0x260] sm:$0xff]
          %v3152 = vld [vmem:[#allocation13 + $0x268] sm:$0xff]
          %v3153 = vld [vmem:[#allocation13 + $0x270] sm:$0xff]
          %v3154 = vld [vmem:[#allocation13 + $0x278] sm:$0xff]
          %v3155 = vld [vmem:[#allocation13 + $0x280] sm:$0xff]
          %v3156 = vld [vmem:[#allocation13 + $0x288] sm:$0xff]
          %v3157 = vld [vmem:[#allocation13 + $0x290] sm:$0xff]
          %v3158 = vld [vmem:[#allocation13 + $0x298] sm:$0xff]
          %v3159 = vld [vmem:[#allocation13 + $0x2a0] sm:$0xff]
          %v3160 = vld [vmem:[#allocation13 + $0x2a8] sm:$0xff]
          %v3161 = vld [vmem:[#allocation13 + $0x2b0] sm:$0xff]
          %v3162 = vld [vmem:[#allocation13 + $0x2b8] sm:$0xff]
          %v3163 = vld [vmem:[#allocation13 + $0x2c0] sm:$0xff]
          %v3164 = vld [vmem:[#allocation13 + $0x2c8] sm:$0xff]
          %v3165 = vld [vmem:[#allocation13 + $0x2d0] sm:$0xff]
          %v3166 = vld [vmem:[#allocation13 + $0x2d8] sm:$0xff]
          %v3167 = vld [vmem:[#allocation13 + $0x2e0] sm:$0xff]
          %v3168 = vld [vmem:[#allocation13 + $0x2e8] sm:$0xff]
          %v3169 = vld [vmem:[#allocation13 + $0x2f0] sm:$0xff]
          %v3170 = vld [vmem:[#allocation13 + $0x2f8] sm:$0xff]
          %v3171 = vld [vmem:[#allocation13 + $0x300] sm:$0xff]
          %v3172 = vld [vmem:[#allocation13 + $0x308] sm:$0xff]
          %v3173 = vld [vmem:[#allocation13 + $0x310] sm:$0xff]
          %v3174 = vld [vmem:[#allocation13 + $0x318] sm:$0xff]
          %v3175 = vld [vmem:[#allocation13 + $0x320] sm:$0xff]
          %v3176 = vld [vmem:[#allocation13 + $0x328] sm:$0xff]
          %v3177 = vld [vmem:[#allocation13 + $0x330] sm:$0xff]
          %v3178 = vld [vmem:[#allocation13 + $0x338] sm:$0xff]
          %v3179 = vld [vmem:[#allocation13 + $0x340] sm:$0xff]
          %v3180 = vld [vmem:[#allocation13 + $0x348] sm:$0xff]
          %v3181 = vld [vmem:[#allocation13 + $0x350] sm:$0xff]
          %v3182 = vld [vmem:[#allocation13 + $0x358] sm:$0xff]
          %v3183 = vld [vmem:[#allocation13 + $0x360] sm:$0xff]
          %v3184 = vld [vmem:[#allocation13 + $0x368] sm:$0xff]
          %v3185 = vld [vmem:[#allocation13 + $0x370] sm:$0xff]
          %v3186 = vld [vmem:[#allocation13 + $0x378] sm:$0xff]
          %v3187 = vld [vmem:[#allocation13 + $0x380] sm:$0xff]
          %v3188 = vld [vmem:[#allocation13 + $0x388] sm:$0xff]
          %v3189 = vld [vmem:[#allocation13 + $0x390] sm:$0xff]
          %v3190 = vld [vmem:[#allocation13 + $0x398] sm:$0xff]
          %v3191 = vld [vmem:[#allocation13 + $0x3a0] sm:$0xff]
          %v3192 = vld [vmem:[#allocation13 + $0x3a8] sm:$0xff]
          %v3193 = vld [vmem:[#allocation13 + $0x3b0] sm:$0xff]
          %v3194 = vld [vmem:[#allocation13 + $0x3b8] sm:$0xff]
          %v3195 = vld [vmem:[#allocation13 + $0x3c0] sm:$0xff]
          %v3196 = vld [vmem:[#allocation13 + $0x3c8] sm:$0xff]
          %v3197 = vld [vmem:[#allocation13 + $0x3d0] sm:$0xff]
          %v3198 = vld [vmem:[#allocation13 + $0x3d8] sm:$0xff]
          %v3199 = vld [vmem:[#allocation13 + $0x3e0] sm:$0xff]
          %v3200 = vld [vmem:[#allocation13 + $0x3e8] sm:$0xff]
          %v3201 = vld [vmem:[#allocation13 + $0x3f0] sm:$0xff]
          %v3202 = vld [vmem:[#allocation13 + $0x3f8] sm:$0xff]
          %v3203 = vld [vmem:[#allocation13 + $0x400] sm:$0xff]
          %v3204 = vld [vmem:[#allocation13 + $0x408] sm:$0xff]
          %v3205 = vld [vmem:[#allocation13 + $0x410] sm:$0xff]
          %v3206 = vld [vmem:[#allocation13 + $0x418] sm:$0xff]
          %v3207 = vld [vmem:[#allocation13 + $0x420] sm:$0xff]
          %v3208 = vld [vmem:[#allocation13 + $0x428] sm:$0xff]
          %v3209 = vld [vmem:[#allocation13 + $0x430] sm:$0xff]
          %v3210 = vld [vmem:[#allocation13 + $0x438] sm:$0xff]
          %v3211 = vld [vmem:[#allocation13 + $0x440] sm:$0xff]
          %v3212 = vld [vmem:[#allocation13 + $0x448] sm:$0xff]
          %v3213 = vld [vmem:[#allocation13 + $0x450] sm:$0xff]
          %v3214 = vld [vmem:[#allocation13 + $0x458] sm:$0xff]
          %v3215 = vld [vmem:[#allocation13 + $0x460] sm:$0xff]
          %v3216 = vld [vmem:[#allocation13 + $0x468] sm:$0xff]
          %v3217 = vld [vmem:[#allocation13 + $0x470] sm:$0xff]
          %v3218 = vld [vmem:[#allocation13 + $0x478] sm:$0xff]
          %v3219 = vld [vmem:[#allocation13 + $0x480] sm:$0xff]
          %v3220 = vld [vmem:[#allocation13 + $0x488] sm:$0xff]
          %v3221 = vld [vmem:[#allocation13 + $0x490] sm:$0xff]
          %v3222 = vld [vmem:[#allocation13 + $0x498] sm:$0xff]
          %v3223 = vld [vmem:[#allocation13 + $0x4a0] sm:$0xff]
          %v3224 = vld [vmem:[#allocation13 + $0x4a8] sm:$0xff]
          %v3225 = vld [vmem:[#allocation13 + $0x4b0] sm:$0xff]
          %v3226 = vld [vmem:[#allocation13 + $0x4b8] sm:$0xff]
          %v3227 = vld [vmem:[#allocation13 + $0x4c0] sm:$0xff]
          %v3228 = vld [vmem:[#allocation13 + $0x4c8] sm:$0xff]
          %v3229 = vld [vmem:[#allocation13 + $0x4d0] sm:$0xff]
          %v3230 = vld [vmem:[#allocation13 + $0x4d8] sm:$0xff]
          %v3231 = vld [vmem:[#allocation13 + $0x4e0] sm:$0xff]
          %v3232 = vld [vmem:[#allocation13 + $0x4e8] sm:$0xff]
          %v3233 = vld [vmem:[#allocation13 + $0x4f0] sm:$0xff]
          %v3234 = vld [vmem:[#allocation13 + $0x4f8] sm:$0xff]
          %v3235 = vld [vmem:[#allocation13 + $0x500] sm:$0xff]
          %v3236 = vld [vmem:[#allocation13 + $0x508] sm:$0xff]
          %v3237 = vld [vmem:[#allocation13 + $0x510] sm:$0xff]
          %v3238 = vld [vmem:[#allocation13 + $0x518] sm:$0xff]
          %v3239 = vld [vmem:[#allocation13 + $0x520] sm:$0xff]
          %v3240 = vld [vmem:[#allocation13 + $0x528] sm:$0xff]
          %v3241 = vld [vmem:[#allocation13 + $0x530] sm:$0xff]
          %v3242 = vld [vmem:[#allocation13 + $0x538] sm:$0xff]
          %v3243 = vld [vmem:[#allocation13 + $0x540] sm:$0xff]
          %v3244 = vld [vmem:[#allocation13 + $0x548] sm:$0xff]
          %v3245 = vld [vmem:[#allocation13 + $0x550] sm:$0xff]
          %v3246 = vld [vmem:[#allocation13 + $0x558] sm:$0xff]
          %v3247 = vld [vmem:[#allocation13 + $0x560] sm:$0xff]
          %v3248 = vld [vmem:[#allocation13 + $0x568] sm:$0xff]
          %v3249 = vld [vmem:[#allocation13 + $0x570] sm:$0xff]
          %v3250 = vld [vmem:[#allocation13 + $0x578] sm:$0xff]
          %v3251 = vld [vmem:[#allocation13 + $0x580] sm:$0xff]
          %v3252 = vld [vmem:[#allocation13 + $0x588] sm:$0xff]
          %v3253 = vld [vmem:[#allocation13 + $0x590] sm:$0xff]
          %v3254 = vld [vmem:[#allocation13 + $0x598] sm:$0xff]
          %v3255 = vld [vmem:[#allocation13 + $0x5a0] sm:$0xff]
          %v3256 = vld [vmem:[#allocation13 + $0x5a8] sm:$0xff]
          %v3257 = vld [vmem:[#allocation13 + $0x5b0] sm:$0xff]
          %v3258 = vld [vmem:[#allocation13 + $0x5b8] sm:$0xff]
          %v3259 = vld [vmem:[#allocation13 + $0x5c0] sm:$0xff]
          %v3260 = vld [vmem:[#allocation13 + $0x5c8] sm:$0xff]
          %v3261 = vld [vmem:[#allocation13 + $0x5d0] sm:$0xff]
          %v3262 = vld [vmem:[#allocation13 + $0x5d8] sm:$0xff]
          %v3263 = vld [vmem:[#allocation13 + $0x5e0] sm:$0xff]
          %v3264 = vld [vmem:[#allocation13 + $0x5e8] sm:$0xff]
          %v3265 = vld [vmem:[#allocation13 + $0x5f0] sm:$0xff]
          %v3266 = vld [vmem:[#allocation13 + $0x5f8] sm:$0xff]
          %v3267 = vld [vmem:[#allocation13 + $0x600] sm:$0xff]
          %v3268 = vld [vmem:[#allocation13 + $0x608] sm:$0xff]
          %v3269 = vld [vmem:[#allocation13 + $0x610] sm:$0xff]
          %v3270 = vld [vmem:[#allocation13 + $0x618] sm:$0xff]
          %v3271 = vld [vmem:[#allocation13 + $0x620] sm:$0xff]
          %v3272 = vld [vmem:[#allocation13 + $0x628] sm:$0xff]
          %v3273 = vld [vmem:[#allocation13 + $0x630] sm:$0xff]
          %v3274 = vld [vmem:[#allocation13 + $0x638] sm:$0xff]
          %v3275 = vld [vmem:[#allocation13 + $0x640] sm:$0xff]
          %v3276 = vld [vmem:[#allocation13 + $0x648] sm:$0xff]
          %v3277 = vld [vmem:[#allocation13 + $0x650] sm:$0xff]
          %v3278 = vld [vmem:[#allocation13 + $0x658] sm:$0xff]
          %v3279 = vld [vmem:[#allocation13 + $0x660] sm:$0xff]
          %v3280 = vld [vmem:[#allocation13 + $0x668] sm:$0xff]
          %v3281 = vld [vmem:[#allocation13 + $0x670] sm:$0xff]
          %v3282 = vld [vmem:[#allocation13 + $0x678] sm:$0xff]
          %v3283 = vld [vmem:[#allocation13 + $0x680] sm:$0xff]
          %v3284 = vld [vmem:[#allocation13 + $0x688] sm:$0xff]
          %v3285 = vld [vmem:[#allocation13 + $0x690] sm:$0xff]
          %v3286 = vld [vmem:[#allocation13 + $0x698] sm:$0xff]
          %v3287 = vld [vmem:[#allocation13 + $0x6a0] sm:$0xff]
          %v3288 = vld [vmem:[#allocation13 + $0x6a8] sm:$0xff]
          %v3289 = vld [vmem:[#allocation13 + $0x6b0] sm:$0xff]
          %v3290 = vld [vmem:[#allocation13 + $0x6b8] sm:$0xff]
          %v3291 = vld [vmem:[#allocation13 + $0x6c0] sm:$0xff]
          %v3292 = vld [vmem:[#allocation13 + $0x6c8] sm:$0xff]
          %v3293 = vld [vmem:[#allocation13 + $0x6d0] sm:$0xff]
          %v3294 = vld [vmem:[#allocation13 + $0x6d8] sm:$0xff]
          %v3295 = vld [vmem:[#allocation13 + $0x6e0] sm:$0xff]
          %v3296 = vld [vmem:[#allocation13 + $0x6e8] sm:$0xff]
          %v3297 = vld [vmem:[#allocation13 + $0x6f0] sm:$0xff]
          %v3298 = vld [vmem:[#allocation13 + $0x6f8] sm:$0xff]
          %v3299 = vld [vmem:[#allocation13 + $0x700] sm:$0xff]
          %v3300 = vld [vmem:[#allocation13 + $0x708] sm:$0xff]
          %v3301 = vld [vmem:[#allocation13 + $0x710] sm:$0xff]
          %v3302 = vld [vmem:[#allocation13 + $0x718] sm:$0xff]
          %v3303 = vld [vmem:[#allocation13 + $0x720] sm:$0xff]
          %v3304 = vld [vmem:[#allocation13 + $0x728] sm:$0xff]
          %v3305 = vld [vmem:[#allocation13 + $0x730] sm:$0xff]
          %v3306 = vld [vmem:[#allocation13 + $0x738] sm:$0xff]
          %v3307 = vld [vmem:[#allocation13 + $0x740] sm:$0xff]
          %v3308 = vld [vmem:[#allocation13 + $0x748] sm:$0xff]
          %v3309 = vld [vmem:[#allocation13 + $0x750] sm:$0xff]
          %v3310 = vld [vmem:[#allocation13 + $0x758] sm:$0xff]
          %v3311 = vld [vmem:[#allocation13 + $0x760] sm:$0xff]
          %v3312 = vld [vmem:[#allocation13 + $0x768] sm:$0xff]
          %v3313 = vld [vmem:[#allocation13 + $0x770] sm:$0xff]
          %v3314 = vld [vmem:[#allocation13 + $0x778] sm:$0xff]
          %v3315 = vld [vmem:[#allocation13 + $0x780] sm:$0xff]
          %v3316 = vld [vmem:[#allocation13 + $0x788] sm:$0xff]
          %v3317 = vld [vmem:[#allocation13 + $0x790] sm:$0xff]
          %v3318 = vld [vmem:[#allocation13 + $0x798] sm:$0xff]
          %v3319 = vld [vmem:[#allocation13 + $0x7a0] sm:$0xff]
          %v3320 = vld [vmem:[#allocation13 + $0x7a8] sm:$0xff]
          %v3321 = vld [vmem:[#allocation13 + $0x7b0] sm:$0xff]
          %v3322 = vld [vmem:[#allocation13 + $0x7b8] sm:$0xff]
          %v3323 = vld [vmem:[#allocation13 + $0x7c0] sm:$0xff]
          %v3324 = vld [vmem:[#allocation13 + $0x7c8] sm:$0xff]
          %v3325 = vld [vmem:[#allocation13 + $0x7d0] sm:$0xff]
          %v3326 = vld [vmem:[#allocation13 + $0x7d8] sm:$0xff]
          %v3327 = vld [vmem:[#allocation13 + $0x7e0] sm:$0xff]
          %v3328 = vld [vmem:[#allocation13 + $0x7e8] sm:$0xff]
          %v3329 = vld [vmem:[#allocation13 + $0x7f0] sm:$0xff]
          %v3330 = vld [vmem:[#allocation13 + $0x7f8] sm:$0xff]
          %v3587 = vunpack.c.l.b16 %v3075
          %v3588 = vunpack.c.h.b16 %v3075
          %v3589 = vunpack.c.l.b16 %v3076
          %v3590 = vunpack.c.h.b16 %v3076
          %v3591 = vunpack.c.l.b16 %v3077
          %v3592 = vunpack.c.h.b16 %v3077
          %v3593 = vunpack.c.l.b16 %v3078
          %v3594 = vunpack.c.h.b16 %v3078
          %v3595 = vunpack.c.l.b16 %v3079
          %v3596 = vunpack.c.h.b16 %v3079
          %v3597 = vunpack.c.l.b16 %v3080
          %v3598 = vunpack.c.h.b16 %v3080
          %v3599 = vunpack.c.l.b16 %v3081
          %v3600 = vunpack.c.h.b16 %v3081
          %v3601 = vunpack.c.l.b16 %v3082
          %v3602 = vunpack.c.h.b16 %v3082
          %v3603 = vunpack.c.l.b16 %v3083
          %v3604 = vunpack.c.h.b16 %v3083
          %v3605 = vunpack.c.l.b16 %v3084
          %v3606 = vunpack.c.h.b16 %v3084
          %v3607 = vunpack.c.l.b16 %v3085
          %v3608 = vunpack.c.h.b16 %v3085
          %v3609 = vunpack.c.l.b16 %v3086
          %v3610 = vunpack.c.h.b16 %v3086
          %v3611 = vunpack.c.l.b16 %v3087
          %v3612 = vunpack.c.h.b16 %v3087
          %v3613 = vunpack.c.l.b16 %v3088
          %v3614 = vunpack.c.h.b16 %v3088
          %v3615 = vunpack.c.l.b16 %v3089
          %v3616 = vunpack.c.h.b16 %v3089
          %v3617 = vunpack.c.l.b16 %v3090
          %v3618 = vunpack.c.h.b16 %v3090
          %v3619 = vunpack.c.l.b16 %v3091
          %v3620 = vunpack.c.h.b16 %v3091
          %v3621 = vunpack.c.l.b16 %v3092
          %v3622 = vunpack.c.h.b16 %v3092
          %v3623 = vunpack.c.l.b16 %v3093
          %v3624 = vunpack.c.h.b16 %v3093
          %v3625 = vunpack.c.l.b16 %v3094
          %v3626 = vunpack.c.h.b16 %v3094
          %v3627 = vunpack.c.l.b16 %v3095
          %v3628 = vunpack.c.h.b16 %v3095
          %v3629 = vunpack.c.l.b16 %v3096
          %v3630 = vunpack.c.h.b16 %v3096
          %v3631 = vunpack.c.l.b16 %v3097
          %v3632 = vunpack.c.h.b16 %v3097
          %v3633 = vunpack.c.l.b16 %v3098
          %v3634 = vunpack.c.h.b16 %v3098
          %v3635 = vunpack.c.l.b16 %v3099
          %v3636 = vunpack.c.h.b16 %v3099
          %v3637 = vunpack.c.l.b16 %v3100
          %v3638 = vunpack.c.h.b16 %v3100
          %v3639 = vunpack.c.l.b16 %v3101
          %v3640 = vunpack.c.h.b16 %v3101
          %v3641 = vunpack.c.l.b16 %v3102
          %v3642 = vunpack.c.h.b16 %v3102
          %v3643 = vunpack.c.l.b16 %v3103
          %v3644 = vunpack.c.h.b16 %v3103
          %v3645 = vunpack.c.l.b16 %v3104
          %v3646 = vunpack.c.h.b16 %v3104
          %v3647 = vunpack.c.l.b16 %v3105
          %v3648 = vunpack.c.h.b16 %v3105
          %v3649 = vunpack.c.l.b16 %v3106
          %v3650 = vunpack.c.h.b16 %v3106
          %v3651 = vunpack.c.l.b16 %v3107
          %v3652 = vunpack.c.h.b16 %v3107
          %v3653 = vunpack.c.l.b16 %v3108
          %v3654 = vunpack.c.h.b16 %v3108
          %v3655 = vunpack.c.l.b16 %v3109
          %v3656 = vunpack.c.h.b16 %v3109
          %v3657 = vunpack.c.l.b16 %v3110
          %v3658 = vunpack.c.h.b16 %v3110
          %v3659 = vunpack.c.l.b16 %v3111
          %v3660 = vunpack.c.h.b16 %v3111
          %v3661 = vunpack.c.l.b16 %v3112
          %v3662 = vunpack.c.h.b16 %v3112
          %v3663 = vunpack.c.l.b16 %v3113
          %v3664 = vunpack.c.h.b16 %v3113
          %v3665 = vunpack.c.l.b16 %v3114
          %v3666 = vunpack.c.h.b16 %v3114
          %v3667 = vunpack.c.l.b16 %v3115
          %v3668 = vunpack.c.h.b16 %v3115
          %v3669 = vunpack.c.l.b16 %v3116
          %v3670 = vunpack.c.h.b16 %v3116
          %v3671 = vunpack.c.l.b16 %v3117
          %v3672 = vunpack.c.h.b16 %v3117
          %v3673 = vunpack.c.l.b16 %v3118
          %v3674 = vunpack.c.h.b16 %v3118
          %v3675 = vunpack.c.l.b16 %v3119
          %v3676 = vunpack.c.h.b16 %v3119
          %v3677 = vunpack.c.l.b16 %v3120
          %v3678 = vunpack.c.h.b16 %v3120
          %v3679 = vunpack.c.l.b16 %v3121
          %v3680 = vunpack.c.h.b16 %v3121
          %v3681 = vunpack.c.l.b16 %v3122
          %v3682 = vunpack.c.h.b16 %v3122
          %v3683 = vunpack.c.l.b16 %v3123
          %v3684 = vunpack.c.h.b16 %v3123
          %v3685 = vunpack.c.l.b16 %v3124
          %v3686 = vunpack.c.h.b16 %v3124
          %v3687 = vunpack.c.l.b16 %v3125
          %v3688 = vunpack.c.h.b16 %v3125
          %v3689 = vunpack.c.l.b16 %v3126
          %v3690 = vunpack.c.h.b16 %v3126
          %v3691 = vunpack.c.l.b16 %v3127
          %v3692 = vunpack.c.h.b16 %v3127
          %v3693 = vunpack.c.l.b16 %v3128
          %v3694 = vunpack.c.h.b16 %v3128
          %v3695 = vunpack.c.l.b16 %v3129
          %v3696 = vunpack.c.h.b16 %v3129
          %v3697 = vunpack.c.l.b16 %v3130
          %v3698 = vunpack.c.h.b16 %v3130
          %v3699 = vunpack.c.l.b16 %v3131
          %v3700 = vunpack.c.h.b16 %v3131
          %v3701 = vunpack.c.l.b16 %v3132
          %v3702 = vunpack.c.h.b16 %v3132
          %v3703 = vunpack.c.l.b16 %v3133
          %v3704 = vunpack.c.h.b16 %v3133
          %v3705 = vunpack.c.l.b16 %v3134
          %v3706 = vunpack.c.h.b16 %v3134
          %v3707 = vunpack.c.l.b16 %v3135
          %v3708 = vunpack.c.h.b16 %v3135
          %v3709 = vunpack.c.l.b16 %v3136
          %v3710 = vunpack.c.h.b16 %v3136
          %v3711 = vunpack.c.l.b16 %v3137
          %v3712 = vunpack.c.h.b16 %v3137
          %v3713 = vunpack.c.l.b16 %v3138
          %v3714 = vunpack.c.h.b16 %v3138
          %v3715 = vunpack.c.l.b16 %v3139
          %v3716 = vunpack.c.h.b16 %v3139
          %v3717 = vunpack.c.l.b16 %v3140
          %v3718 = vunpack.c.h.b16 %v3140
          %v3719 = vunpack.c.l.b16 %v3141
          %v3720 = vunpack.c.h.b16 %v3141
          %v3721 = vunpack.c.l.b16 %v3142
          %v3722 = vunpack.c.h.b16 %v3142
          %v3723 = vunpack.c.l.b16 %v3143
          %v3724 = vunpack.c.h.b16 %v3143
          %v3725 = vunpack.c.l.b16 %v3144
          %v3726 = vunpack.c.h.b16 %v3144
          %v3727 = vunpack.c.l.b16 %v3145
          %v3728 = vunpack.c.h.b16 %v3145
          %v3729 = vunpack.c.l.b16 %v3146
          %v3730 = vunpack.c.h.b16 %v3146
          %v3731 = vunpack.c.l.b16 %v3147
          %v3732 = vunpack.c.h.b16 %v3147
          %v3733 = vunpack.c.l.b16 %v3148
          %v3734 = vunpack.c.h.b16 %v3148
          %v3735 = vunpack.c.l.b16 %v3149
          %v3736 = vunpack.c.h.b16 %v3149
          %v3737 = vunpack.c.l.b16 %v3150
          %v3738 = vunpack.c.h.b16 %v3150
          %v3739 = vunpack.c.l.b16 %v3151
          %v3740 = vunpack.c.h.b16 %v3151
          %v3741 = vunpack.c.l.b16 %v3152
          %v3742 = vunpack.c.h.b16 %v3152
          %v3743 = vunpack.c.l.b16 %v3153
          %v3744 = vunpack.c.h.b16 %v3153
          %v3745 = vunpack.c.l.b16 %v3154
          %v3746 = vunpack.c.h.b16 %v3154
          %v3747 = vunpack.c.l.b16 %v3155
          %v3748 = vunpack.c.h.b16 %v3155
          %v3749 = vunpack.c.l.b16 %v3156
          %v3750 = vunpack.c.h.b16 %v3156
          %v3751 = vunpack.c.l.b16 %v3157
          %v3752 = vunpack.c.h.b16 %v3157
          %v3753 = vunpack.c.l.b16 %v3158
          %v3754 = vunpack.c.h.b16 %v3158
          %v3755 = vunpack.c.l.b16 %v3159
          %v3756 = vunpack.c.h.b16 %v3159
          %v3757 = vunpack.c.l.b16 %v3160
          %v3758 = vunpack.c.h.b16 %v3160
          %v3759 = vunpack.c.l.b16 %v3161
          %v3760 = vunpack.c.h.b16 %v3161
          %v3761 = vunpack.c.l.b16 %v3162
          %v3762 = vunpack.c.h.b16 %v3162
          %v3763 = vunpack.c.l.b16 %v3163
          %v3764 = vunpack.c.h.b16 %v3163
          %v3765 = vunpack.c.l.b16 %v3164
          %v3766 = vunpack.c.h.b16 %v3164
          %v3767 = vunpack.c.l.b16 %v3165
          %v3768 = vunpack.c.h.b16 %v3165
          %v3769 = vunpack.c.l.b16 %v3166
          %v3770 = vunpack.c.h.b16 %v3166
          %v3771 = vunpack.c.l.b16 %v3167
          %v3772 = vunpack.c.h.b16 %v3167
          %v3773 = vunpack.c.l.b16 %v3168
          %v3774 = vunpack.c.h.b16 %v3168
          %v3775 = vunpack.c.l.b16 %v3169
          %v3776 = vunpack.c.h.b16 %v3169
          %v3777 = vunpack.c.l.b16 %v3170
          %v3778 = vunpack.c.h.b16 %v3170
          %v3779 = vunpack.c.l.b16 %v3171
          %v3780 = vunpack.c.h.b16 %v3171
          %v3781 = vunpack.c.l.b16 %v3172
          %v3782 = vunpack.c.h.b16 %v3172
          %v3783 = vunpack.c.l.b16 %v3173
          %v3784 = vunpack.c.h.b16 %v3173
          %v3785 = vunpack.c.l.b16 %v3174
          %v3786 = vunpack.c.h.b16 %v3174
          %v3787 = vunpack.c.l.b16 %v3175
          %v3788 = vunpack.c.h.b16 %v3175
          %v3789 = vunpack.c.l.b16 %v3176
          %v3790 = vunpack.c.h.b16 %v3176
          %v3791 = vunpack.c.l.b16 %v3177
          %v3792 = vunpack.c.h.b16 %v3177
          %v3793 = vunpack.c.l.b16 %v3178
          %v3794 = vunpack.c.h.b16 %v3178
          %v3795 = vunpack.c.l.b16 %v3179
          %v3796 = vunpack.c.h.b16 %v3179
          %v3797 = vunpack.c.l.b16 %v3180
          %v3798 = vunpack.c.h.b16 %v3180
          %v3799 = vunpack.c.l.b16 %v3181
          %v3800 = vunpack.c.h.b16 %v3181
          %v3801 = vunpack.c.l.b16 %v3182
          %v3802 = vunpack.c.h.b16 %v3182
          %v3803 = vunpack.c.l.b16 %v3183
          %v3804 = vunpack.c.h.b16 %v3183
          %v3805 = vunpack.c.l.b16 %v3184
          %v3806 = vunpack.c.h.b16 %v3184
          %v3807 = vunpack.c.l.b16 %v3185
          %v3808 = vunpack.c.h.b16 %v3185
          %v3809 = vunpack.c.l.b16 %v3186
          %v3810 = vunpack.c.h.b16 %v3186
          %v3811 = vunpack.c.l.b16 %v3187
          %v3812 = vunpack.c.h.b16 %v3187
          %v3813 = vunpack.c.l.b16 %v3188
          %v3814 = vunpack.c.h.b16 %v3188
          %v3815 = vunpack.c.l.b16 %v3189
          %v3816 = vunpack.c.h.b16 %v3189
          %v3817 = vunpack.c.l.b16 %v3190
          %v3818 = vunpack.c.h.b16 %v3190
          %v3819 = vunpack.c.l.b16 %v3191
          %v3820 = vunpack.c.h.b16 %v3191
          %v3821 = vunpack.c.l.b16 %v3192
          %v3822 = vunpack.c.h.b16 %v3192
          %v3823 = vunpack.c.l.b16 %v3193
          %v3824 = vunpack.c.h.b16 %v3193
          %v3825 = vunpack.c.l.b16 %v3194
          %v3826 = vunpack.c.h.b16 %v3194
          %v3827 = vunpack.c.l.b16 %v3195
          %v3828 = vunpack.c.h.b16 %v3195
          %v3829 = vunpack.c.l.b16 %v3196
          %v3830 = vunpack.c.h.b16 %v3196
          %v3831 = vunpack.c.l.b16 %v3197
          %v3832 = vunpack.c.h.b16 %v3197
          %v3833 = vunpack.c.l.b16 %v3198
          %v3834 = vunpack.c.h.b16 %v3198
          %v3835 = vunpack.c.l.b16 %v3199
          %v3836 = vunpack.c.h.b16 %v3199
          %v3837 = vunpack.c.l.b16 %v3200
          %v3838 = vunpack.c.h.b16 %v3200
          %v3839 = vunpack.c.l.b16 %v3201
          %v3840 = vunpack.c.h.b16 %v3201
          %v3841 = vunpack.c.l.b16 %v3202
          %v3842 = vunpack.c.h.b16 %v3202
          %v3843 = vunpack.c.l.b16 %v3203
          %v3844 = vunpack.c.h.b16 %v3203
          %v3845 = vunpack.c.l.b16 %v3204
          %v3846 = vunpack.c.h.b16 %v3204
          %v3847 = vunpack.c.l.b16 %v3205
          %v3848 = vunpack.c.h.b16 %v3205
          %v3849 = vunpack.c.l.b16 %v3206
          %v3850 = vunpack.c.h.b16 %v3206
          %v3851 = vunpack.c.l.b16 %v3207
          %v3852 = vunpack.c.h.b16 %v3207
          %v3853 = vunpack.c.l.b16 %v3208
          %v3854 = vunpack.c.h.b16 %v3208
          %v3855 = vunpack.c.l.b16 %v3209
          %v3856 = vunpack.c.h.b16 %v3209
          %v3857 = vunpack.c.l.b16 %v3210
          %v3858 = vunpack.c.h.b16 %v3210
          %v3859 = vunpack.c.l.b16 %v3211
          %v3860 = vunpack.c.h.b16 %v3211
          %v3861 = vunpack.c.l.b16 %v3212
          %v3862 = vunpack.c.h.b16 %v3212
          %v3863 = vunpack.c.l.b16 %v3213
          %v3864 = vunpack.c.h.b16 %v3213
          %v3865 = vunpack.c.l.b16 %v3214
          %v3866 = vunpack.c.h.b16 %v3214
          %v3867 = vunpack.c.l.b16 %v3215
          %v3868 = vunpack.c.h.b16 %v3215
          %v3869 = vunpack.c.l.b16 %v3216
          %v3870 = vunpack.c.h.b16 %v3216
          %v3871 = vunpack.c.l.b16 %v3217
          %v3872 = vunpack.c.h.b16 %v3217
          %v3873 = vunpack.c.l.b16 %v3218
          %v3874 = vunpack.c.h.b16 %v3218
          %v3875 = vunpack.c.l.b16 %v3219
          %v3876 = vunpack.c.h.b16 %v3219
          %v3877 = vunpack.c.l.b16 %v3220
          %v3878 = vunpack.c.h.b16 %v3220
          %v3879 = vunpack.c.l.b16 %v3221
          %v3880 = vunpack.c.h.b16 %v3221
          %v3881 = vunpack.c.l.b16 %v3222
          %v3882 = vunpack.c.h.b16 %v3222
          %v3883 = vunpack.c.l.b16 %v3223
          %v3884 = vunpack.c.h.b16 %v3223
          %v3885 = vunpack.c.l.b16 %v3224
          %v3886 = vunpack.c.h.b16 %v3224
          %v3887 = vunpack.c.l.b16 %v3225
          %v3888 = vunpack.c.h.b16 %v3225
          %v3889 = vunpack.c.l.b16 %v3226
          %v3890 = vunpack.c.h.b16 %v3226
          %v3891 = vunpack.c.l.b16 %v3227
          %v3892 = vunpack.c.h.b16 %v3227
          %v3893 = vunpack.c.l.b16 %v3228
          %v3894 = vunpack.c.h.b16 %v3228
          %v3895 = vunpack.c.l.b16 %v3229
          %v3896 = vunpack.c.h.b16 %v3229
          %v3897 = vunpack.c.l.b16 %v3230
          %v3898 = vunpack.c.h.b16 %v3230
          %v3899 = vunpack.c.l.b16 %v3231
          %v3900 = vunpack.c.h.b16 %v3231
          %v3901 = vunpack.c.l.b16 %v3232
          %v3902 = vunpack.c.h.b16 %v3232
          %v3903 = vunpack.c.l.b16 %v3233
          %v3904 = vunpack.c.h.b16 %v3233
          %v3905 = vunpack.c.l.b16 %v3234
          %v3906 = vunpack.c.h.b16 %v3234
          %v3907 = vunpack.c.l.b16 %v3235
          %v3908 = vunpack.c.h.b16 %v3235
          %v3909 = vunpack.c.l.b16 %v3236
          %v3910 = vunpack.c.h.b16 %v3236
          %v3911 = vunpack.c.l.b16 %v3237
          %v3912 = vunpack.c.h.b16 %v3237
          %v3913 = vunpack.c.l.b16 %v3238
          %v3914 = vunpack.c.h.b16 %v3238
          %v3915 = vunpack.c.l.b16 %v3239
          %v3916 = vunpack.c.h.b16 %v3239
          %v3917 = vunpack.c.l.b16 %v3240
          %v3918 = vunpack.c.h.b16 %v3240
          %v3919 = vunpack.c.l.b16 %v3241
          %v3920 = vunpack.c.h.b16 %v3241
          %v3921 = vunpack.c.l.b16 %v3242
          %v3922 = vunpack.c.h.b16 %v3242
          %v3923 = vunpack.c.l.b16 %v3243
          %v3924 = vunpack.c.h.b16 %v3243
          %v3925 = vunpack.c.l.b16 %v3244
          %v3926 = vunpack.c.h.b16 %v3244
          %v3927 = vunpack.c.l.b16 %v3245
          %v3928 = vunpack.c.h.b16 %v3245
          %v3929 = vunpack.c.l.b16 %v3246
          %v3930 = vunpack.c.h.b16 %v3246
          %v3931 = vunpack.c.l.b16 %v3247
          %v3932 = vunpack.c.h.b16 %v3247
          %v3933 = vunpack.c.l.b16 %v3248
          %v3934 = vunpack.c.h.b16 %v3248
          %v3935 = vunpack.c.l.b16 %v3249
          %v3936 = vunpack.c.h.b16 %v3249
          %v3937 = vunpack.c.l.b16 %v3250
          %v3938 = vunpack.c.h.b16 %v3250
          %v3939 = vunpack.c.l.b16 %v3251
          %v3940 = vunpack.c.h.b16 %v3251
          %v3941 = vunpack.c.l.b16 %v3252
          %v3942 = vunpack.c.h.b16 %v3252
          %v3943 = vunpack.c.l.b16 %v3253
          %v3944 = vunpack.c.h.b16 %v3253
          %v3945 = vunpack.c.l.b16 %v3254
          %v3946 = vunpack.c.h.b16 %v3254
          %v3947 = vunpack.c.l.b16 %v3255
          %v3948 = vunpack.c.h.b16 %v3255
          %v3949 = vunpack.c.l.b16 %v3256
          %v3950 = vunpack.c.h.b16 %v3256
          %v3951 = vunpack.c.l.b16 %v3257
          %v3952 = vunpack.c.h.b16 %v3257
          %v3953 = vunpack.c.l.b16 %v3258
          %v3954 = vunpack.c.h.b16 %v3258
          %v3955 = vunpack.c.l.b16 %v3259
          %v3956 = vunpack.c.h.b16 %v3259
          %v3957 = vunpack.c.l.b16 %v3260
          %v3958 = vunpack.c.h.b16 %v3260
          %v3959 = vunpack.c.l.b16 %v3261
          %v3960 = vunpack.c.h.b16 %v3261
          %v3961 = vunpack.c.l.b16 %v3262
          %v3962 = vunpack.c.h.b16 %v3262
          %v3963 = vunpack.c.l.b16 %v3263
          %v3964 = vunpack.c.h.b16 %v3263
          %v3965 = vunpack.c.l.b16 %v3264
          %v3966 = vunpack.c.h.b16 %v3264
          %v3967 = vunpack.c.l.b16 %v3265
          %v3968 = vunpack.c.h.b16 %v3265
          %v3969 = vunpack.c.l.b16 %v3266
          %v3970 = vunpack.c.h.b16 %v3266
          %v3971 = vunpack.c.l.b16 %v3267
          %v3972 = vunpack.c.h.b16 %v3267
          %v3973 = vunpack.c.l.b16 %v3268
          %v3974 = vunpack.c.h.b16 %v3268
          %v3975 = vunpack.c.l.b16 %v3269
          %v3976 = vunpack.c.h.b16 %v3269
          %v3977 = vunpack.c.l.b16 %v3270
          %v3978 = vunpack.c.h.b16 %v3270
          %v3979 = vunpack.c.l.b16 %v3271
          %v3980 = vunpack.c.h.b16 %v3271
          %v3981 = vunpack.c.l.b16 %v3272
          %v3982 = vunpack.c.h.b16 %v3272
          %v3983 = vunpack.c.l.b16 %v3273
          %v3984 = vunpack.c.h.b16 %v3273
          %v3985 = vunpack.c.l.b16 %v3274
          %v3986 = vunpack.c.h.b16 %v3274
          %v3987 = vunpack.c.l.b16 %v3275
          %v3988 = vunpack.c.h.b16 %v3275
          %v3989 = vunpack.c.l.b16 %v3276
          %v3990 = vunpack.c.h.b16 %v3276
          %v3991 = vunpack.c.l.b16 %v3277
          %v3992 = vunpack.c.h.b16 %v3277
          %v3993 = vunpack.c.l.b16 %v3278
          %v3994 = vunpack.c.h.b16 %v3278
          %v3995 = vunpack.c.l.b16 %v3279
          %v3996 = vunpack.c.h.b16 %v3279
          %v3997 = vunpack.c.l.b16 %v3280
          %v3998 = vunpack.c.h.b16 %v3280
          %v3999 = vunpack.c.l.b16 %v3281
          %v4000 = vunpack.c.h.b16 %v3281
          %v4001 = vunpack.c.l.b16 %v3282
          %v4002 = vunpack.c.h.b16 %v3282
          %v4003 = vunpack.c.l.b16 %v3283
          %v4004 = vunpack.c.h.b16 %v3283
          %v4005 = vunpack.c.l.b16 %v3284
          %v4006 = vunpack.c.h.b16 %v3284
          %v4007 = vunpack.c.l.b16 %v3285
          %v4008 = vunpack.c.h.b16 %v3285
          %v4009 = vunpack.c.l.b16 %v3286
          %v4010 = vunpack.c.h.b16 %v3286
          %v4011 = vunpack.c.l.b16 %v3287
          %v4012 = vunpack.c.h.b16 %v3287
          %v4013 = vunpack.c.l.b16 %v3288
          %v4014 = vunpack.c.h.b16 %v3288
          %v4015 = vunpack.c.l.b16 %v3289
          %v4016 = vunpack.c.h.b16 %v3289
          %v4017 = vunpack.c.l.b16 %v3290
          %v4018 = vunpack.c.h.b16 %v3290
          %v4019 = vunpack.c.l.b16 %v3291
          %v4020 = vunpack.c.h.b16 %v3291
          %v4021 = vunpack.c.l.b16 %v3292
          %v4022 = vunpack.c.h.b16 %v3292
          %v4023 = vunpack.c.l.b16 %v3293
          %v4024 = vunpack.c.h.b16 %v3293
          %v4025 = vunpack.c.l.b16 %v3294
          %v4026 = vunpack.c.h.b16 %v3294
          %v4027 = vunpack.c.l.b16 %v3295
          %v4028 = vunpack.c.h.b16 %v3295
          %v4029 = vunpack.c.l.b16 %v3296
          %v4030 = vunpack.c.h.b16 %v3296
          %v4031 = vunpack.c.l.b16 %v3297
          %v4032 = vunpack.c.h.b16 %v3297
          %v4033 = vunpack.c.l.b16 %v3298
          %v4034 = vunpack.c.h.b16 %v3298
          %v4035 = vunpack.c.l.b16 %v3299
          %v4036 = vunpack.c.h.b16 %v3299
          %v4037 = vunpack.c.l.b16 %v3300
          %v4038 = vunpack.c.h.b16 %v3300
          %v4039 = vunpack.c.l.b16 %v3301
          %v4040 = vunpack.c.h.b16 %v3301
          %v4041 = vunpack.c.l.b16 %v3302
          %v4042 = vunpack.c.h.b16 %v3302
          %v4043 = vunpack.c.l.b16 %v3303
          %v4044 = vunpack.c.h.b16 %v3303
          %v4045 = vunpack.c.l.b16 %v3304
          %v4046 = vunpack.c.h.b16 %v3304
          %v4047 = vunpack.c.l.b16 %v3305
          %v4048 = vunpack.c.h.b16 %v3305
          %v4049 = vunpack.c.l.b16 %v3306
          %v4050 = vunpack.c.h.b16 %v3306
          %v4051 = vunpack.c.l.b16 %v3307
          %v4052 = vunpack.c.h.b16 %v3307
          %v4053 = vunpack.c.l.b16 %v3308
          %v4054 = vunpack.c.h.b16 %v3308
          %v4055 = vunpack.c.l.b16 %v3309
          %v4056 = vunpack.c.h.b16 %v3309
          %v4057 = vunpack.c.l.b16 %v3310
          %v4058 = vunpack.c.h.b16 %v3310
          %v4059 = vunpack.c.l.b16 %v3311
          %v4060 = vunpack.c.h.b16 %v3311
          %v4061 = vunpack.c.l.b16 %v3312
          %v4062 = vunpack.c.h.b16 %v3312
          %v4063 = vunpack.c.l.b16 %v3313
          %v4064 = vunpack.c.h.b16 %v3313
          %v4065 = vunpack.c.l.b16 %v3314
          %v4066 = vunpack.c.h.b16 %v3314
          %v4067 = vunpack.c.l.b16 %v3315
          %v4068 = vunpack.c.h.b16 %v3315
          %v4069 = vunpack.c.l.b16 %v3316
          %v4070 = vunpack.c.h.b16 %v3316
          %v4071 = vunpack.c.l.b16 %v3317
          %v4072 = vunpack.c.h.b16 %v3317
          %v4073 = vunpack.c.l.b16 %v3318
          %v4074 = vunpack.c.h.b16 %v3318
          %v4075 = vunpack.c.l.b16 %v3319
          %v4076 = vunpack.c.h.b16 %v3319
          %v4077 = vunpack.c.l.b16 %v3320
          %v4078 = vunpack.c.h.b16 %v3320
          %v4079 = vunpack.c.l.b16 %v3321
          %v4080 = vunpack.c.h.b16 %v3321
          %v4081 = vunpack.c.l.b16 %v3322
          %v4082 = vunpack.c.h.b16 %v3322
          %v4083 = vunpack.c.l.b16 %v3323
          %v4084 = vunpack.c.h.b16 %v3323
          %v4085 = vunpack.c.l.b16 %v3324
          %v4086 = vunpack.c.h.b16 %v3324
          %v4087 = vunpack.c.l.b16 %v3325
          %v4088 = vunpack.c.h.b16 %v3325
          %v4089 = vunpack.c.l.b16 %v3326
          %v4090 = vunpack.c.h.b16 %v3326
          %v4091 = vunpack.c.l.b16 %v3327
          %v4092 = vunpack.c.h.b16 %v3327
          %v4093 = vunpack.c.l.b16 %v3328
          %v4094 = vunpack.c.h.b16 %v3328
          %v4095 = vunpack.c.l.b16 %v3329
          %v4096 = vunpack.c.h.b16 %v3329
          %v4097 = vunpack.c.l.b16 %v3330
          %v4098 = vunpack.c.h.b16 %v3330
          %v4099 = vpack.c.b16 %v3591, %v3587
          %v4100 = vpack.c.b16 %v3592, %v3588
          %v4101 = vpack.c.b16 %v3593, %v3589
          %v4102 = vpack.c.b16 %v3594, %v3590
          %v4103 = vpack.c.b16 %v3599, %v3595
          %v4104 = vpack.c.b16 %v3600, %v3596
          %v4105 = vpack.c.b16 %v3601, %v3597
          %v4106 = vpack.c.b16 %v3602, %v3598
          %v4107 = vpack.c.b16 %v3607, %v3603
          %v4108 = vpack.c.b16 %v3608, %v3604
          %v4109 = vpack.c.b16 %v3609, %v3605
          %v4110 = vpack.c.b16 %v3610, %v3606
          %v4111 = vpack.c.b16 %v3615, %v3611
          %v4112 = vpack.c.b16 %v3616, %v3612
          %v4113 = vpack.c.b16 %v3617, %v3613
          %v4114 = vpack.c.b16 %v3618, %v3614
          %v4115 = vpack.c.b16 %v3623, %v3619
          %v4116 = vpack.c.b16 %v3624, %v3620
          %v4117 = vpack.c.b16 %v3625, %v3621
          %v4118 = vpack.c.b16 %v3626, %v3622
          %v4119 = vpack.c.b16 %v3631, %v3627
          %v4120 = vpack.c.b16 %v3632, %v3628
          %v4121 = vpack.c.b16 %v3633, %v3629
          %v4122 = vpack.c.b16 %v3634, %v3630
          %v4123 = vpack.c.b16 %v3639, %v3635
          %v4124 = vpack.c.b16 %v3640, %v3636
          %v4125 = vpack.c.b16 %v3641, %v3637
          %v4126 = vpack.c.b16 %v3642, %v3638
          %v4127 = vpack.c.b16 %v3647, %v3643
          %v4128 = vpack.c.b16 %v3648, %v3644
          %v4129 = vpack.c.b16 %v3649, %v3645
          %v4130 = vpack.c.b16 %v3650, %v3646
          %v4131 = vpack.c.b16 %v3655, %v3651
          %v4132 = vpack.c.b16 %v3656, %v3652
          %v4133 = vpack.c.b16 %v3657, %v3653
          %v4134 = vpack.c.b16 %v3658, %v3654
          %v4135 = vpack.c.b16 %v3663, %v3659
          %v4136 = vpack.c.b16 %v3664, %v3660
          %v4137 = vpack.c.b16 %v3665, %v3661
          %v4138 = vpack.c.b16 %v3666, %v3662
          %v4139 = vpack.c.b16 %v3671, %v3667
          %v4140 = vpack.c.b16 %v3672, %v3668
          %v4141 = vpack.c.b16 %v3673, %v3669
          %v4142 = vpack.c.b16 %v3674, %v3670
          %v4143 = vpack.c.b16 %v3679, %v3675
          %v4144 = vpack.c.b16 %v3680, %v3676
          %v4145 = vpack.c.b16 %v3681, %v3677
          %v4146 = vpack.c.b16 %v3682, %v3678
          %v4147 = vpack.c.b16 %v3687, %v3683
          %v4148 = vpack.c.b16 %v3688, %v3684
          %v4149 = vpack.c.b16 %v3689, %v3685
          %v4150 = vpack.c.b16 %v3690, %v3686
          %v4151 = vpack.c.b16 %v3695, %v3691
          %v4152 = vpack.c.b16 %v3696, %v3692
          %v4153 = vpack.c.b16 %v3697, %v3693
          %v4154 = vpack.c.b16 %v3698, %v3694
          %v4155 = vpack.c.b16 %v3703, %v3699
          %v4156 = vpack.c.b16 %v3704, %v3700
          %v4157 = vpack.c.b16 %v3705, %v3701
          %v4158 = vpack.c.b16 %v3706, %v3702
          %v4159 = vpack.c.b16 %v3711, %v3707
          %v4160 = vpack.c.b16 %v3712, %v3708
          %v4161 = vpack.c.b16 %v3713, %v3709
          %v4162 = vpack.c.b16 %v3714, %v3710
          %v4163 = vpack.c.b16 %v3719, %v3715
          %v4164 = vpack.c.b16 %v3720, %v3716
          %v4165 = vpack.c.b16 %v3721, %v3717
          %v4166 = vpack.c.b16 %v3722, %v3718
          %v4167 = vpack.c.b16 %v3727, %v3723
          %v4168 = vpack.c.b16 %v3728, %v3724
          %v4169 = vpack.c.b16 %v3729, %v3725
          %v4170 = vpack.c.b16 %v3730, %v3726
          %v4171 = vpack.c.b16 %v3735, %v3731
          %v4172 = vpack.c.b16 %v3736, %v3732
          %v4173 = vpack.c.b16 %v3737, %v3733
          %v4174 = vpack.c.b16 %v3738, %v3734
          %v4175 = vpack.c.b16 %v3743, %v3739
          %v4176 = vpack.c.b16 %v3744, %v3740
          %v4177 = vpack.c.b16 %v3745, %v3741
          %v4178 = vpack.c.b16 %v3746, %v3742
          %v4179 = vpack.c.b16 %v3751, %v3747
          %v4180 = vpack.c.b16 %v3752, %v3748
          %v4181 = vpack.c.b16 %v3753, %v3749
          %v4182 = vpack.c.b16 %v3754, %v3750
          %v4183 = vpack.c.b16 %v3759, %v3755
          %v4184 = vpack.c.b16 %v3760, %v3756
          %v4185 = vpack.c.b16 %v3761, %v3757
          %v4186 = vpack.c.b16 %v3762, %v3758
          %v4187 = vpack.c.b16 %v3767, %v3763
          %v4188 = vpack.c.b16 %v3768, %v3764
          %v4189 = vpack.c.b16 %v3769, %v3765
          %v4190 = vpack.c.b16 %v3770, %v3766
          %v4191 = vpack.c.b16 %v3775, %v3771
          %v4192 = vpack.c.b16 %v3776, %v3772
          %v4193 = vpack.c.b16 %v3777, %v3773
          %v4194 = vpack.c.b16 %v3778, %v3774
          %v4195 = vpack.c.b16 %v3783, %v3779
          %v4196 = vpack.c.b16 %v3784, %v3780
          %v4197 = vpack.c.b16 %v3785, %v3781
          %v4198 = vpack.c.b16 %v3786, %v3782
          %v4199 = vpack.c.b16 %v3791, %v3787
          %v4200 = vpack.c.b16 %v3792, %v3788
          %v4201 = vpack.c.b16 %v3793, %v3789
          %v4202 = vpack.c.b16 %v3794, %v3790
          %v4203 = vpack.c.b16 %v3799, %v3795
          %v4204 = vpack.c.b16 %v3800, %v3796
          %v4205 = vpack.c.b16 %v3801, %v3797
          %v4206 = vpack.c.b16 %v3802, %v3798
          %v4207 = vpack.c.b16 %v3807, %v3803
          %v4208 = vpack.c.b16 %v3808, %v3804
          %v4209 = vpack.c.b16 %v3809, %v3805
          %v4210 = vpack.c.b16 %v3810, %v3806
          %v4211 = vpack.c.b16 %v3815, %v3811
          %v4212 = vpack.c.b16 %v3816, %v3812
          %v4213 = vpack.c.b16 %v3817, %v3813
          %v4214 = vpack.c.b16 %v3818, %v3814
          %v4215 = vpack.c.b16 %v3823, %v3819
          %v4216 = vpack.c.b16 %v3824, %v3820
          %v4217 = vpack.c.b16 %v3825, %v3821
          %v4218 = vpack.c.b16 %v3826, %v3822
          %v4219 = vpack.c.b16 %v3831, %v3827
          %v4220 = vpack.c.b16 %v3832, %v3828
          %v4221 = vpack.c.b16 %v3833, %v3829
          %v4222 = vpack.c.b16 %v3834, %v3830
          %v4223 = vpack.c.b16 %v3839, %v3835
          %v4224 = vpack.c.b16 %v3840, %v3836
          %v4225 = vpack.c.b16 %v3841, %v3837
          %v4226 = vpack.c.b16 %v3842, %v3838
          %v4227 = vpack.c.b16 %v3847, %v3843
          %v4228 = vpack.c.b16 %v3848, %v3844
          %v4229 = vpack.c.b16 %v3849, %v3845
          %v4230 = vpack.c.b16 %v3850, %v3846
          %v4231 = vpack.c.b16 %v3855, %v3851
          %v4232 = vpack.c.b16 %v3856, %v3852
          %v4233 = vpack.c.b16 %v3857, %v3853
          %v4234 = vpack.c.b16 %v3858, %v3854
          %v4235 = vpack.c.b16 %v3863, %v3859
          %v4236 = vpack.c.b16 %v3864, %v3860
          %v4237 = vpack.c.b16 %v3865, %v3861
          %v4238 = vpack.c.b16 %v3866, %v3862
          %v4239 = vpack.c.b16 %v3871, %v3867
          %v4240 = vpack.c.b16 %v3872, %v3868
          %v4241 = vpack.c.b16 %v3873, %v3869
          %v4242 = vpack.c.b16 %v3874, %v3870
          %v4243 = vpack.c.b16 %v3879, %v3875
          %v4244 = vpack.c.b16 %v3880, %v3876
          %v4245 = vpack.c.b16 %v3881, %v3877
          %v4246 = vpack.c.b16 %v3882, %v3878
          %v4247 = vpack.c.b16 %v3887, %v3883
          %v4248 = vpack.c.b16 %v3888, %v3884
          %v4249 = vpack.c.b16 %v3889, %v3885
          %v4250 = vpack.c.b16 %v3890, %v3886
          %v4251 = vpack.c.b16 %v3895, %v3891
          %v4252 = vpack.c.b16 %v3896, %v3892
          %v4253 = vpack.c.b16 %v3897, %v3893
          %v4254 = vpack.c.b16 %v3898, %v3894
          %v4255 = vpack.c.b16 %v3903, %v3899
          %v4256 = vpack.c.b16 %v3904, %v3900
          %v4257 = vpack.c.b16 %v3905, %v3901
          %v4258 = vpack.c.b16 %v3906, %v3902
          %v4259 = vpack.c.b16 %v3911, %v3907
          %v4260 = vpack.c.b16 %v3912, %v3908
          %v4261 = vpack.c.b16 %v3913, %v3909
          %v4262 = vpack.c.b16 %v3914, %v3910
          %v4263 = vpack.c.b16 %v3919, %v3915
          %v4264 = vpack.c.b16 %v3920, %v3916
          %v4265 = vpack.c.b16 %v3921, %v3917
          %v4266 = vpack.c.b16 %v3922, %v3918
          %v4267 = vpack.c.b16 %v3927, %v3923
          %v4268 = vpack.c.b16 %v3928, %v3924
          %v4269 = vpack.c.b16 %v3929, %v3925
          %v4270 = vpack.c.b16 %v3930, %v3926
          %v4271 = vpack.c.b16 %v3935, %v3931
          %v4272 = vpack.c.b16 %v3936, %v3932
          %v4273 = vpack.c.b16 %v3937, %v3933
          %v4274 = vpack.c.b16 %v3938, %v3934
          %v4275 = vpack.c.b16 %v3943, %v3939
          %v4276 = vpack.c.b16 %v3944, %v3940
          %v4277 = vpack.c.b16 %v3945, %v3941
          %v4278 = vpack.c.b16 %v3946, %v3942
          %v4279 = vpack.c.b16 %v3951, %v3947
          %v4280 = vpack.c.b16 %v3952, %v3948
          %v4281 = vpack.c.b16 %v3953, %v3949
          %v4282 = vpack.c.b16 %v3954, %v3950
          %v4283 = vpack.c.b16 %v3959, %v3955
          %v4284 = vpack.c.b16 %v3960, %v3956
          %v4285 = vpack.c.b16 %v3961, %v3957
          %v4286 = vpack.c.b16 %v3962, %v3958
          %v4287 = vpack.c.b16 %v3967, %v3963
          %v4288 = vpack.c.b16 %v3968, %v3964
          %v4289 = vpack.c.b16 %v3969, %v3965
          %v4290 = vpack.c.b16 %v3970, %v3966
          %v4291 = vpack.c.b16 %v3975, %v3971
          %v4292 = vpack.c.b16 %v3976, %v3972
          %v4293 = vpack.c.b16 %v3977, %v3973
          %v4294 = vpack.c.b16 %v3978, %v3974
          %v4295 = vpack.c.b16 %v3983, %v3979
          %v4296 = vpack.c.b16 %v3984, %v3980
          %v4297 = vpack.c.b16 %v3985, %v3981
          %v4298 = vpack.c.b16 %v3986, %v3982
          %v4299 = vpack.c.b16 %v3991, %v3987
          %v4300 = vpack.c.b16 %v3992, %v3988
          %v4301 = vpack.c.b16 %v3993, %v3989
          %v4302 = vpack.c.b16 %v3994, %v3990
          %v4303 = vpack.c.b16 %v3999, %v3995
          %v4304 = vpack.c.b16 %v4000, %v3996
          %v4305 = vpack.c.b16 %v4001, %v3997
          %v4306 = vpack.c.b16 %v4002, %v3998
          %v4307 = vpack.c.b16 %v4007, %v4003
          %v4308 = vpack.c.b16 %v4008, %v4004
          %v4309 = vpack.c.b16 %v4009, %v4005
          %v4310 = vpack.c.b16 %v4010, %v4006
          %v4311 = vpack.c.b16 %v4015, %v4011
          %v4312 = vpack.c.b16 %v4016, %v4012
          %v4313 = vpack.c.b16 %v4017, %v4013
          %v4314 = vpack.c.b16 %v4018, %v4014
          %v4315 = vpack.c.b16 %v4023, %v4019
          %v4316 = vpack.c.b16 %v4024, %v4020
          %v4317 = vpack.c.b16 %v4025, %v4021
          %v4318 = vpack.c.b16 %v4026, %v4022
          %v4319 = vpack.c.b16 %v4031, %v4027
          %v4320 = vpack.c.b16 %v4032, %v4028
          %v4321 = vpack.c.b16 %v4033, %v4029
          %v4322 = vpack.c.b16 %v4034, %v4030
          %v4323 = vpack.c.b16 %v4039, %v4035
          %v4324 = vpack.c.b16 %v4040, %v4036
          %v4325 = vpack.c.b16 %v4041, %v4037
          %v4326 = vpack.c.b16 %v4042, %v4038
          %v4327 = vpack.c.b16 %v4047, %v4043
          %v4328 = vpack.c.b16 %v4048, %v4044
          %v4329 = vpack.c.b16 %v4049, %v4045
          %v4330 = vpack.c.b16 %v4050, %v4046
          %v4331 = vpack.c.b16 %v4055, %v4051
          %v4332 = vpack.c.b16 %v4056, %v4052
          %v4333 = vpack.c.b16 %v4057, %v4053
          %v4334 = vpack.c.b16 %v4058, %v4054
          %v4335 = vpack.c.b16 %v4063, %v4059
          %v4336 = vpack.c.b16 %v4064, %v4060
          %v4337 = vpack.c.b16 %v4065, %v4061
          %v4338 = vpack.c.b16 %v4066, %v4062
          %v4339 = vpack.c.b16 %v4071, %v4067
          %v4340 = vpack.c.b16 %v4072, %v4068
          %v4341 = vpack.c.b16 %v4073, %v4069
          %v4342 = vpack.c.b16 %v4074, %v4070
          %v4343 = vpack.c.b16 %v4079, %v4075
          %v4344 = vpack.c.b16 %v4080, %v4076
          %v4345 = vpack.c.b16 %v4081, %v4077
          %v4346 = vpack.c.b16 %v4082, %v4078
          %v4347 = vpack.c.b16 %v4087, %v4083
          %v4348 = vpack.c.b16 %v4088, %v4084
          %v4349 = vpack.c.b16 %v4089, %v4085
          %v4350 = vpack.c.b16 %v4090, %v4086
          %v4351 = vpack.c.b16 %v4095, %v4091
          %v4352 = vpack.c.b16 %v4096, %v4092
          %v4353 = vpack.c.b16 %v4097, %v4093
          %v4354 = vpack.c.b16 %v4098, %v4094
          %4611 = vmatprep.subr.bf16.mxu0 %v4128
          %4612 = vmatpush1.bf16.msra.mxu0 %v4127
          %4613 = vmatprep.subr.bf16.mxu0 %v4124
          %4614 = vmatpush1.bf16.msra.mxu0 %v4123
          %4615 = vmatprep.subr.bf16.mxu0 %v4120
          %4616 = vmatpush1.bf16.msra.mxu0 %v4119
          %4617 = vmatprep.subr.bf16.mxu0 %v4116
          %4618 = vmatpush1.bf16.msra.mxu0 %v4115
          %4619 = vmatprep.subr.bf16.mxu0 %v4112
          %4620 = vmatpush1.bf16.msra.mxu0 %v4111
          %4621 = vmatprep.subr.bf16.mxu0 %v4108
          %4622 = vmatpush1.bf16.msra.mxu0 %v4107
          %4623 = vmatprep.subr.bf16.mxu0 %v4104
          %4624 = vmatpush1.bf16.msra.mxu0 %v4103
          %4625 = vmatprep.subr.bf16.mxu0 %v4100
          %4626 = vmatpush1.bf16.msra.mxu0 %v4099
          %4627 = vmatprep.subr.bf16.mxu0 %v4160
          %4628 = vmatpush2.bf16.msra.mxu0 %v4159
          %4629 = vmatprep.subr.bf16.mxu0 %v4156
          %4630 = vmatpush2.bf16.msra.mxu0 %v4155
          %4631 = vmatprep.subr.bf16.mxu0 %v4152
          %4632 = vmatpush2.bf16.msra.mxu0 %v4151
          %4633 = vmatprep.subr.bf16.mxu0 %v4148
          %4634 = vmatpush2.bf16.msra.mxu0 %v4147
          %4635 = vmatprep.subr.bf16.mxu0 %v4144
          %4636 = vmatpush2.bf16.msra.mxu0 %v4143
          %4637 = vmatprep.subr.bf16.mxu0 %v4140
          %4638 = vmatpush2.bf16.msra.mxu0 %v4139
          %4639 = vmatprep.subr.bf16.mxu0 %v4136
          %4640 = vmatpush2.bf16.msra.mxu0 %v4135
          %4641 = vmatprep.subr.bf16.mxu0 %v4132
          %4642 = vmatpush2.bf16.msra.mxu0 %v4131
          %4643 = vmatprep.mubr.bf16.mxu0 %v3068
          %4644 = vmatmul.mubr.bf16.gmra.mxu0 %v3067
          %v4645 = vpop.f32.mrf.mxu0
          %v4646 = vadd.f32 0.0, %v4645
          %v4647 = vpop.f32.mrf.mxu0
          %v4648 = vadd.f32 0.0, %v4647
          %v4649 = vpop.f32.mrf.mxu0
          %v4650 = vpop.f32.mrf.mxu0
          %4651 = vdwg.mxu0
          %4652 = vmatprep.subr.bf16.mxu0 %v4192
          %4653 = vmatpush1.bf16.msra.mxu0 %v4191
          %4654 = vmatprep.subr.bf16.mxu0 %v4188
          %4655 = vmatpush1.bf16.msra.mxu0 %v4187
          %4656 = vmatprep.subr.bf16.mxu0 %v4184
          %4657 = vmatpush1.bf16.msra.mxu0 %v4183
          %4658 = vmatprep.subr.bf16.mxu0 %v4180
          %4659 = vmatpush1.bf16.msra.mxu0 %v4179
          %4660 = vmatprep.subr.bf16.mxu0 %v4176
          %4661 = vmatpush1.bf16.msra.mxu0 %v4175
          %4662 = vmatprep.subr.bf16.mxu0 %v4172
          %4663 = vmatpush1.bf16.msra.mxu0 %v4171
          %4664 = vmatprep.subr.bf16.mxu0 %v4168
          %4665 = vmatpush1.bf16.msra.mxu0 %v4167
          %4666 = vmatprep.subr.bf16.mxu0 %v4164
          %4667 = vmatpush1.bf16.msra.mxu0 %v4163
          %4668 = vmatprep.subr.bf16.mxu0 %v4224
          %4669 = vmatpush2.bf16.msra.mxu0 %v4223
          %4670 = vmatprep.subr.bf16.mxu0 %v4220
          %4671 = vmatpush2.bf16.msra.mxu0 %v4219
          %4672 = vmatprep.subr.bf16.mxu0 %v4216
          %4673 = vmatpush2.bf16.msra.mxu0 %v4215
          %4674 = vmatprep.subr.bf16.mxu0 %v4212
          %4675 = vmatpush2.bf16.msra.mxu0 %v4211
          %4676 = vmatprep.subr.bf16.mxu0 %v4208
          %4677 = vmatpush2.bf16.msra.mxu0 %v4207
          %4678 = vmatprep.subr.bf16.mxu0 %v4204
          %4679 = vmatpush2.bf16.msra.mxu0 %v4203
          %4680 = vmatprep.subr.bf16.mxu0 %v4200
          %4681 = vmatpush2.bf16.msra.mxu0 %v4199
          %4682 = vmatprep.subr.bf16.mxu0 %v4196
          %4683 = vmatpush2.bf16.msra.mxu0 %v4195
          %4684 = vmatprep.mubr.bf16.mxu0 %v3070
          %4685 = vmatmul.mubr.bf16.gmra.mxu0 %v3069
          %v4686 = vpop.f32.mrf.mxu0
          %v4687 = vadd.f32 %v4646, %v4686
          %v4688 = vpop.f32.mrf.mxu0
          %v4689 = vadd.f32 %v4648, %v4688
          %v4690 = vpop.f32.mrf.mxu0
          %v4691 = vpop.f32.mrf.mxu0
          %4692 = vdwg.mxu0
          %4693 = vmatprep.subr.bf16.mxu0 %v4256
          %4694 = vmatpush1.bf16.msra.mxu0 %v4255
          %4695 = vmatprep.subr.bf16.mxu0 %v4252
          %4696 = vmatpush1.bf16.msra.mxu0 %v4251
          %4697 = vmatprep.subr.bf16.mxu0 %v4248
          %4698 = vmatpush1.bf16.msra.mxu0 %v4247
          %4699 = vmatprep.subr.bf16.mxu0 %v4244
          %4700 = vmatpush1.bf16.msra.mxu0 %v4243
          %4701 = vmatprep.subr.bf16.mxu0 %v4240
          %4702 = vmatpush1.bf16.msra.mxu0 %v4239
          %4703 = vmatprep.subr.bf16.mxu0 %v4236
          %4704 = vmatpush1.bf16.msra.mxu0 %v4235
          %4705 = vmatprep.subr.bf16.mxu0 %v4232
          %4706 = vmatpush1.bf16.msra.mxu0 %v4231
          %4707 = vmatprep.subr.bf16.mxu0 %v4228
          %4708 = vmatpush1.bf16.msra.mxu0 %v4227
          %4709 = vmatprep.subr.bf16.mxu0 %v4288
          %4710 = vmatpush2.bf16.msra.mxu0 %v4287
          %4711 = vmatprep.subr.bf16.mxu0 %v4284
          %4712 = vmatpush2.bf16.msra.mxu0 %v4283
          %4713 = vmatprep.subr.bf16.mxu0 %v4280
          %4714 = vmatpush2.bf16.msra.mxu0 %v4279
          %4715 = vmatprep.subr.bf16.mxu0 %v4276
          %4716 = vmatpush2.bf16.msra.mxu0 %v4275
          %4717 = vmatprep.subr.bf16.mxu0 %v4272
          %4718 = vmatpush2.bf16.msra.mxu0 %v4271
          %4719 = vmatprep.subr.bf16.mxu0 %v4268
          %4720 = vmatpush2.bf16.msra.mxu0 %v4267
          %4721 = vmatprep.subr.bf16.mxu0 %v4264
          %4722 = vmatpush2.bf16.msra.mxu0 %v4263
          %4723 = vmatprep.subr.bf16.mxu0 %v4260
          %4724 = vmatpush2.bf16.msra.mxu0 %v4259
          %4725 = vmatprep.mubr.bf16.mxu0 %v3072
          %4726 = vmatmul.mubr.bf16.gmra.mxu0 %v3071
          %v4727 = vpop.f32.mrf.mxu0
          %v4728 = vadd.f32 %v4687, %v4727
          %v4729 = vpop.f32.mrf.mxu0
          %v4730 = vadd.f32 %v4689, %v4729
          %v4731 = vpop.f32.mrf.mxu0
          %v4732 = vpop.f32.mrf.mxu0
          %4733 = vdwg.mxu0
          %4734 = vmatprep.subr.bf16.mxu0 %v4320
          %4735 = vmatpush1.bf16.msra.mxu0 %v4319
          %4736 = vmatprep.subr.bf16.mxu0 %v4316
          %4737 = vmatpush1.bf16.msra.mxu0 %v4315
          %4738 = vmatprep.subr.bf16.mxu0 %v4312
          %4739 = vmatpush1.bf16.msra.mxu0 %v4311
          %4740 = vmatprep.subr.bf16.mxu0 %v4308
          %4741 = vmatpush1.bf16.msra.mxu0 %v4307
          %4742 = vmatprep.subr.bf16.mxu0 %v4304
          %4743 = vmatpush1.bf16.msra.mxu0 %v4303
          %4744 = vmatprep.subr.bf16.mxu0 %v4300
          %4745 = vmatpush1.bf16.msra.mxu0 %v4299
          %4746 = vmatprep.subr.bf16.mxu0 %v4296
          %4747 = vmatpush1.bf16.msra.mxu0 %v4295
          %4748 = vmatprep.subr.bf16.mxu0 %v4292
          %4749 = vmatpush1.bf16.msra.mxu0 %v4291
          %4750 = vmatprep.subr.bf16.mxu0 %v4352
          %4751 = vmatpush2.bf16.msra.mxu0 %v4351
          %4752 = vmatprep.subr.bf16.mxu0 %v4348
          %4753 = vmatpush2.bf16.msra.mxu0 %v4347
          %4754 = vmatprep.subr.bf16.mxu0 %v4344
          %4755 = vmatpush2.bf16.msra.mxu0 %v4343
          %4756 = vmatprep.subr.bf16.mxu0 %v4340
          %4757 = vmatpush2.bf16.msra.mxu0 %v4339
          %4758 = vmatprep.subr.bf16.mxu0 %v4336
          %4759 = vmatpush2.bf16.msra.mxu0 %v4335
          %4760 = vmatprep.subr.bf16.mxu0 %v4332
          %4761 = vmatpush2.bf16.msra.mxu0 %v4331
          %4762 = vmatprep.subr.bf16.mxu0 %v4328
          %4763 = vmatpush2.bf16.msra.mxu0 %v4327
          %4764 = vmatprep.subr.bf16.mxu0 %v4324
          %4765 = vmatpush2.bf16.msra.mxu0 %v4323
          %4766 = vmatprep.mubr.bf16.mxu0 %v3074
          %4767 = vmatmul.mubr.bf16.gmra.mxu0 %v3073
          %v4768 = vpop.f32.mrf.mxu0
          %v4769 = vadd.f32 %v4728, %v4768
          %v4770 = vpop.f32.mrf.mxu0
          %v4771 = vadd.f32 %v4730, %v4770
          %v4772 = vpop.f32.mrf.mxu0
          %v4773 = vpop.f32.mrf.mxu0
          %4774 = vdwg.mxu0
          %4775 = vmatprep.subr.bf16.mxu0 %v4130
          %4776 = vmatpush1.bf16.msra.mxu0 %v4129
          %4777 = vmatprep.subr.bf16.mxu0 %v4126
          %4778 = vmatpush1.bf16.msra.mxu0 %v4125
          %4779 = vmatprep.subr.bf16.mxu0 %v4122
          %4780 = vmatpush1.bf16.msra.mxu0 %v4121
          %4781 = vmatprep.subr.bf16.mxu0 %v4118
          %4782 = vmatpush1.bf16.msra.mxu0 %v4117
          %4783 = vmatprep.subr.bf16.mxu0 %v4114
          %4784 = vmatpush1.bf16.msra.mxu0 %v4113
          %4785 = vmatprep.subr.bf16.mxu0 %v4110
          %4786 = vmatpush1.bf16.msra.mxu0 %v4109
          %4787 = vmatprep.subr.bf16.mxu0 %v4106
          %4788 = vmatpush1.bf16.msra.mxu0 %v4105
          %4789 = vmatprep.subr.bf16.mxu0 %v4102
          %4790 = vmatpush1.bf16.msra.mxu0 %v4101
          %4791 = vmatprep.subr.bf16.mxu0 %v4162
          %4792 = vmatpush2.bf16.msra.mxu0 %v4161
          %4793 = vmatprep.subr.bf16.mxu0 %v4158
          %4794 = vmatpush2.bf16.msra.mxu0 %v4157
          %4795 = vmatprep.subr.bf16.mxu0 %v4154
          %4796 = vmatpush2.bf16.msra.mxu0 %v4153
          %4797 = vmatprep.subr.bf16.mxu0 %v4150
          %4798 = vmatpush2.bf16.msra.mxu0 %v4149
          %4799 = vmatprep.subr.bf16.mxu0 %v4146
          %4800 = vmatpush2.bf16.msra.mxu0 %v4145
          %4801 = vmatprep.subr.bf16.mxu0 %v4142
          %4802 = vmatpush2.bf16.msra.mxu0 %v4141
          %4803 = vmatprep.subr.bf16.mxu0 %v4138
          %4804 = vmatpush2.bf16.msra.mxu0 %v4137
          %4805 = vmatprep.subr.bf16.mxu0 %v4134
          %4806 = vmatpush2.bf16.msra.mxu0 %v4133
          %4807 = vmatprep.mubr.bf16.mxu0 %v3068
          %4808 = vmatmul.mubr.bf16.gmra.mxu0 %v3067
          %v4809 = vpop.f32.mrf.mxu0
          %v4810 = vadd.f32 0.0, %v4809
          %v4811 = vpop.f32.mrf.mxu0
          %v4812 = vadd.f32 0.0, %v4811
          %v4813 = vpop.f32.mrf.mxu0
          %v4814 = vpop.f32.mrf.mxu0
          %4815 = vdwg.mxu0
          %4816 = vmatprep.subr.bf16.mxu0 %v4194
          %4817 = vmatpush1.bf16.msra.mxu0 %v4193
          %4818 = vmatprep.subr.bf16.mxu0 %v4190
          %4819 = vmatpush1.bf16.msra.mxu0 %v4189
          %4820 = vmatprep.subr.bf16.mxu0 %v4186
          %4821 = vmatpush1.bf16.msra.mxu0 %v4185
          %4822 = vmatprep.subr.bf16.mxu0 %v4182
          %4823 = vmatpush1.bf16.msra.mxu0 %v4181
          %4824 = vmatprep.subr.bf16.mxu0 %v4178
          %4825 = vmatpush1.bf16.msra.mxu0 %v4177
          %4826 = vmatprep.subr.bf16.mxu0 %v4174
          %4827 = vmatpush1.bf16.msra.mxu0 %v4173
          %4828 = vmatprep.subr.bf16.mxu0 %v4170
          %4829 = vmatpush1.bf16.msra.mxu0 %v4169
          %4830 = vmatprep.subr.bf16.mxu0 %v4166
          %4831 = vmatpush1.bf16.msra.mxu0 %v4165
          %4832 = vmatprep.subr.bf16.mxu0 %v4226
          %4833 = vmatpush2.bf16.msra.mxu0 %v4225
          %4834 = vmatprep.subr.bf16.mxu0 %v4222
          %4835 = vmatpush2.bf16.msra.mxu0 %v4221
          %4836 = vmatprep.subr.bf16.mxu0 %v4218
          %4837 = vmatpush2.bf16.msra.mxu0 %v4217
          %4838 = vmatprep.subr.bf16.mxu0 %v4214
          %4839 = vmatpush2.bf16.msra.mxu0 %v4213
          %4840 = vmatprep.subr.bf16.mxu0 %v4210
          %4841 = vmatpush2.bf16.msra.mxu0 %v4209
          %4842 = vmatprep.subr.bf16.mxu0 %v4206
          %4843 = vmatpush2.bf16.msra.mxu0 %v4205
          %4844 = vmatprep.subr.bf16.mxu0 %v4202
          %4845 = vmatpush2.bf16.msra.mxu0 %v4201
          %4846 = vmatprep.subr.bf16.mxu0 %v4198
          %4847 = vmatpush2.bf16.msra.mxu0 %v4197
          %4848 = vmatprep.mubr.bf16.mxu0 %v3070
          %4849 = vmatmul.mubr.bf16.gmra.mxu0 %v3069
          %v4850 = vpop.f32.mrf.mxu0
          %v4851 = vadd.f32 %v4810, %v4850
          %v4852 = vpop.f32.mrf.mxu0
          %v4853 = vadd.f32 %v4812, %v4852
          %v4854 = vpop.f32.mrf.mxu0
          %v4855 = vpop.f32.mrf.mxu0
          %4856 = vdwg.mxu0
          %4857 = vmatprep.subr.bf16.mxu0 %v4258
          %4858 = vmatpush1.bf16.msra.mxu0 %v4257
          %4859 = vmatprep.subr.bf16.mxu0 %v4254
          %4860 = vmatpush1.bf16.msra.mxu0 %v4253
          %4861 = vmatprep.subr.bf16.mxu0 %v4250
          %4862 = vmatpush1.bf16.msra.mxu0 %v4249
          %4863 = vmatprep.subr.bf16.mxu0 %v4246
          %4864 = vmatpush1.bf16.msra.mxu0 %v4245
          %4865 = vmatprep.subr.bf16.mxu0 %v4242
          %4866 = vmatpush1.bf16.msra.mxu0 %v4241
          %4867 = vmatprep.subr.bf16.mxu0 %v4238
          %4868 = vmatpush1.bf16.msra.mxu0 %v4237
          %4869 = vmatprep.subr.bf16.mxu0 %v4234
          %4870 = vmatpush1.bf16.msra.mxu0 %v4233
          %4871 = vmatprep.subr.bf16.mxu0 %v4230
          %4872 = vmatpush1.bf16.msra.mxu0 %v4229
          %4873 = vmatprep.subr.bf16.mxu0 %v4290
          %4874 = vmatpush2.bf16.msra.mxu0 %v4289
          %4875 = vmatprep.subr.bf16.mxu0 %v4286
          %4876 = vmatpush2.bf16.msra.mxu0 %v4285
          %4877 = vmatprep.subr.bf16.mxu0 %v4282
          %4878 = vmatpush2.bf16.msra.mxu0 %v4281
          %4879 = vmatprep.subr.bf16.mxu0 %v4278
          %4880 = vmatpush2.bf16.msra.mxu0 %v4277
          %4881 = vmatprep.subr.bf16.mxu0 %v4274
          %4882 = vmatpush2.bf16.msra.mxu0 %v4273
          %4883 = vmatprep.subr.bf16.mxu0 %v4270
          %4884 = vmatpush2.bf16.msra.mxu0 %v4269
          %4885 = vmatprep.subr.bf16.mxu0 %v4266
          %4886 = vmatpush2.bf16.msra.mxu0 %v4265
          %4887 = vmatprep.subr.bf16.mxu0 %v4262
          %4888 = vmatpush2.bf16.msra.mxu0 %v4261
          %4889 = vmatprep.mubr.bf16.mxu0 %v3072
          %4890 = vmatmul.mubr.bf16.gmra.mxu0 %v3071
          %v4891 = vpop.f32.mrf.mxu0
          %v4892 = vadd.f32 %v4851, %v4891
          %v4893 = vpop.f32.mrf.mxu0
          %v4894 = vadd.f32 %v4853, %v4893
          %v4895 = vpop.f32.mrf.mxu0
          %v4896 = vpop.f32.mrf.mxu0
          %4897 = vdwg.mxu0
          %4898 = vmatprep.subr.bf16.mxu0 %v4322
          %4899 = vmatpush1.bf16.msra.mxu0 %v4321
          %4900 = vmatprep.subr.bf16.mxu0 %v4318
          %4901 = vmatpush1.bf16.msra.mxu0 %v4317
          %4902 = vmatprep.subr.bf16.mxu0 %v4314
          %4903 = vmatpush1.bf16.msra.mxu0 %v4313
          %4904 = vmatprep.subr.bf16.mxu0 %v4310
          %4905 = vmatpush1.bf16.msra.mxu0 %v4309
          %4906 = vmatprep.subr.bf16.mxu0 %v4306
          %4907 = vmatpush1.bf16.msra.mxu0 %v4305
          %4908 = vmatprep.subr.bf16.mxu0 %v4302
          %4909 = vmatpush1.bf16.msra.mxu0 %v4301
          %4910 = vmatprep.subr.bf16.mxu0 %v4298
          %4911 = vmatpush1.bf16.msra.mxu0 %v4297
          %4912 = vmatprep.subr.bf16.mxu0 %v4294
          %4913 = vmatpush1.bf16.msra.mxu0 %v4293
          %4914 = vmatprep.subr.bf16.mxu0 %v4354
          %4915 = vmatpush2.bf16.msra.mxu0 %v4353
          %4916 = vmatprep.subr.bf16.mxu0 %v4350
          %4917 = vmatpush2.bf16.msra.mxu0 %v4349
          %4918 = vmatprep.subr.bf16.mxu0 %v4346
          %4919 = vmatpush2.bf16.msra.mxu0 %v4345
          %4920 = vmatprep.subr.bf16.mxu0 %v4342
          %4921 = vmatpush2.bf16.msra.mxu0 %v4341
          %4922 = vmatprep.subr.bf16.mxu0 %v4338
          %4923 = vmatpush2.bf16.msra.mxu0 %v4337
          %4924 = vmatprep.subr.bf16.mxu0 %v4334
          %4925 = vmatpush2.bf16.msra.mxu0 %v4333
          %4926 = vmatprep.subr.bf16.mxu0 %v4330
          %4927 = vmatpush2.bf16.msra.mxu0 %v4329
          %4928 = vmatprep.subr.bf16.mxu0 %v4326
          %4929 = vmatpush2.bf16.msra.mxu0 %v4325
          %4930 = vmatprep.mubr.bf16.mxu0 %v3074
          %4931 = vmatmul.mubr.bf16.gmra.mxu0 %v3073
          %v4932 = vpop.f32.mrf.mxu0
          %v4933 = vadd.f32 %v4892, %v4932
          %v4934 = vpop.f32.mrf.mxu0
          %v4935 = vadd.f32 %v4894, %v4934
          %v4936 = vpop.f32.mrf.mxu0
          %v4937 = vpop.f32.mrf.mxu0
          %4938 = vdwg.mxu0
          %v4939 = vld [vmem:[%s11] sm:$0xf]
          %v4941 = vlaneseq
          %v4942 = vshrl.u32 %v4941, 7
          %v4943 = vsub.s32 0, %v4942
          %v4944 = vrot.slane %v4939, %v4943
          %v4945 = vlaneseq
          %v4946 = vshrl.u32 %v4945, 7
          %v4947 = vsub.s32 1, %v4946
          %v4948 = vrot.slane %v4939, %v4947
          %v4949 = vlaneseq
          %v4950 = vshrl.u32 %v4949, 7
          %v4951 = vsub.s32 2, %v4950
          %v4952 = vrot.slane %v4939, %v4951
          %v4953 = vlaneseq
          %v4954 = vshrl.u32 %v4953, 7
          %v4955 = vsub.s32 3, %v4954
          %v4956 = vrot.slane %v4939, %v4955
          %v4961 = vmul.f32 %v4769, %v4944
          %v4962 = vmul.f32 %v4771, %v4948
          %v4963 = vmul.f32 %v4933, %v4952
          %v4964 = vmul.f32 %v4935, %v4956
          %v4965 = vld [vmem:[%s12] sm:$0xf]
          %v4967 = vlaneseq
          %v4968 = vshrl.u32 %v4967, 7
          %v4969 = vsub.s32 0, %v4968
          %v4970 = vrot.slane %v4965, %v4969
          %v4971 = vlaneseq
          %v4972 = vshrl.u32 %v4971, 7
          %v4973 = vsub.s32 1, %v4972
          %v4974 = vrot.slane %v4965, %v4973
          %v4975 = vlaneseq
          %v4976 = vshrl.u32 %v4975, 7
          %v4977 = vsub.s32 2, %v4976
          %v4978 = vrot.slane %v4965, %v4977
          %v4979 = vlaneseq
          %v4980 = vshrl.u32 %v4979, 7
          %v4981 = vsub.s32 3, %v4980
          %v4982 = vrot.slane %v4965, %v4981
          %v4987 = vadd.f32 %v4961, %v4970
          %v4988 = vadd.f32 %v4962, %v4974
          %v4989 = vadd.f32 %v4963, %v4978
          %v4990 = vadd.f32 %v4964, %v4982
          %v4991 = vmax.f32 %v4987, 0.0
          %v4992 = vmax.f32 %v4988, 0.0
          %v4993 = vmax.f32 %v4989, 0.0
          %v4994 = vmax.f32 %v4990, 0.0
          %v4995 = vpack.c.bf16 %v4991, %v4991
          %v4996 = vpack.c.bf16 %v4992, %v4992
          %v4997 = vpack.c.bf16 %v4993, %v4993
          %v4998 = vpack.c.bf16 %v4994, %v4994
          %v4999 = vld [vmem:[#allocation15] sm:$0xff]
          %v5000 = vld [vmem:[#allocation15 + $0x8] sm:$0xff]
          %v5001 = vld [vmem:[#allocation15 + $0x10] sm:$0xff]
          %v5002 = vld [vmem:[#allocation15 + $0x18] sm:$0xff]
          %v5003 = vld [vmem:[#allocation15 + $0x20] sm:$0xff]
          %v5004 = vld [vmem:[#allocation15 + $0x28] sm:$0xff]
          %v5005 = vld [vmem:[#allocation15 + $0x30] sm:$0xff]
          %v5006 = vld [vmem:[#allocation15 + $0x38] sm:$0xff]
          %v5007 = vld [vmem:[#allocation15 + $0x40] sm:$0xff]
          %v5008 = vld [vmem:[#allocation15 + $0x48] sm:$0xff]
          %v5009 = vld [vmem:[#allocation15 + $0x50] sm:$0xff]
          %v5010 = vld [vmem:[#allocation15 + $0x58] sm:$0xff]
          %v5011 = vld [vmem:[#allocation15 + $0x60] sm:$0xff]
          %v5012 = vld [vmem:[#allocation15 + $0x68] sm:$0xff]
          %v5013 = vld [vmem:[#allocation15 + $0x70] sm:$0xff]
          %v5014 = vld [vmem:[#allocation15 + $0x78] sm:$0xff]
          %v5015 = vld [vmem:[#allocation15 + $0x80] sm:$0xff]
          %v5016 = vld [vmem:[#allocation15 + $0x88] sm:$0xff]
          %v5017 = vld [vmem:[#allocation15 + $0x90] sm:$0xff]
          %v5018 = vld [vmem:[#allocation15 + $0x98] sm:$0xff]
          %v5019 = vld [vmem:[#allocation15 + $0xa0] sm:$0xff]
          %v5020 = vld [vmem:[#allocation15 + $0xa8] sm:$0xff]
          %v5021 = vld [vmem:[#allocation15 + $0xb0] sm:$0xff]
          %v5022 = vld [vmem:[#allocation15 + $0xb8] sm:$0xff]
          %v5023 = vld [vmem:[#allocation15 + $0xc0] sm:$0xff]
          %v5024 = vld [vmem:[#allocation15 + $0xc8] sm:$0xff]
          %v5025 = vld [vmem:[#allocation15 + $0xd0] sm:$0xff]
          %v5026 = vld [vmem:[#allocation15 + $0xd8] sm:$0xff]
          %v5027 = vld [vmem:[#allocation15 + $0xe0] sm:$0xff]
          %v5028 = vld [vmem:[#allocation15 + $0xe8] sm:$0xff]
          %v5029 = vld [vmem:[#allocation15 + $0xf0] sm:$0xff]
          %v5030 = vld [vmem:[#allocation15 + $0xf8] sm:$0xff]
          %v5031 = vld [vmem:[#allocation15 + $0x100] sm:$0xff]
          %v5032 = vld [vmem:[#allocation15 + $0x108] sm:$0xff]
          %v5033 = vld [vmem:[#allocation15 + $0x110] sm:$0xff]
          %v5034 = vld [vmem:[#allocation15 + $0x118] sm:$0xff]
          %v5035 = vld [vmem:[#allocation15 + $0x120] sm:$0xff]
          %v5036 = vld [vmem:[#allocation15 + $0x128] sm:$0xff]
          %v5037 = vld [vmem:[#allocation15 + $0x130] sm:$0xff]
          %v5038 = vld [vmem:[#allocation15 + $0x138] sm:$0xff]
          %v5039 = vld [vmem:[#allocation15 + $0x140] sm:$0xff]
          %v5040 = vld [vmem:[#allocation15 + $0x148] sm:$0xff]
          %v5041 = vld [vmem:[#allocation15 + $0x150] sm:$0xff]
          %v5042 = vld [vmem:[#allocation15 + $0x158] sm:$0xff]
          %v5043 = vld [vmem:[#allocation15 + $0x160] sm:$0xff]
          %v5044 = vld [vmem:[#allocation15 + $0x168] sm:$0xff]
          %v5045 = vld [vmem:[#allocation15 + $0x170] sm:$0xff]
          %v5046 = vld [vmem:[#allocation15 + $0x178] sm:$0xff]
          %v5047 = vld [vmem:[#allocation15 + $0x180] sm:$0xff]
          %v5048 = vld [vmem:[#allocation15 + $0x188] sm:$0xff]
          %v5049 = vld [vmem:[#allocation15 + $0x190] sm:$0xff]
          %v5050 = vld [vmem:[#allocation15 + $0x198] sm:$0xff]
          %v5051 = vld [vmem:[#allocation15 + $0x1a0] sm:$0xff]
          %v5052 = vld [vmem:[#allocation15 + $0x1a8] sm:$0xff]
          %v5053 = vld [vmem:[#allocation15 + $0x1b0] sm:$0xff]
          %v5054 = vld [vmem:[#allocation15 + $0x1b8] sm:$0xff]
          %v5055 = vld [vmem:[#allocation15 + $0x1c0] sm:$0xff]
          %v5056 = vld [vmem:[#allocation15 + $0x1c8] sm:$0xff]
          %v5057 = vld [vmem:[#allocation15 + $0x1d0] sm:$0xff]
          %v5058 = vld [vmem:[#allocation15 + $0x1d8] sm:$0xff]
          %v5059 = vld [vmem:[#allocation15 + $0x1e0] sm:$0xff]
          %v5060 = vld [vmem:[#allocation15 + $0x1e8] sm:$0xff]
          %v5061 = vld [vmem:[#allocation15 + $0x1f0] sm:$0xff]
          %v5062 = vld [vmem:[#allocation15 + $0x1f8] sm:$0xff]
          %v5127 = vunpack.c.l.b16 %v4999
          %v5128 = vunpack.c.h.b16 %v4999
          %v5129 = vunpack.c.l.b16 %v5000
          %v5130 = vunpack.c.h.b16 %v5000
          %v5131 = vunpack.c.l.b16 %v5001
          %v5132 = vunpack.c.h.b16 %v5001
          %v5133 = vunpack.c.l.b16 %v5002
          %v5134 = vunpack.c.h.b16 %v5002
          %v5135 = vunpack.c.l.b16 %v5003
          %v5136 = vunpack.c.h.b16 %v5003
          %v5137 = vunpack.c.l.b16 %v5004
          %v5138 = vunpack.c.h.b16 %v5004
          %v5139 = vunpack.c.l.b16 %v5005
          %v5140 = vunpack.c.h.b16 %v5005
          %v5141 = vunpack.c.l.b16 %v5006
          %v5142 = vunpack.c.h.b16 %v5006
          %v5143 = vunpack.c.l.b16 %v5007
          %v5144 = vunpack.c.h.b16 %v5007
          %v5145 = vunpack.c.l.b16 %v5008
          %v5146 = vunpack.c.h.b16 %v5008
          %v5147 = vunpack.c.l.b16 %v5009
          %v5148 = vunpack.c.h.b16 %v5009
          %v5149 = vunpack.c.l.b16 %v5010
          %v5150 = vunpack.c.h.b16 %v5010
          %v5151 = vunpack.c.l.b16 %v5011
          %v5152 = vunpack.c.h.b16 %v5011
          %v5153 = vunpack.c.l.b16 %v5012
          %v5154 = vunpack.c.h.b16 %v5012
          %v5155 = vunpack.c.l.b16 %v5013
          %v5156 = vunpack.c.h.b16 %v5013
          %v5157 = vunpack.c.l.b16 %v5014
          %v5158 = vunpack.c.h.b16 %v5014
          %v5159 = vunpack.c.l.b16 %v5015
          %v5160 = vunpack.c.h.b16 %v5015
          %v5161 = vunpack.c.l.b16 %v5016
          %v5162 = vunpack.c.h.b16 %v5016
          %v5163 = vunpack.c.l.b16 %v5017
          %v5164 = vunpack.c.h.b16 %v5017
          %v5165 = vunpack.c.l.b16 %v5018
          %v5166 = vunpack.c.h.b16 %v5018
          %v5167 = vunpack.c.l.b16 %v5019
          %v5168 = vunpack.c.h.b16 %v5019
          %v5169 = vunpack.c.l.b16 %v5020
          %v5170 = vunpack.c.h.b16 %v5020
          %v5171 = vunpack.c.l.b16 %v5021
          %v5172 = vunpack.c.h.b16 %v5021
          %v5173 = vunpack.c.l.b16 %v5022
          %v5174 = vunpack.c.h.b16 %v5022
          %v5175 = vunpack.c.l.b16 %v5023
          %v5176 = vunpack.c.h.b16 %v5023
          %v5177 = vunpack.c.l.b16 %v5024
          %v5178 = vunpack.c.h.b16 %v5024
          %v5179 = vunpack.c.l.b16 %v5025
          %v5180 = vunpack.c.h.b16 %v5025
          %v5181 = vunpack.c.l.b16 %v5026
          %v5182 = vunpack.c.h.b16 %v5026
          %v5183 = vunpack.c.l.b16 %v5027
          %v5184 = vunpack.c.h.b16 %v5027
          %v5185 = vunpack.c.l.b16 %v5028
          %v5186 = vunpack.c.h.b16 %v5028
          %v5187 = vunpack.c.l.b16 %v5029
          %v5188 = vunpack.c.h.b16 %v5029
          %v5189 = vunpack.c.l.b16 %v5030
          %v5190 = vunpack.c.h.b16 %v5030
          %v5191 = vunpack.c.l.b16 %v5031
          %v5192 = vunpack.c.h.b16 %v5031
          %v5193 = vunpack.c.l.b16 %v5032
          %v5194 = vunpack.c.h.b16 %v5032
          %v5195 = vunpack.c.l.b16 %v5033
          %v5196 = vunpack.c.h.b16 %v5033
          %v5197 = vunpack.c.l.b16 %v5034
          %v5198 = vunpack.c.h.b16 %v5034
          %v5199 = vunpack.c.l.b16 %v5035
          %v5200 = vunpack.c.h.b16 %v5035
          %v5201 = vunpack.c.l.b16 %v5036
          %v5202 = vunpack.c.h.b16 %v5036
          %v5203 = vunpack.c.l.b16 %v5037
          %v5204 = vunpack.c.h.b16 %v5037
          %v5205 = vunpack.c.l.b16 %v5038
          %v5206 = vunpack.c.h.b16 %v5038
          %v5207 = vunpack.c.l.b16 %v5039
          %v5208 = vunpack.c.h.b16 %v5039
          %v5209 = vunpack.c.l.b16 %v5040
          %v5210 = vunpack.c.h.b16 %v5040
          %v5211 = vunpack.c.l.b16 %v5041
          %v5212 = vunpack.c.h.b16 %v5041
          %v5213 = vunpack.c.l.b16 %v5042
          %v5214 = vunpack.c.h.b16 %v5042
          %v5215 = vunpack.c.l.b16 %v5043
          %v5216 = vunpack.c.h.b16 %v5043
          %v5217 = vunpack.c.l.b16 %v5044
          %v5218 = vunpack.c.h.b16 %v5044
          %v5219 = vunpack.c.l.b16 %v5045
          %v5220 = vunpack.c.h.b16 %v5045
          %v5221 = vunpack.c.l.b16 %v5046
          %v5222 = vunpack.c.h.b16 %v5046
          %v5223 = vunpack.c.l.b16 %v5047
          %v5224 = vunpack.c.h.b16 %v5047
          %v5225 = vunpack.c.l.b16 %v5048
          %v5226 = vunpack.c.h.b16 %v5048
          %v5227 = vunpack.c.l.b16 %v5049
          %v5228 = vunpack.c.h.b16 %v5049
          %v5229 = vunpack.c.l.b16 %v5050
          %v5230 = vunpack.c.h.b16 %v5050
          %v5231 = vunpack.c.l.b16 %v5051
          %v5232 = vunpack.c.h.b16 %v5051
          %v5233 = vunpack.c.l.b16 %v5052
          %v5234 = vunpack.c.h.b16 %v5052
          %v5235 = vunpack.c.l.b16 %v5053
          %v5236 = vunpack.c.h.b16 %v5053
          %v5237 = vunpack.c.l.b16 %v5054
          %v5238 = vunpack.c.h.b16 %v5054
          %v5239 = vunpack.c.l.b16 %v5055
          %v5240 = vunpack.c.h.b16 %v5055
          %v5241 = vunpack.c.l.b16 %v5056
          %v5242 = vunpack.c.h.b16 %v5056
          %v5243 = vunpack.c.l.b16 %v5057
          %v5244 = vunpack.c.h.b16 %v5057
          %v5245 = vunpack.c.l.b16 %v5058
          %v5246 = vunpack.c.h.b16 %v5058
          %v5247 = vunpack.c.l.b16 %v5059
          %v5248 = vunpack.c.h.b16 %v5059
          %v5249 = vunpack.c.l.b16 %v5060
          %v5250 = vunpack.c.h.b16 %v5060
          %v5251 = vunpack.c.l.b16 %v5061
          %v5252 = vunpack.c.h.b16 %v5061
          %v5253 = vunpack.c.l.b16 %v5062
          %v5254 = vunpack.c.h.b16 %v5062
          %v5255 = vpack.c.b16 %v5129, %v5127
          %v5256 = vpack.c.b16 %v5130, %v5128
          %v5257 = vpack.c.b16 %v5133, %v5131
          %v5258 = vpack.c.b16 %v5134, %v5132
          %v5259 = vpack.c.b16 %v5137, %v5135
          %v5260 = vpack.c.b16 %v5138, %v5136
          %v5261 = vpack.c.b16 %v5141, %v5139
          %v5262 = vpack.c.b16 %v5142, %v5140
          %v5263 = vpack.c.b16 %v5145, %v5143
          %v5264 = vpack.c.b16 %v5146, %v5144
          %v5265 = vpack.c.b16 %v5149, %v5147
          %v5266 = vpack.c.b16 %v5150, %v5148
          %v5267 = vpack.c.b16 %v5153, %v5151
          %v5268 = vpack.c.b16 %v5154, %v5152
          %v5269 = vpack.c.b16 %v5157, %v5155
          %v5270 = vpack.c.b16 %v5158, %v5156
          %v5271 = vpack.c.b16 %v5161, %v5159
          %v5272 = vpack.c.b16 %v5162, %v5160
          %v5273 = vpack.c.b16 %v5165, %v5163
          %v5274 = vpack.c.b16 %v5166, %v5164
          %v5275 = vpack.c.b16 %v5169, %v5167
          %v5276 = vpack.c.b16 %v5170, %v5168
          %v5277 = vpack.c.b16 %v5173, %v5171
          %v5278 = vpack.c.b16 %v5174, %v5172
          %v5279 = vpack.c.b16 %v5177, %v5175
          %v5280 = vpack.c.b16 %v5178, %v5176
          %v5281 = vpack.c.b16 %v5181, %v5179
          %v5282 = vpack.c.b16 %v5182, %v5180
          %v5283 = vpack.c.b16 %v5185, %v5183
          %v5284 = vpack.c.b16 %v5186, %v5184
          %v5285 = vpack.c.b16 %v5189, %v5187
          %v5286 = vpack.c.b16 %v5190, %v5188
          %v5287 = vpack.c.b16 %v5193, %v5191
          %v5288 = vpack.c.b16 %v5194, %v5192
          %v5289 = vpack.c.b16 %v5197, %v5195
          %v5290 = vpack.c.b16 %v5198, %v5196
          %v5291 = vpack.c.b16 %v5201, %v5199
          %v5292 = vpack.c.b16 %v5202, %v5200
          %v5293 = vpack.c.b16 %v5205, %v5203
          %v5294 = vpack.c.b16 %v5206, %v5204
          %v5295 = vpack.c.b16 %v5209, %v5207
          %v5296 = vpack.c.b16 %v5210, %v5208
          %v5297 = vpack.c.b16 %v5213, %v5211
          %v5298 = vpack.c.b16 %v5214, %v5212
          %v5299 = vpack.c.b16 %v5217, %v5215
          %v5300 = vpack.c.b16 %v5218, %v5216
          %v5301 = vpack.c.b16 %v5221, %v5219
          %v5302 = vpack.c.b16 %v5222, %v5220
          %v5303 = vpack.c.b16 %v5225, %v5223
          %v5304 = vpack.c.b16 %v5226, %v5224
          %v5305 = vpack.c.b16 %v5229, %v5227
          %v5306 = vpack.c.b16 %v5230, %v5228
          %v5307 = vpack.c.b16 %v5233, %v5231
          %v5308 = vpack.c.b16 %v5234, %v5232
          %v5309 = vpack.c.b16 %v5237, %v5235
          %v5310 = vpack.c.b16 %v5238, %v5236
          %v5311 = vpack.c.b16 %v5241, %v5239
          %v5312 = vpack.c.b16 %v5242, %v5240
          %v5313 = vpack.c.b16 %v5245, %v5243
          %v5314 = vpack.c.b16 %v5246, %v5244
          %v5315 = vpack.c.b16 %v5249, %v5247
          %v5316 = vpack.c.b16 %v5250, %v5248
          %v5317 = vpack.c.b16 %v5253, %v5251
          %v5318 = vpack.c.b16 %v5254, %v5252
          %5383 = vmatprep.subr.bf16.mxu0 %v5270
          %5384 = vmatpush1.bf16.msra.mxu0 %v5269
          %5385 = vmatprep.subr.bf16.mxu0 %v5268
          %5386 = vmatpush1.bf16.msra.mxu0 %v5267
          %5387 = vmatprep.subr.bf16.mxu0 %v5266
          %5388 = vmatpush1.bf16.msra.mxu0 %v5265
          %5389 = vmatprep.subr.bf16.mxu0 %v5264
          %5390 = vmatpush1.bf16.msra.mxu0 %v5263
          %5391 = vmatprep.subr.bf16.mxu0 %v5262
          %5392 = vmatpush1.bf16.msra.mxu0 %v5261
          %5393 = vmatprep.subr.bf16.mxu0 %v5260
          %5394 = vmatpush1.bf16.msra.mxu0 %v5259
          %5395 = vmatprep.subr.bf16.mxu0 %v5258
          %5396 = vmatpush1.bf16.msra.mxu0 %v5257
          %5397 = vmatprep.subr.bf16.mxu0 %v5256
          %5398 = vmatpush1.bf16.msra.mxu0 %v5255
          %5399 = vmatprep.subr.bf16.mxu0 %v5286
          %5400 = vmatpush2.bf16.msra.mxu0 %v5285
          %5401 = vmatprep.subr.bf16.mxu0 %v5284
          %5402 = vmatpush2.bf16.msra.mxu0 %v5283
          %5403 = vmatprep.subr.bf16.mxu0 %v5282
          %5404 = vmatpush2.bf16.msra.mxu0 %v5281
          %5405 = vmatprep.subr.bf16.mxu0 %v5280
          %5406 = vmatpush2.bf16.msra.mxu0 %v5279
          %5407 = vmatprep.subr.bf16.mxu0 %v5278
          %5408 = vmatpush2.bf16.msra.mxu0 %v5277
          %5409 = vmatprep.subr.bf16.mxu0 %v5276
          %5410 = vmatpush2.bf16.msra.mxu0 %v5275
          %5411 = vmatprep.subr.bf16.mxu0 %v5274
          %5412 = vmatpush2.bf16.msra.mxu0 %v5273
          %5413 = vmatprep.subr.bf16.mxu0 %v5272
          %5414 = vmatpush2.bf16.msra.mxu0 %v5271
          %5415 = vmatprep.mubr.bf16.mxu0 %v4996
          %5416 = vmatmul.mubr.bf16.gmra.mxu0 %v4995
          %v5417 = vpop.f32.mrf.mxu0
          %v5418 = vadd.f32 0.0, %v5417
          %v5419 = vpop.f32.mrf.mxu0
          %v5420 = vadd.f32 0.0, %v5419
          %v5421 = vpop.f32.mrf.mxu0
          %v5422 = vpop.f32.mrf.mxu0
          %5423 = vdwg.mxu0
          %5424 = vmatprep.subr.bf16.mxu0 %v5302
          %5425 = vmatpush1.bf16.msra.mxu0 %v5301
          %5426 = vmatprep.subr.bf16.mxu0 %v5300
          %5427 = vmatpush1.bf16.msra.mxu0 %v5299
          %5428 = vmatprep.subr.bf16.mxu0 %v5298
          %5429 = vmatpush1.bf16.msra.mxu0 %v5297
          %5430 = vmatprep.subr.bf16.mxu0 %v5296
          %5431 = vmatpush1.bf16.msra.mxu0 %v5295
          %5432 = vmatprep.subr.bf16.mxu0 %v5294
          %5433 = vmatpush1.bf16.msra.mxu0 %v5293
          %5434 = vmatprep.subr.bf16.mxu0 %v5292
          %5435 = vmatpush1.bf16.msra.mxu0 %v5291
          %5436 = vmatprep.subr.bf16.mxu0 %v5290
          %5437 = vmatpush1.bf16.msra.mxu0 %v5289
          %5438 = vmatprep.subr.bf16.mxu0 %v5288
          %5439 = vmatpush1.bf16.msra.mxu0 %v5287
          %5440 = vmatprep.subr.bf16.mxu0 %v5318
          %5441 = vmatpush2.bf16.msra.mxu0 %v5317
          %5442 = vmatprep.subr.bf16.mxu0 %v5316
          %5443 = vmatpush2.bf16.msra.mxu0 %v5315
          %5444 = vmatprep.subr.bf16.mxu0 %v5314
          %5445 = vmatpush2.bf16.msra.mxu0 %v5313
          %5446 = vmatprep.subr.bf16.mxu0 %v5312
          %5447 = vmatpush2.bf16.msra.mxu0 %v5311
          %5448 = vmatprep.subr.bf16.mxu0 %v5310
          %5449 = vmatpush2.bf16.msra.mxu0 %v5309
          %5450 = vmatprep.subr.bf16.mxu0 %v5308
          %5451 = vmatpush2.bf16.msra.mxu0 %v5307
          %5452 = vmatprep.subr.bf16.mxu0 %v5306
          %5453 = vmatpush2.bf16.msra.mxu0 %v5305
          %5454 = vmatprep.subr.bf16.mxu0 %v5304
          %5455 = vmatpush2.bf16.msra.mxu0 %v5303
          %5456 = vmatprep.mubr.bf16.mxu0 %v4998
          %5457 = vmatmul.mubr.bf16.gmra.mxu0 %v4997
          %v5458 = vpop.f32.mrf.mxu0
          %v5459 = vadd.f32 %v5418, %v5458
          %v5460 = vpop.f32.mrf.mxu0
          %v5461 = vadd.f32 %v5420, %v5460
          %v5462 = vpop.f32.mrf.mxu0
          %v5463 = vpop.f32.mrf.mxu0
          %5464 = vdwg.mxu0
          %v5465 = vld [vmem:[%s14] sm:$0x3]
          %v5467 = vlaneseq
          %v5468 = vshrl.u32 %v5467, 7
          %v5469 = vsub.s32 0, %v5468
          %v5470 = vrot.slane %v5465, %v5469
          %v5471 = vlaneseq
          %v5472 = vshrl.u32 %v5471, 7
          %v5473 = vsub.s32 1, %v5472
          %v5474 = vrot.slane %v5465, %v5473
          %v5477 = vmul.f32 %v5459, %v5470
          %v5478 = vmul.f32 %v5461, %v5474
          %v5479 = vld [vmem:[%s15] sm:$0x3]
          %v5481 = vlaneseq
          %v5482 = vshrl.u32 %v5481, 7
          %v5483 = vsub.s32 0, %v5482
          %v5484 = vrot.slane %v5479, %v5483
          %v5485 = vlaneseq
          %v5486 = vshrl.u32 %v5485, 7
          %v5487 = vsub.s32 1, %v5486
          %v5488 = vrot.slane %v5479, %v5487
          %v5491 = vadd.f32 %v5477, %v5484
          %v5492 = vadd.f32 %v5478, %v5488
          %v5493 = vmax.f32 %v5491, 0.0
          %v5494 = vmax.f32 %v5492, 0.0
          %v5495 = vpack.c.bf16 %v5493, %v5493
          %v5496 = vpack.c.bf16 %v5494, %v5494
          %v5497 = vld [vmem:[#allocation16] sm:$0xf]
          %v5498 = vld [vmem:[#allocation16 + $0x4] sm:$0xf]
          %v5499 = vld [vmem:[#allocation16 + $0x8] sm:$0xf]
          %v5500 = vld [vmem:[#allocation16 + $0xc] sm:$0xf]
          %v5501 = vld [vmem:[#allocation16 + $0x10] sm:$0xf]
          %v5502 = vld [vmem:[#allocation16 + $0x14] sm:$0xf]
          %v5503 = vld [vmem:[#allocation16 + $0x18] sm:$0xf]
          %v5504 = vld [vmem:[#allocation16 + $0x1c] sm:$0xf]
          %v5505 = vld [vmem:[#allocation16 + $0x20] sm:$0xf]
          %v5506 = vld [vmem:[#allocation16 + $0x24] sm:$0xf]
          %v5507 = vld [vmem:[#allocation16 + $0x28] sm:$0xf]
          %v5508 = vld [vmem:[#allocation16 + $0x2c] sm:$0xf]
          %v5509 = vld [vmem:[#allocation16 + $0x30] sm:$0xf]
          %v5510 = vld [vmem:[#allocation16 + $0x34] sm:$0xf]
          %v5511 = vld [vmem:[#allocation16 + $0x38] sm:$0xf]
          %v5512 = vld [vmem:[#allocation16 + $0x3c] sm:$0xf]
          %v5513 = vld [vmem:[#allocation16 + $0x40] sm:$0xf]
          %v5514 = vld [vmem:[#allocation16 + $0x44] sm:$0xf]
          %v5515 = vld [vmem:[#allocation16 + $0x48] sm:$0xf]
          %v5516 = vld [vmem:[#allocation16 + $0x4c] sm:$0xf]
          %v5517 = vld [vmem:[#allocation16 + $0x50] sm:$0xf]
          %v5518 = vld [vmem:[#allocation16 + $0x54] sm:$0xf]
          %v5519 = vld [vmem:[#allocation16 + $0x58] sm:$0xf]
          %v5520 = vld [vmem:[#allocation16 + $0x5c] sm:$0xf]
          %v5521 = vld [vmem:[#allocation16 + $0x60] sm:$0xf]
          %v5522 = vld [vmem:[#allocation16 + $0x64] sm:$0xf]
          %v5523 = vld [vmem:[#allocation16 + $0x68] sm:$0xf]
          %v5524 = vld [vmem:[#allocation16 + $0x6c] sm:$0xf]
          %v5525 = vld [vmem:[#allocation16 + $0x70] sm:$0xf]
          %v5526 = vld [vmem:[#allocation16 + $0x74] sm:$0xf]
          %v5527 = vld [vmem:[#allocation16 + $0x78] sm:$0xf]
          %v5528 = vld [vmem:[#allocation16 + $0x7c] sm:$0xf]
          %v5529 = vld [vmem:[%s17] sm:$0x1]
          %v5531 = vlaneseq
          %v5532 = vshrl.u32 %v5531, 7
          %v5533 = vsub.s32 0, %v5532
          %v5534 = vrot.slane %v5529, %v5533
          %v5568 = vunpack.c.l.b16 %v5497
          %v5569 = vunpack.c.l.b16 %v5498
          %v5570 = vunpack.c.l.b16 %v5499
          %v5571 = vunpack.c.l.b16 %v5500
          %v5572 = vunpack.c.l.b16 %v5501
          %v5573 = vunpack.c.l.b16 %v5502
          %v5574 = vunpack.c.l.b16 %v5503
          %v5575 = vunpack.c.l.b16 %v5504
          %v5576 = vunpack.c.l.b16 %v5505
          %v5577 = vunpack.c.l.b16 %v5506
          %v5578 = vunpack.c.l.b16 %v5507
          %v5579 = vunpack.c.l.b16 %v5508
          %v5580 = vunpack.c.l.b16 %v5509
          %v5581 = vunpack.c.l.b16 %v5510
          %v5582 = vunpack.c.l.b16 %v5511
          %v5583 = vunpack.c.l.b16 %v5512
          %v5584 = vunpack.c.l.b16 %v5513
          %v5585 = vunpack.c.l.b16 %v5514
          %v5586 = vunpack.c.l.b16 %v5515
          %v5587 = vunpack.c.l.b16 %v5516
          %v5588 = vunpack.c.l.b16 %v5517
          %v5589 = vunpack.c.l.b16 %v5518
          %v5590 = vunpack.c.l.b16 %v5519
          %v5591 = vunpack.c.l.b16 %v5520
          %v5592 = vunpack.c.l.b16 %v5521
          %v5593 = vunpack.c.l.b16 %v5522
          %v5594 = vunpack.c.l.b16 %v5523
          %v5595 = vunpack.c.l.b16 %v5524
          %v5596 = vunpack.c.l.b16 %v5525
          %v5597 = vunpack.c.l.b16 %v5526
          %v5598 = vunpack.c.l.b16 %v5527
          %v5599 = vunpack.c.l.b16 %v5528
          %v5600 = vpack.c.b16 %v5569, %v5568
          %v5601 = vpack.c.b16 %v5571, %v5570
          %v5602 = vpack.c.b16 %v5573, %v5572
          %v5603 = vpack.c.b16 %v5575, %v5574
          %v5604 = vpack.c.b16 %v5577, %v5576
          %v5605 = vpack.c.b16 %v5579, %v5578
          %v5606 = vpack.c.b16 %v5581, %v5580
          %v5607 = vpack.c.b16 %v5583, %v5582
          %v5608 = vpack.c.b16 %v5585, %v5584
          %v5609 = vpack.c.b16 %v5587, %v5586
          %v5610 = vpack.c.b16 %v5589, %v5588
          %v5611 = vpack.c.b16 %v5591, %v5590
          %v5612 = vpack.c.b16 %v5593, %v5592
          %v5613 = vpack.c.b16 %v5595, %v5594
          %v5614 = vpack.c.b16 %v5597, %v5596
          %v5615 = vpack.c.b16 %v5599, %v5598
          %5632 = vmatprep.subr.bf16.mxu0 0
          %5633 = vmatpush1.bf16.msra.mxu0 %v5607
          %5634 = vmatprep.subr.bf16.mxu0 0
          %5635 = vmatpush1.bf16.msra.mxu0 %v5606
          %5636 = vmatprep.subr.bf16.mxu0 0
          %5637 = vmatpush1.bf16.msra.mxu0 %v5605
          %5638 = vmatprep.subr.bf16.mxu0 0
          %5639 = vmatpush1.bf16.msra.mxu0 %v5604
          %5640 = vmatprep.subr.bf16.mxu0 0
          %5641 = vmatpush1.bf16.msra.mxu0 %v5603
          %5642 = vmatprep.subr.bf16.mxu0 0
          %5643 = vmatpush1.bf16.msra.mxu0 %v5602
          %5644 = vmatprep.subr.bf16.mxu0 0
          %5645 = vmatpush1.bf16.msra.mxu0 %v5601
          %5646 = vmatprep.subr.bf16.mxu0 0
          %5647 = vmatpush1.bf16.msra.mxu0 %v5600
          %5648 = vmatprep.subr.bf16.mxu0 0
          %5649 = vmatpush2.bf16.msra.mxu0 %v5615
          %5650 = vmatprep.subr.bf16.mxu0 0
          %5651 = vmatpush2.bf16.msra.mxu0 %v5614
          %5652 = vmatprep.subr.bf16.mxu0 0
          %5653 = vmatpush2.bf16.msra.mxu0 %v5613
          %5654 = vmatprep.subr.bf16.mxu0 0
          %5655 = vmatpush2.bf16.msra.mxu0 %v5612
          %5656 = vmatprep.subr.bf16.mxu0 0
          %5657 = vmatpush2.bf16.msra.mxu0 %v5611
          %5658 = vmatprep.subr.bf16.mxu0 0
          %5659 = vmatpush2.bf16.msra.mxu0 %v5610
          %5660 = vmatprep.subr.bf16.mxu0 0
          %5661 = vmatpush2.bf16.msra.mxu0 %v5609
          %5662 = vmatprep.subr.bf16.mxu0 0
          %5663 = vmatpush2.bf16.msra.mxu0 %v5608
          %5664 = vmatprep.mubr.bf16.mxu0 %v5496
          %5665 = vmatmul.mubr.bf16.gmra.mxu0 %v5495
          %v5666 = vpop.f32.mrf.mxu0
          %v5667 = vadd.f32 %v5534, %v5666
          %v5668 = vpop.f32.mrf.mxu0
          %v5669 = vpop.f32.mrf.mxu0
          %v5670 = vpop.f32.mrf.mxu0
          %5671 = vdwg.mxu0
          %5672 = vst [vmem:[#allocation18] sm:$0x3] %v5667
        $region174: #{tpu_custom_call.1} parent=125 // pred_fallthru
          _
        // Predicated region
        $region175: #{tpu_custom_call.1} parent=125 // pred_check
          %p5673 = pneg %p450
        $region176: #{tpu_custom_call.1} parent=125 // pred_check_branch
          %5675 = sbr.rel (%p5673) target = $region178
        $region177: #{tpu_custom_call.1} parent=125 // pred_region
          %s5677 = ssub.s32 32, 32
          %5678 = vsyncadd [#allocation6], %s5677
          %s5679 = smul.addr %s39, 32
          %s5680 = scalar_lea.hbm %s18, %s5679
          %s5682 = sshll.u32 [#allocation18], 4
          %s5683 = int_to_ptr.vmem [resolvable:$true] %s5682
          %5685 = dma.vmem_to_hbm [thread:$0]  %s5683, 32, %s5680, [#allocation6]
        $region178: #{tpu_custom_call.1} parent=125 // pred_fallthru
          _
        // Predicated region
        $region179: #{tpu_custom_call.1} parent=125 // pred_check
          %p5686 = pneg %p450
        $region180: #{tpu_custom_call.1} parent=125 // pred_check_branch
          %5688 = sbr.rel (%p5686) target = $region182
        $region181: #{tpu_custom_call.1} parent=125 // pred_region
          %5689 = dma.done [#allocation6], 32
        $region182: #{tpu_custom_call.1} parent=125 // pred_fallthru
          _
      $region126: #{tpu_custom_call.1} parent=5 // pred_fallthru
        _
      %p5690 = scmp.le.s32.totalorder 2, %s30
      // Predicated region
      $region183: #{tpu_custom_call.1} parent=5 // pred_check
        %p5691 = pneg %p5690
      $region184: #{tpu_custom_call.1} parent=5 // pred_check_branch
        %5693 = sbr.rel (%p5691) target = $region186
      $region185: #{tpu_custom_call.1} parent=5 // pred_region
        %s5694 = ssub.s32 %s30, 2
      $region186: #{tpu_custom_call.1} parent=5 // pred_fallthru
        _
    $region6: #{tpu_custom_call.1} parent=1 // loop_footer
      %s34 = sadd.s32 1, %s30
    $region7: #{tpu_custom_call.1} parent=1 // loop_footer_branch
      %29 = sbr.rel target = $region3
    $region8: #{tpu_custom_call.1} parent=1 // loop_exit
      _
    %5695 = vsyncpa [#allocation5], 1
    %s5696 = scalar_lea.sflag [#allocation5], 1
    %5697 = vsyncpa %s5696, 1
    %5698 = vsyncpa [#allocation8], 1
    %5699 = vsyncpa [#allocation11], 1
    %5700 = vsyncpa [#allocation14], 1
    %5701 = vsyncpa [#allocation17], 1
    %5702 = vsyncpa [#allocation6], 1
    %s5703 = scalar_lea.sflag [#allocation6], 1
    %5704 = vsyncpa %s5703, 1

</llo_original>
